<compile_context>
chip_gen: v7x
topology: tpu7x:2x2x1
jax: 0.10.0
libtpu: 0.0.40
codegen_flags: <defaults>
</compile_context>

<pallas_src>
import functools
import math

import jax
import jax.numpy as jnp
from jax.experimental import pallas as pl
from jax.experimental.pallas import tpu as pltpu


# ---------------------------------------------------------------------------
# Config (small, deterministic "BERT")
# ---------------------------------------------------------------------------
CFG = dict(
    vocab_size=100,
    type_vocab_size=2,
    max_position=32,
    hidden=128,
    num_layers=2,
    num_heads=2,
    head_dim=64,          # num_heads * head_dim == hidden
    intermediate=256,
    num_labels=3,
    layer_norm_eps=1e-12,
)

LANE = 128  # TPU lane width


# ---------------------------------------------------------------------------
# In-kernel helpers (all math in f32)
# ---------------------------------------------------------------------------
def _layernorm(v, g, b, eps):
    g = g.astype(jnp.float32)
    b = b.astype(jnp.float32)
    mean = jnp.mean(v, axis=-1, keepdims=True)
    cent = v - mean
    var = jnp.mean(cent * cent, axis=-1, keepdims=True)
    return cent * jax.lax.rsqrt(var + eps) * g + b


def _gelu(x):
    # exact erf-GELU, as in BERT
    return 0.5 * x * (1.0 + jax.lax.erf(x * (1.0 / math.sqrt(2.0))))


# ---------------------------------------------------------------------------
# Fused kernel: grid axis = encoder layer.
#   layer 0 prologue : embedding LayerNorm -> hidden scratch
#   every layer      : fused QKV + MHA + out-proj + add&LN + FFN-GELU + add&LN
#   last layer       : pooler (tanh) + classifier -> 128-lane logits slab
# ---------------------------------------------------------------------------
def _bert_fused_kernel(emb_ref, bias_ref,
                       emb_g_ref, emb_b_ref,
                       qkv_w_ref, qkv_b_ref,
                       ao_w_ref, ao_b_ref,
                       ln1_g_ref, ln1_b_ref,
                       fi_w_ref, fi_b_ref,
                       fo_w_ref, fo_b_ref,
                       ln2_g_ref, ln2_b_ref,
                       pool_w_ref, pool_b_ref,
                       cls_w_ref, cls_b_ref,
                       logits_ref,
                       hid_ref,
                       *, B, S, nh, dh, eps, scale, num_layers):
    layer = pl.program_id(0)
    H = nh * dh
    M = B * S

    # --- prologue: embedding LayerNorm into resident hidden-state scratch ---
    @pl.when(layer == 0)
    def _():
        e = emb_ref[...].astype(jnp.float32)
        hid_ref[...] = _layernorm(e, emb_g_ref[...], emb_b_ref[...], eps)

    x = hid_ref[...]                                   # [M, H] f32 (resident)
    xb = x.astype(jnp.bfloat16)
    bias = bias_ref[...]                               # [M, M] block-diag additive mask

    # --- fused QKV projection: single [M,H] @ [H,3H] bf16 matmul, f32 acc ---
    qkv = jnp.dot(xb, qkv_w_ref[0], preferred_element_type=jnp.float32)
    qkv = qkv + qkv_b_ref[0].astype(jnp.float32)       # [M, 3H]

    # --- multi-head attention: all batches per head in one score matmul;
    #     head concat folded into the output projection (accumulate).      ---
    ao_w = ao_w_ref[0]                                 # [H, H] bf16
    attn = jnp.zeros((M, H), jnp.float32)
    for h in range(nh):
        lo, hi = h * dh, (h + 1) * dh
        qh = (qkv[:, lo:hi] * scale).astype(jnp.bfloat16)          # [M, dh]
        kh = qkv[:, H + lo:H + hi].astype(jnp.bfloat16)            # [M, dh]
        vh = qkv[:, 2 * H + lo:2 * H + hi].astype(jnp.bfloat16)    # [M, dh]
        # scores for all batches at once; cross-batch entries masked by bias
        scores = jax.lax.dot_general(
            qh, kh, (((1,), (1,)), ((), ())),
            preferred_element_type=jnp.float32) + bias             # [M, M]
        mx = jnp.max(scores, axis=-1, keepdims=True)
        p = jnp.exp(scores - mx)
        p = p * pl.reciprocal(jnp.sum(p, axis=-1, keepdims=True), approx=True)
        ctx = jnp.dot(p.astype(jnp.bfloat16), vh,
                      preferred_element_type=jnp.float32)          # [M, dh]
        attn = attn + jnp.dot(ctx.astype(jnp.bfloat16), ao_w[lo:hi, :],
                              preferred_element_type=jnp.float32)  # [M, H]
    attn = attn + ao_b_ref[0].astype(jnp.float32)

    # --- add & norm ---
    h1 = _layernorm(attn + x, ln1_g_ref[0], ln1_b_ref[0], eps)

    # --- FFN (exact erf-GELU) + add & norm ---
    f = jnp.dot(h1.astype(jnp.bfloat16), fi_w_ref[0],
                preferred_element_type=jnp.float32)
    f = _gelu(f + fi_b_ref[0].astype(jnp.float32))
    f = jnp.dot(f.astype(jnp.bfloat16), fo_w_ref[0],
                preferred_element_type=jnp.float32)
    f = f + fo_b_ref[0].astype(jnp.float32)
    h2 = _layernorm(f + h1, ln2_g_ref[0], ln2_b_ref[0], eps)

    hid_ref[...] = h2                                   # carry to next layer

    # --- epilogue: pooler (tanh) + classifier on CLS rows ---
    @pl.when(layer == num_layers - 1)
    def _():
        cls = h2.reshape(B, S, H)[:, 0, :]              # [B, H] CLS tokens
        pooled = jnp.tanh(
            jnp.dot(cls.astype(jnp.bfloat16), pool_w_ref[...],
                    preferred_element_type=jnp.float32)
            + pool_b_ref[...].astype(jnp.float32))
        logits = jnp.dot(pooled.astype(jnp.bfloat16), cls_w_ref[...],
                         preferred_element_type=jnp.float32)
        logits = logits + cls_b_ref[...].astype(jnp.float32)
        logits_ref[...] = logits.astype(logits_ref.dtype)


def bert_fused(emb, bias, p, B, S, cfg):
    M, H = emb.shape
    L = cfg["num_layers"]
    I = cfg["intermediate"]
    nh, dh = cfg["num_heads"], cfg["head_dim"]
    NP = p["cls_w"].shape[1]

    kernel = functools.partial(
        _bert_fused_kernel, B=B, S=S, nh=nh, dh=dh,
        eps=cfg["layer_norm_eps"], scale=1.0 / math.sqrt(dh), num_layers=L)

    const2 = lambda l: (0, 0)          # grid-invariant 2-D input
    layer3 = lambda l: (l, 0, 0)       # per-layer stacked weight

    return pl.pallas_call(
        kernel,
        out_shape=jax.ShapeDtypeStruct((B, NP), jnp.float32),
        grid=(L,),
        in_specs=[
            pl.BlockSpec((M, H), const2),            # embeddings (pre-LN)
            pl.BlockSpec((M, M), const2),            # block-diag mask bias
            pl.BlockSpec((1, H), const2),            # emb LN gamma
            pl.BlockSpec((1, H), const2),            # emb LN beta
            pl.BlockSpec((1, H, 3 * H), layer3),     # fused QKV weight (bf16)
            pl.BlockSpec((1, 1, 3 * H), layer3),     # fused QKV bias
            pl.BlockSpec((1, H, H), layer3),         # attn output proj W (bf16)
            pl.BlockSpec((1, 1, H), layer3),         # attn output proj b
            pl.BlockSpec((1, 1, H), layer3),         # attn LN gamma
            pl.BlockSpec((1, 1, H), layer3),         # attn LN beta
            pl.BlockSpec((1, H, I), layer3),         # FFN in W (bf16)
            pl.BlockSpec((1, 1, I), layer3),         # FFN in b
            pl.BlockSpec((1, I, H), layer3),         # FFN out W (bf16)
            pl.BlockSpec((1, 1, H), layer3),         # FFN out b
            pl.BlockSpec((1, 1, H), layer3),         # FFN LN gamma
            pl.BlockSpec((1, 1, H), layer3),         # FFN LN beta
            pl.BlockSpec((H, H), const2),            # pooler W (bf16)
            pl.BlockSpec((1, H), const2),            # pooler b
            pl.BlockSpec((H, NP), const2),           # classifier W padded (bf16)
            pl.BlockSpec((1, NP), const2),           # classifier b padded
        ],
        out_specs=pl.BlockSpec((B, NP), const2),
        scratch_shapes=[pltpu.VMEM((M, H), jnp.float32)],   # resident hidden state
        compiler_params=pltpu.CompilerParams(
            dimension_semantics=("arbitrary",)),
    )(emb, bias,
      p["emb_ln_g"], p["emb_ln_b"],
      p["qkv_w"], p["qkv_b"], p["ao_w"], p["ao_b"],
      p["ln1_g"], p["ln1_b"], p["fi_w"], p["fi_b"],
      p["fo_w"], p["fo_b"], p["ln2_g"], p["ln2_b"],
      p["pool_w"], p["pool_b"], p["cls_w"], p["cls_b"])


# ---------------------------------------------------------------------------
# Parameter initialization (deterministic, BERT-style normal(0, 0.02))
# Per-layer weights are pre-stacked on a leading layer axis; matmul weights bf16.
# ---------------------------------------------------------------------------
def init_params(key, cfg):
    H, I, L = cfg["hidden"], cfg["intermediate"], cfg["num_layers"]
    n_labels = cfg["num_labels"]
    n_pad = ((n_labels + LANE - 1) // LANE) * LANE

    def nrm(k, shape, dtype=jnp.float32):
        return (jax.random.normal(k, shape, jnp.float32) * 0.02).astype(dtype)

    keys = iter(jax.random.split(key, 32))
    cls_w = nrm(next(keys), (H, n_labels))
    p = {
        "word_emb": nrm(next(keys), (cfg["vocab_size"], H)),
        "pos_emb": nrm(next(keys), (cfg["max_position"], H)),
        "type_emb": nrm(next(keys), (cfg["type_vocab_size"], H)),
        "emb_ln_g": jnp.ones((1, H), jnp.float32),
        "emb_ln_b": jnp.zeros((1, H), jnp.float32),
        # stacked per-layer weights (leading axis = layer)
        "qkv_w": nrm(next(keys), (L, H, 3 * H), jnp.bfloat16),
        "qkv_b": jnp.zeros((L, 1, 3 * H), jnp.float32),
        "ao_w": nrm(next(keys), (L, H, H), jnp.bfloat16),
        "ao_b": jnp.zeros((L, 1, H), jnp.float32),
        "ln1_g": jnp.ones((L, 1, H), jnp.float32),
        "ln1_b": jnp.zeros((L, 1, H), jnp.float32),
        "fi_w": nrm(next(keys), (L, H, I), jnp.bfloat16),
        "fi_b": jnp.zeros((L, 1, I), jnp.float32),
        "fo_w": nrm(next(keys), (L, I, H), jnp.bfloat16),
        "fo_b": jnp.zeros((L, 1, H), jnp.float32),
        "ln2_g": jnp.ones((L, 1, H), jnp.float32),
        "ln2_b": jnp.zeros((L, 1, H), jnp.float32),
        # pooler + classifier head (classifier zero-padded to 128 lanes)
        "pool_w": nrm(next(keys), (H, H), jnp.bfloat16),
        "pool_b": jnp.zeros((1, H), jnp.float32),
        "cls_w": jnp.pad(cls_w, ((0, 0), (0, n_pad - n_labels))).astype(jnp.bfloat16),
        "cls_b": jnp.zeros((1, n_pad), jnp.float32),
    }
    return p


# ---------------------------------------------------------------------------
# Forward pass (mirrors BertFineTuneBase.forward, num_tasks=1, eval mode)
# ---------------------------------------------------------------------------
def bert_fine_tune_forward(params, input_ids, attention_mask, cfg):
    B, S = input_ids.shape
    H = cfg["hidden"]
    M = B * S

    # --- embeddings (gather + adds are glue; everything else is one kernel) ---
    word = jnp.take(params["word_emb"], input_ids, axis=0)           # [B,S,H]
    pos = params["pos_emb"][:S][None, :, :]                          # [1,S,H]
    typ = params["type_emb"][0][None, None, :]                       # token_type_ids = 0
    emb = (word + pos + typ).reshape(M, H)

    # block-diagonal additive attention bias [M, M]:
    #   0 where (same batch) AND (key not padded), else -1e9
    batch_ids = jnp.repeat(jnp.arange(B), S)                         # [M]
    same_batch = batch_ids[:, None] == batch_ids[None, :]            # [M, M]
    key_ok = (attention_mask.reshape(M) > 0.5)[None, :]              # [1, M]
    bias = jnp.where(same_batch & key_ok, 0.0, -1e9).astype(jnp.float32)

    logits_pad = bert_fused(emb, bias, params, B, S, cfg)            # [B, 128]
    return logits_pad[:, :cfg["num_labels"]]


# ---------------------------------------------------------------------------
if __name__ == "__main__":
    key = jax.random.PRNGKey(0)
    pkey, ikey = jax.random.split(key)

    params = init_params(pkey, CFG)

    B, S = 2, 16
    input_ids = jax.random.randint(ikey, (B, S), 0, CFG["vocab_size"], dtype=jnp.int32)
    attention_mask = jnp.ones((B, S), jnp.float32)
    attention_mask = attention_mask.at[1, -3:].set(0.0)   # pad last 3 tokens of example 1

    fwd = jax.jit(functools.partial(bert_fine_tune_forward, cfg=CFG))
    logits = fwd(params, input_ids, attention_mask)
    logits = jax.block_until_ready(logits)

    assert logits.shape == (B, CFG["num_labels"])
    assert bool(jnp.all(jnp.isfinite(logits)))
    print("KERNEL_OK")
</pallas_src>

<mosaic_0001>
module attributes {stable_mosaic.version = 11 : i64} {
  func.func @_bert_fused_kernel(%arg0: i32, %arg1: memref<32x128xf32, #tpu.memory_space<vmem>>, %arg2: memref<32x32xf32, #tpu.memory_space<vmem>>, %arg3: memref<1x128xf32, #tpu.memory_space<vmem>>, %arg4: memref<1x128xf32, #tpu.memory_space<vmem>>, %arg5: memref<1x128x384xbf16, #tpu.memory_space<vmem>>, %arg6: memref<1x1x384xf32, #tpu.memory_space<vmem>>, %arg7: memref<1x128x128xbf16, #tpu.memory_space<vmem>>, %arg8: memref<1x1x128xf32, #tpu.memory_space<vmem>>, %arg9: memref<1x1x128xf32, #tpu.memory_space<vmem>>, %arg10: memref<1x1x128xf32, #tpu.memory_space<vmem>>, %arg11: memref<1x128x256xbf16, #tpu.memory_space<vmem>>, %arg12: memref<1x1x256xf32, #tpu.memory_space<vmem>>, %arg13: memref<1x256x128xbf16, #tpu.memory_space<vmem>>, %arg14: memref<1x1x128xf32, #tpu.memory_space<vmem>>, %arg15: memref<1x1x128xf32, #tpu.memory_space<vmem>>, %arg16: memref<1x1x128xf32, #tpu.memory_space<vmem>>, %arg17: memref<128x128xbf16, #tpu.memory_space<vmem>>, %arg18: memref<1x128xf32, #tpu.memory_space<vmem>>, %arg19: memref<128x128xbf16, #tpu.memory_space<vmem>>, %arg20: memref<1x128xf32, #tpu.memory_space<vmem>>, %arg21: memref<2x128xf32, #tpu.memory_space<vmem>>, %arg22: memref<32x128xf32, #tpu.memory_space<vmem>>) attributes {dimension_semantics = [#tpu.dimension_semantics<arbitrary>], iteration_bounds = array<i64: 2>, scalar_prefetch = 0 : i64, scratch_operands = 1 : i64, tpu.core_type = #tpu.core_type<tc>, window_params = [{pipeline_mode = #tpu.pipeline_mode<synchronous>, transform_indices = @transform_0, window_bounds = array<i64: 32, 128>}, {pipeline_mode = #tpu.pipeline_mode<synchronous>, transform_indices = @transform_1, window_bounds = array<i64: 32, 32>}, {pipeline_mode = #tpu.pipeline_mode<synchronous>, transform_indices = @transform_2, window_bounds = array<i64: 1, 128>}, {pipeline_mode = #tpu.pipeline_mode<synchronous>, transform_indices = @transform_3, window_bounds = array<i64: 1, 128>}, {transform_indices = @transform_4, window_bounds = array<i64: 1, 128, 384>}, {transform_indices = @transform_5, window_bounds = array<i64: 1, 1, 384>}, {transform_indices = @transform_6, window_bounds = array<i64: 1, 128, 128>}, {transform_indices = @transform_7, window_bounds = array<i64: 1, 1, 128>}, {transform_indices = @transform_8, window_bounds = array<i64: 1, 1, 128>}, {transform_indices = @transform_9, window_bounds = array<i64: 1, 1, 128>}, {transform_indices = @transform_10, window_bounds = array<i64: 1, 128, 256>}, {transform_indices = @transform_11, window_bounds = array<i64: 1, 1, 256>}, {transform_indices = @transform_12, window_bounds = array<i64: 1, 256, 128>}, {transform_indices = @transform_13, window_bounds = array<i64: 1, 1, 128>}, {transform_indices = @transform_14, window_bounds = array<i64: 1, 1, 128>}, {transform_indices = @transform_15, window_bounds = array<i64: 1, 1, 128>}, {pipeline_mode = #tpu.pipeline_mode<synchronous>, transform_indices = @transform_16, window_bounds = array<i64: 128, 128>}, {pipeline_mode = #tpu.pipeline_mode<synchronous>, transform_indices = @transform_17, window_bounds = array<i64: 1, 128>}, {pipeline_mode = #tpu.pipeline_mode<synchronous>, transform_indices = @transform_18, window_bounds = array<i64: 128, 128>}, {pipeline_mode = #tpu.pipeline_mode<synchronous>, transform_indices = @transform_19, window_bounds = array<i64: 1, 128>}, {pipeline_mode = #tpu.pipeline_mode<synchronous>, transform_indices = @transform_20, window_bounds = array<i64: 2, 128>}]} {
    %c0_i32 = arith.constant 0 : i32
    %0 = arith.cmpi eq, %arg0, %c0_i32 : i32
    %1 = arith.extui %0 : i1 to i32
    %c0_i32_0 = arith.constant 0 : i32
    %2 = arith.cmpi ne, %1, %c0_i32_0 : i32
    scf.if %2 {
      %c0_71 = arith.constant 0 : index
      %c0_72 = arith.constant 0 : index
      %150 = vector.load %arg1[%c0_71, %c0_72] : memref<32x128xf32, #tpu.memory_space<vmem>>, vector<32x128xf32>
      %c0_73 = arith.constant 0 : index
      %c0_74 = arith.constant 0 : index
      %151 = vector.load %arg3[%c0_73, %c0_74] : memref<1x128xf32, #tpu.memory_space<vmem>>, vector<1x128xf32>
      %c0_75 = arith.constant 0 : index
      %c0_76 = arith.constant 0 : index
      %152 = vector.load %arg4[%c0_75, %c0_76] : memref<1x128xf32, #tpu.memory_space<vmem>>, vector<1x128xf32>
      %cst_77 = arith.constant dense<0.000000e+00> : vector<32xf32>
      %153 = vector.multi_reduction <add>, %150, %cst_77 [1] : vector<32x128xf32> to vector<32xf32>
      %154 = vector.shape_cast %153 : vector<32xf32> to vector<32x1xf32>
      %cst_78 = arith.constant 1.280000e+02 : f32
      %155 = vector.broadcast %cst_78 : f32 to vector<32x1xf32>
      %156 = arith.divf %154, %155 : vector<32x1xf32>
      %157 = vector.broadcast %156 : vector<32x1xf32> to vector<32x128xf32>
      %158 = arith.subf %150, %157 : vector<32x128xf32>
      %159 = arith.mulf %158, %158 : vector<32x128xf32>
      %cst_79 = arith.constant dense<0.000000e+00> : vector<32xf32>
      %160 = vector.multi_reduction <add>, %159, %cst_79 [1] : vector<32x128xf32> to vector<32xf32>
      %161 = vector.shape_cast %160 : vector<32xf32> to vector<32x1xf32>
      %cst_80 = arith.constant 1.280000e+02 : f32
      %162 = vector.broadcast %cst_80 : f32 to vector<32x1xf32>
      %163 = arith.divf %161, %162 : vector<32x1xf32>
      %cst_81 = arith.constant 9.99999996E-13 : f32
      %164 = vector.broadcast %cst_81 : f32 to vector<32x1xf32>
      %165 = arith.addf %163, %164 : vector<32x1xf32>
      %166 = math.rsqrt %165 : vector<32x1xf32>
      %167 = vector.broadcast %166 : vector<32x1xf32> to vector<32x128xf32>
      %168 = arith.mulf %158, %167 : vector<32x128xf32>
      %169 = vector.broadcast %151 : vector<1x128xf32> to vector<32x128xf32>
      %170 = arith.mulf %168, %169 : vector<32x128xf32>
      %171 = vector.broadcast %152 : vector<1x128xf32> to vector<32x128xf32>
      %172 = arith.addf %170, %171 : vector<32x128xf32>
      %c0_82 = arith.constant 0 : index
      %c0_83 = arith.constant 0 : index
      %173 = vector.load %arg22[%c0_82, %c0_83] : memref<32x128xf32, #tpu.memory_space<vmem>>, vector<32x128xf32>
      tpu.vector_store %arg22[%c0_82, %c0_83], %172 {strides = array<i32>} : memref<32x128xf32, #tpu.memory_space<vmem>>, vector<32x128xf32>,
    } else {
    }
    %c0 = arith.constant 0 : index
    %c0_1 = arith.constant 0 : index
    %3 = vector.load %arg22[%c0, %c0_1] : memref<32x128xf32, #tpu.memory_space<vmem>>, vector<32x128xf32>
    %4 = arith.truncf %3 : vector<32x128xf32> to vector<32x128xbf16>
    %c0_2 = arith.constant 0 : index
    %c0_3 = arith.constant 0 : index
    %5 = vector.load %arg2[%c0_2, %c0_3] : memref<32x32xf32, #tpu.memory_space<vmem>>, vector<32x32xf32>
    %c0_4 = arith.constant 0 : index
    %c0_5 = arith.constant 0 : index
    %c0_6 = arith.constant 0 : index
    %6 = vector.load %arg5[%c0_4, %c0_5, %c0_6] : memref<1x128x384xbf16, #tpu.memory_space<vmem>>, vector<1x128x384xbf16>
    %7 = vector.shape_cast %6 : vector<1x128x384xbf16> to vector<128x384xbf16>
    %cst = arith.constant dense<0.000000e+00> : vector<32x384xf32>
    %8 = tpu.matmul %4, %7, %cst {dimension_numbers = #tpu.dot_dimension_numbers<[1], [0], [0], [1], [0, 0, 1, 1], [], []>} : vector<32x128xbf16>, vector<128x384xbf16>, vector<32x384xf32> -> vector<32x384xf32>
    %c0_7 = arith.constant 0 : index
    %c0_8 = arith.constant 0 : index
    %c0_9 = arith.constant 0 : index
    %9 = vector.load %arg6[%c0_7, %c0_8, %c0_9] : memref<1x1x384xf32, #tpu.memory_space<vmem>>, vector<1x1x384xf32>
    %10 = vector.shape_cast %9 : vector<1x1x384xf32> to vector<1x384xf32>
    %11 = vector.broadcast %10 : vector<1x384xf32> to vector<32x384xf32>
    %12 = arith.addf %8, %11 : vector<32x384xf32>
    %c0_10 = arith.constant 0 : index
    %c0_11 = arith.constant 0 : index
    %c0_12 = arith.constant 0 : index
    %13 = vector.load %arg7[%c0_10, %c0_11, %c0_12] : memref<1x128x128xbf16, #tpu.memory_space<vmem>>, vector<1x128x128xbf16>
    %14 = vector.shape_cast %13 : vector<1x128x128xbf16> to vector<128x128xbf16>
    %cst_13 = arith.constant 0.000000e+00 : f32
    %15 = vector.broadcast %cst_13 : f32 to vector<32x128xf32>
    %16 = vector.extract_strided_slice %12 {offsets = [0, 0], sizes = [32, 64], strides = [1, 1]} : vector<32x384xf32> to vector<32x64xf32>
    %cst_14 = arith.constant 1.250000e-01 : f32
    %17 = vector.broadcast %cst_14 : f32 to vector<32x64xf32>
    %18 = arith.mulf %16, %17 : vector<32x64xf32>
    %19 = arith.truncf %18 : vector<32x64xf32> to vector<32x64xbf16>
    %20 = vector.extract_strided_slice %12 {offsets = [0, 128], sizes = [32, 64], strides = [1, 1]} : vector<32x384xf32> to vector<32x64xf32>
    %21 = arith.truncf %20 : vector<32x64xf32> to vector<32x64xbf16>
    %22 = vector.extract_strided_slice %12 {offsets = [0, 256], sizes = [32, 64], strides = [1, 1]} : vector<32x384xf32> to vector<32x64xf32>
    %23 = arith.truncf %22 : vector<32x64xf32> to vector<32x64xbf16>
    %cst_15 = arith.constant dense<0.000000e+00> : vector<32x32xf32>
    %24 = tpu.matmul %19, %21, %cst_15 {dimension_numbers = #tpu.dot_dimension_numbers<[1], [1], [0], [0], [0, 0, 1, 0], [], []>} : vector<32x64xbf16>, vector<32x64xbf16>, vector<32x32xf32> -> vector<32x32xf32>
    %25 = arith.addf %24, %5 : vector<32x32xf32>
    %cst_16 = arith.constant dense<0xFF800000> : vector<32xf32>
    %26 = vector.multi_reduction <maximumf>, %25, %cst_16 [1] : vector<32x32xf32> to vector<32xf32>
    %27 = vector.shape_cast %26 : vector<32xf32> to vector<32x1xf32>
    %28 = vector.broadcast %27 : vector<32x1xf32> to vector<32x32xf32>
    %29 = arith.subf %25, %28 : vector<32x32xf32>
    %30 = math.exp %29 : vector<32x32xf32>
    %cst_17 = arith.constant dense<0.000000e+00> : vector<32xf32>
    %31 = vector.multi_reduction <add>, %30, %cst_17 [1] : vector<32x32xf32> to vector<32xf32>
    %32 = vector.shape_cast %31 : vector<32xf32> to vector<32x1xf32>
    %33 = tpu.reciprocal %32 {approx = true} : vector<32x1xf32> -> vector<32x1xf32>
    %34 = vector.broadcast %33 : vector<32x1xf32> to vector<32x32xf32>
    %35 = arith.mulf %30, %34 : vector<32x32xf32>
    %36 = arith.truncf %35 : vector<32x32xf32> to vector<32x32xbf16>
    %cst_18 = arith.constant dense<0.000000e+00> : vector<32x64xf32>
    %37 = tpu.matmul %36, %23, %cst_18 {dimension_numbers = #tpu.dot_dimension_numbers<[1], [0], [0], [1], [0, 0, 1, 1], [], []>} : vector<32x32xbf16>, vector<32x64xbf16>, vector<32x64xf32> -> vector<32x64xf32>
    %38 = arith.truncf %37 : vector<32x64xf32> to vector<32x64xbf16>
    %39 = vector.extract_strided_slice %14 {offsets = [0, 0], sizes = [64, 128], strides = [1, 1]} : vector<128x128xbf16> to vector<64x128xbf16>
    %cst_19 = arith.constant dense<0.000000e+00> : vector<32x128xf32>
    %40 = tpu.matmul %38, %39, %cst_19 {dimension_numbers = #tpu.dot_dimension_numbers<[1], [0], [0], [1], [0, 0, 1, 1], [], []>} : vector<32x64xbf16>, vector<64x128xbf16>, vector<32x128xf32> -> vector<32x128xf32>
    %41 = arith.addf %15, %40 : vector<32x128xf32>
    %42 = vector.extract_strided_slice %12 {offsets = [0, 64], sizes = [32, 64], strides = [1, 1]} : vector<32x384xf32> to vector<32x64xf32>
    %cst_20 = arith.constant 1.250000e-01 : f32
    %43 = vector.broadcast %cst_20 : f32 to vector<32x64xf32>
    %44 = arith.mulf %42, %43 : vector<32x64xf32>
    %45 = arith.truncf %44 : vector<32x64xf32> to vector<32x64xbf16>
    %46 = vector.extract_strided_slice %12 {offsets = [0, 192], sizes = [32, 64], strides = [1, 1]} : vector<32x384xf32> to vector<32x64xf32>
    %47 = arith.truncf %46 : vector<32x64xf32> to vector<32x64xbf16>
    %48 = vector.extract_strided_slice %12 {offsets = [0, 320], sizes = [32, 64], strides = [1, 1]} : vector<32x384xf32> to vector<32x64xf32>
    %49 = arith.truncf %48 : vector<32x64xf32> to vector<32x64xbf16>
    %cst_21 = arith.constant dense<0.000000e+00> : vector<32x32xf32>
    %50 = tpu.matmul %45, %47, %cst_21 {dimension_numbers = #tpu.dot_dimension_numbers<[1], [1], [0], [0], [0, 0, 1, 0], [], []>} : vector<32x64xbf16>, vector<32x64xbf16>, vector<32x32xf32> -> vector<32x32xf32>
    %51 = arith.addf %50, %5 : vector<32x32xf32>
    %cst_22 = arith.constant dense<0xFF800000> : vector<32xf32>
    %52 = vector.multi_reduction <maximumf>, %51, %cst_22 [1] : vector<32x32xf32> to vector<32xf32>
    %53 = vector.shape_cast %52 : vector<32xf32> to vector<32x1xf32>
    %54 = vector.broadcast %53 : vector<32x1xf32> to vector<32x32xf32>
    %55 = arith.subf %51, %54 : vector<32x32xf32>
    %56 = math.exp %55 : vector<32x32xf32>
    %cst_23 = arith.constant dense<0.000000e+00> : vector<32xf32>
    %57 = vector.multi_reduction <add>, %56, %cst_23 [1] : vector<32x32xf32> to vector<32xf32>
    %58 = vector.shape_cast %57 : vector<32xf32> to vector<32x1xf32>
    %59 = tpu.reciprocal %58 {approx = true} : vector<32x1xf32> -> vector<32x1xf32>
    %60 = vector.broadcast %59 : vector<32x1xf32> to vector<32x32xf32>
    %61 = arith.mulf %56, %60 : vector<32x32xf32>
    %62 = arith.truncf %61 : vector<32x32xf32> to vector<32x32xbf16>
    %cst_24 = arith.constant dense<0.000000e+00> : vector<32x64xf32>
    %63 = tpu.matmul %62, %49, %cst_24 {dimension_numbers = #tpu.dot_dimension_numbers<[1], [0], [0], [1], [0, 0, 1, 1], [], []>} : vector<32x32xbf16>, vector<32x64xbf16>, vector<32x64xf32> -> vector<32x64xf32>
    %64 = arith.truncf %63 : vector<32x64xf32> to vector<32x64xbf16>
    %65 = vector.extract_strided_slice %14 {offsets = [64, 0], sizes = [64, 128], strides = [1, 1]} : vector<128x128xbf16> to vector<64x128xbf16>
    %cst_25 = arith.constant dense<0.000000e+00> : vector<32x128xf32>
    %66 = tpu.matmul %64, %65, %cst_25 {dimension_numbers = #tpu.dot_dimension_numbers<[1], [0], [0], [1], [0, 0, 1, 1], [], []>} : vector<32x64xbf16>, vector<64x128xbf16>, vector<32x128xf32> -> vector<32x128xf32>
    %67 = arith.addf %41, %66 : vector<32x128xf32>
    %c0_26 = arith.constant 0 : index
    %c0_27 = arith.constant 0 : index
    %c0_28 = arith.constant 0 : index
    %68 = vector.load %arg8[%c0_26, %c0_27, %c0_28] : memref<1x1x128xf32, #tpu.memory_space<vmem>>, vector<1x1x128xf32>
    %69 = vector.shape_cast %68 : vector<1x1x128xf32> to vector<1x128xf32>
    %70 = vector.broadcast %69 : vector<1x128xf32> to vector<32x128xf32>
    %71 = arith.addf %67, %70 : vector<32x128xf32>
    %72 = arith.addf %71, %3 : vector<32x128xf32>
    %c0_29 = arith.constant 0 : index
    %c0_30 = arith.constant 0 : index
    %c0_31 = arith.constant 0 : index
    %73 = vector.load %arg9[%c0_29, %c0_30, %c0_31] : memref<1x1x128xf32, #tpu.memory_space<vmem>>, vector<1x1x128xf32>
    %74 = vector.shape_cast %73 : vector<1x1x128xf32> to vector<1x128xf32>
    %c0_32 = arith.constant 0 : index
    %c0_33 = arith.constant 0 : index
    %c0_34 = arith.constant 0 : index
    %75 = vector.load %arg10[%c0_32, %c0_33, %c0_34] : memref<1x1x128xf32, #tpu.memory_space<vmem>>, vector<1x1x128xf32>
    %76 = vector.shape_cast %75 : vector<1x1x128xf32> to vector<1x128xf32>
    %cst_35 = arith.constant dense<0.000000e+00> : vector<32xf32>
    %77 = vector.multi_reduction <add>, %72, %cst_35 [1] : vector<32x128xf32> to vector<32xf32>
    %78 = vector.shape_cast %77 : vector<32xf32> to vector<32x1xf32>
    %cst_36 = arith.constant 1.280000e+02 : f32
    %79 = vector.broadcast %cst_36 : f32 to vector<32x1xf32>
    %80 = arith.divf %78, %79 : vector<32x1xf32>
    %81 = vector.broadcast %80 : vector<32x1xf32> to vector<32x128xf32>
    %82 = arith.subf %72, %81 : vector<32x128xf32>
    %83 = arith.mulf %82, %82 : vector<32x128xf32>
    %cst_37 = arith.constant dense<0.000000e+00> : vector<32xf32>
    %84 = vector.multi_reduction <add>, %83, %cst_37 [1] : vector<32x128xf32> to vector<32xf32>
    %85 = vector.shape_cast %84 : vector<32xf32> to vector<32x1xf32>
    %cst_38 = arith.constant 1.280000e+02 : f32
    %86 = vector.broadcast %cst_38 : f32 to vector<32x1xf32>
    %87 = arith.divf %85, %86 : vector<32x1xf32>
    %cst_39 = arith.constant 9.99999996E-13 : f32
    %88 = vector.broadcast %cst_39 : f32 to vector<32x1xf32>
    %89 = arith.addf %87, %88 : vector<32x1xf32>
    %90 = math.rsqrt %89 : vector<32x1xf32>
    %91 = vector.broadcast %90 : vector<32x1xf32> to vector<32x128xf32>
    %92 = arith.mulf %82, %91 : vector<32x128xf32>
    %93 = vector.broadcast %74 : vector<1x128xf32> to vector<32x128xf32>
    %94 = arith.mulf %92, %93 : vector<32x128xf32>
    %95 = vector.broadcast %76 : vector<1x128xf32> to vector<32x128xf32>
    %96 = arith.addf %94, %95 : vector<32x128xf32>
    %97 = arith.truncf %96 : vector<32x128xf32> to vector<32x128xbf16>
    %c0_40 = arith.constant 0 : index
    %c0_41 = arith.constant 0 : index
    %c0_42 = arith.constant 0 : index
    %98 = vector.load %arg11[%c0_40, %c0_41, %c0_42] : memref<1x128x256xbf16, #tpu.memory_space<vmem>>, vector<1x128x256xbf16>
    %99 = vector.shape_cast %98 : vector<1x128x256xbf16> to vector<128x256xbf16>
    %cst_43 = arith.constant dense<0.000000e+00> : vector<32x256xf32>
    %100 = tpu.matmul %97, %99, %cst_43 {dimension_numbers = #tpu.dot_dimension_numbers<[1], [0], [0], [1], [0, 0, 1, 1], [], []>} : vector<32x128xbf16>, vector<128x256xbf16>, vector<32x256xf32> -> vector<32x256xf32>
    %c0_44 = arith.constant 0 : index
    %c0_45 = arith.constant 0 : index
    %c0_46 = arith.constant 0 : index
    %101 = vector.load %arg12[%c0_44, %c0_45, %c0_46] : memref<1x1x256xf32, #tpu.memory_space<vmem>>, vector<1x1x256xf32>
    %102 = vector.shape_cast %101 : vector<1x1x256xf32> to vector<1x256xf32>
    %103 = vector.broadcast %102 : vector<1x256xf32> to vector<32x256xf32>
    %104 = arith.addf %100, %103 : vector<32x256xf32>
    %cst_47 = arith.constant 5.000000e-01 : f32
    %105 = vector.broadcast %cst_47 : f32 to vector<32x256xf32>
    %106 = arith.mulf %105, %104 : vector<32x256xf32>
    %cst_48 = arith.constant 0.707106769 : f32
    %107 = vector.broadcast %cst_48 : f32 to vector<32x256xf32>
    %108 = arith.mulf %104, %107 : vector<32x256xf32>
    %109 = math.erf %108 : vector<32x256xf32>
    %cst_49 = arith.constant 1.000000e+00 : f32
    %110 = vector.broadcast %cst_49 : f32 to vector<32x256xf32>
    %111 = arith.addf %110, %109 : vector<32x256xf32>
    %112 = arith.mulf %106, %111 : vector<32x256xf32>
    %113 = arith.truncf %112 : vector<32x256xf32> to vector<32x256xbf16>
    %c0_50 = arith.constant 0 : index
    %c0_51 = arith.constant 0 : index
    %c0_52 = arith.constant 0 : index
    %114 = vector.load %arg13[%c0_50, %c0_51, %c0_52] : memref<1x256x128xbf16, #tpu.memory_space<vmem>>, vector<1x256x128xbf16>
    %115 = vector.shape_cast %114 : vector<1x256x128xbf16> to vector<256x128xbf16>
    %cst_53 = arith.constant dense<0.000000e+00> : vector<32x128xf32>
    %116 = tpu.matmul %113, %115, %cst_53 {dimension_numbers = #tpu.dot_dimension_numbers<[1], [0], [0], [1], [0, 0, 1, 1], [], []>} : vector<32x256xbf16>, vector<256x128xbf16>, vector<32x128xf32> -> vector<32x128xf32>
    %c0_54 = arith.constant 0 : index
    %c0_55 = arith.constant 0 : index
    %c0_56 = arith.constant 0 : index
    %117 = vector.load %arg14[%c0_54, %c0_55, %c0_56] : memref<1x1x128xf32, #tpu.memory_space<vmem>>, vector<1x1x128xf32>
    %118 = vector.shape_cast %117 : vector<1x1x128xf32> to vector<1x128xf32>
    %119 = vector.broadcast %118 : vector<1x128xf32> to vector<32x128xf32>
    %120 = arith.addf %116, %119 : vector<32x128xf32>
    %121 = arith.addf %120, %96 : vector<32x128xf32>
    %c0_57 = arith.constant 0 : index
    %c0_58 = arith.constant 0 : index
    %c0_59 = arith.constant 0 : index
    %122 = vector.load %arg15[%c0_57, %c0_58, %c0_59] : memref<1x1x128xf32, #tpu.memory_space<vmem>>, vector<1x1x128xf32>
    %123 = vector.shape_cast %122 : vector<1x1x128xf32> to vector<1x128xf32>
    %c0_60 = arith.constant 0 : index
    %c0_61 = arith.constant 0 : index
    %c0_62 = arith.constant 0 : index
    %124 = vector.load %arg16[%c0_60, %c0_61, %c0_62] : memref<1x1x128xf32, #tpu.memory_space<vmem>>, vector<1x1x128xf32>
    %125 = vector.shape_cast %124 : vector<1x1x128xf32> to vector<1x128xf32>
    %cst_63 = arith.constant dense<0.000000e+00> : vector<32xf32>
    %126 = vector.multi_reduction <add>, %121, %cst_63 [1] : vector<32x128xf32> to vector<32xf32>
    %127 = vector.shape_cast %126 : vector<32xf32> to vector<32x1xf32>
    %cst_64 = arith.constant 1.280000e+02 : f32
    %128 = vector.broadcast %cst_64 : f32 to vector<32x1xf32>
    %129 = arith.divf %127, %128 : vector<32x1xf32>
    %130 = vector.broadcast %129 : vector<32x1xf32> to vector<32x128xf32>
    %131 = arith.subf %121, %130 : vector<32x128xf32>
    %132 = arith.mulf %131, %131 : vector<32x128xf32>
    %cst_65 = arith.constant dense<0.000000e+00> : vector<32xf32>
    %133 = vector.multi_reduction <add>, %132, %cst_65 [1] : vector<32x128xf32> to vector<32xf32>
    %134 = vector.shape_cast %133 : vector<32xf32> to vector<32x1xf32>
    %cst_66 = arith.constant 1.280000e+02 : f32
    %135 = vector.broadcast %cst_66 : f32 to vector<32x1xf32>
    %136 = arith.divf %134, %135 : vector<32x1xf32>
    %cst_67 = arith.constant 9.99999996E-13 : f32
    %137 = vector.broadcast %cst_67 : f32 to vector<32x1xf32>
    %138 = arith.addf %136, %137 : vector<32x1xf32>
    %139 = math.rsqrt %138 : vector<32x1xf32>
    %140 = vector.broadcast %139 : vector<32x1xf32> to vector<32x128xf32>
    %141 = arith.mulf %131, %140 : vector<32x128xf32>
    %142 = vector.broadcast %123 : vector<1x128xf32> to vector<32x128xf32>
    %143 = arith.mulf %141, %142 : vector<32x128xf32>
    %144 = vector.broadcast %125 : vector<1x128xf32> to vector<32x128xf32>
    %145 = arith.addf %143, %144 : vector<32x128xf32>
    %c0_68 = arith.constant 0 : index
    %c0_69 = arith.constant 0 : index
    %146 = vector.load %arg22[%c0_68, %c0_69] : memref<32x128xf32, #tpu.memory_space<vmem>>, vector<32x128xf32>
    tpu.vector_store %arg22[%c0_68, %c0_69], %145 {strides = array<i32>} : memref<32x128xf32, #tpu.memory_space<vmem>>, vector<32x128xf32>,
    %c1_i32 = arith.constant 1 : i32
    %147 = arith.cmpi eq, %arg0, %c1_i32 : i32
    %148 = arith.extui %147 : i1 to i32
    %c0_i32_70 = arith.constant 0 : i32
    %149 = arith.cmpi ne, %148, %c0_i32_70 : i32
    scf.if %149 {
      %150 = vector.shape_cast %145 : vector<32x128xf32> to vector<2x16x128xf32>
      %151 = vector.extract_strided_slice %150 {offsets = [0, 0, 0], sizes = [2, 1, 128], strides = [1, 1, 1]} : vector<2x16x128xf32> to vector<2x1x128xf32>
      %152 = vector.shape_cast %151 : vector<2x1x128xf32> to vector<2x128xf32>
      %153 = arith.truncf %152 : vector<2x128xf32> to vector<2x128xbf16>
      %c0_71 = arith.constant 0 : index
      %c0_72 = arith.constant 0 : index
      %154 = vector.load %arg17[%c0_71, %c0_72] : memref<128x128xbf16, #tpu.memory_space<vmem>>, vector<128x128xbf16>
      %cst_73 = arith.constant dense<0.000000e+00> : vector<2x128xf32>
      %155 = tpu.matmul %153, %154, %cst_73 {dimension_numbers = #tpu.dot_dimension_numbers<[1], [0], [0], [1], [0, 0, 1, 1], [], []>} : vector<2x128xbf16>, vector<128x128xbf16>, vector<2x128xf32> -> vector<2x128xf32>
      %c0_74 = arith.constant 0 : index
      %c0_75 = arith.constant 0 : index
      %156 = vector.load %arg18[%c0_74, %c0_75] : memref<1x128xf32, #tpu.memory_space<vmem>>, vector<1x128xf32>
      %157 = vector.broadcast %156 : vector<1x128xf32> to vector<2x128xf32>
      %158 = arith.addf %155, %157 : vector<2x128xf32>
      %159 = math.tanh %158 : vector<2x128xf32>
      %160 = arith.truncf %159 : vector<2x128xf32> to vector<2x128xbf16>
      %c0_76 = arith.constant 0 : index
      %c0_77 = arith.constant 0 : index
      %161 = vector.load %arg19[%c0_76, %c0_77] : memref<128x128xbf16, #tpu.memory_space<vmem>>, vector<128x128xbf16>
      %cst_78 = arith.constant dense<0.000000e+00> : vector<2x128xf32>
      %162 = tpu.matmul %160, %161, %cst_78 {dimension_numbers = #tpu.dot_dimension_numbers<[1], [0], [0], [1], [0, 0, 1, 1], [], []>} : vector<2x128xbf16>, vector<128x128xbf16>, vector<2x128xf32> -> vector<2x128xf32>
      %c0_79 = arith.constant 0 : index
      %c0_80 = arith.constant 0 : index
      %163 = vector.load %arg20[%c0_79, %c0_80] : memref<1x128xf32, #tpu.memory_space<vmem>>, vector<1x128xf32>
      %164 = vector.broadcast %163 : vector<1x128xf32> to vector<2x128xf32>
      %165 = arith.addf %162, %164 : vector<2x128xf32>
      %c0_81 = arith.constant 0 : index
      %c0_82 = arith.constant 0 : index
      %166 = vector.load %arg21[%c0_81, %c0_82] : memref<2x128xf32, #tpu.memory_space<vmem>>, vector<2x128xf32>
      tpu.vector_store %arg21[%c0_81, %c0_82], %165 {strides = array<i32>} : memref<2x128xf32, #tpu.memory_space<vmem>>, vector<2x128xf32>,
    } else {
    }
    return
  }
  func.func @transform_0(%arg0: i32) -> (i32, i32) {
    %c0_i32 = arith.constant 0 : i32
    %c0_i32_0 = arith.constant 0 : i32
    %c0_i32_1 = arith.constant 0 : i32
    return %c0_i32, %c0_i32_0 : i32, i32
  }
  func.func @transform_1(%arg0: i32) -> (i32, i32) {
    %c0_i32 = arith.constant 0 : i32
    %c0_i32_0 = arith.constant 0 : i32
    %c0_i32_1 = arith.constant 0 : i32
    return %c0_i32, %c0_i32_0 : i32, i32
  }
  func.func @transform_2(%arg0: i32) -> (i32, i32) {
    %c0_i32 = arith.constant 0 : i32
    %c0_i32_0 = arith.constant 0 : i32
    %c0_i32_1 = arith.constant 0 : i32
    return %c0_i32, %c0_i32_0 : i32, i32
  }
  func.func @transform_3(%arg0: i32) -> (i32, i32) {
    %c0_i32 = arith.constant 0 : i32
    %c0_i32_0 = arith.constant 0 : i32
    %c0_i32_1 = arith.constant 0 : i32
    return %c0_i32, %c0_i32_0 : i32, i32
  }
  func.func @transform_4(%arg0: i32) -> (i32, i32, i32) {
    %c0_i32 = arith.constant 0 : i32
    %c0_i32_0 = arith.constant 0 : i32
    %c0_i32_1 = arith.constant 0 : i32
    return %arg0, %c0_i32, %c0_i32_0 : i32, i32, i32
  }
  func.func @transform_5(%arg0: i32) -> (i32, i32, i32) {
    %c0_i32 = arith.constant 0 : i32
    %c0_i32_0 = arith.constant 0 : i32
    %c0_i32_1 = arith.constant 0 : i32
    return %arg0, %c0_i32, %c0_i32_0 : i32, i32, i32
  }
  func.func @transform_6(%arg0: i32) -> (i32, i32, i32) {
    %c0_i32 = arith.constant 0 : i32
    %c0_i32_0 = arith.constant 0 : i32
    %c0_i32_1 = arith.constant 0 : i32
    return %arg0, %c0_i32, %c0_i32_0 : i32, i32, i32
  }
  func.func @transform_7(%arg0: i32) -> (i32, i32, i32) {
    %c0_i32 = arith.constant 0 : i32
    %c0_i32_0 = arith.constant 0 : i32
    %c0_i32_1 = arith.constant 0 : i32
    return %arg0, %c0_i32, %c0_i32_0 : i32, i32, i32
  }
  func.func @transform_8(%arg0: i32) -> (i32, i32, i32) {
    %c0_i32 = arith.constant 0 : i32
    %c0_i32_0 = arith.constant 0 : i32
    %c0_i32_1 = arith.constant 0 : i32
    return %arg0, %c0_i32, %c0_i32_0 : i32, i32, i32
  }
  func.func @transform_9(%arg0: i32) -> (i32, i32, i32) {
    %c0_i32 = arith.constant 0 : i32
    %c0_i32_0 = arith.constant 0 : i32
    %c0_i32_1 = arith.constant 0 : i32
    return %arg0, %c0_i32, %c0_i32_0 : i32, i32, i32
  }
  func.func @transform_10(%arg0: i32) -> (i32, i32, i32) {
    %c0_i32 = arith.constant 0 : i32
    %c0_i32_0 = arith.constant 0 : i32
    %c0_i32_1 = arith.constant 0 : i32
    return %arg0, %c0_i32, %c0_i32_0 : i32, i32, i32
  }
  func.func @transform_11(%arg0: i32) -> (i32, i32, i32) {
    %c0_i32 = arith.constant 0 : i32
    %c0_i32_0 = arith.constant 0 : i32
    %c0_i32_1 = arith.constant 0 : i32
    return %arg0, %c0_i32, %c0_i32_0 : i32, i32, i32
  }
  func.func @transform_12(%arg0: i32) -> (i32, i32, i32) {
    %c0_i32 = arith.constant 0 : i32
    %c0_i32_0 = arith.constant 0 : i32
    %c0_i32_1 = arith.constant 0 : i32
    return %arg0, %c0_i32, %c0_i32_0 : i32, i32, i32
  }
  func.func @transform_13(%arg0: i32) -> (i32, i32, i32) {
    %c0_i32 = arith.constant 0 : i32
    %c0_i32_0 = arith.constant 0 : i32
    %c0_i32_1 = arith.constant 0 : i32
    return %arg0, %c0_i32, %c0_i32_0 : i32, i32, i32
  }
  func.func @transform_14(%arg0: i32) -> (i32, i32, i32) {
    %c0_i32 = arith.constant 0 : i32
    %c0_i32_0 = arith.constant 0 : i32
    %c0_i32_1 = arith.constant 0 : i32
    return %arg0, %c0_i32, %c0_i32_0 : i32, i32, i32
  }
  func.func @transform_15(%arg0: i32) -> (i32, i32, i32) {
    %c0_i32 = arith.constant 0 : i32
    %c0_i32_0 = arith.constant 0 : i32
    %c0_i32_1 = arith.constant 0 : i32
    return %arg0, %c0_i32, %c0_i32_0 : i32, i32, i32
  }
  func.func @transform_16(%arg0: i32) -> (i32, i32) {
    %c0_i32 = arith.constant 0 : i32
    %c0_i32_0 = arith.constant 0 : i32
    %c0_i32_1 = arith.constant 0 : i32
    return %c0_i32, %c0_i32_0 : i32, i32
  }
  func.func @transform_17(%arg0: i32) -> (i32, i32) {
    %c0_i32 = arith.constant 0 : i32
    %c0_i32_0 = arith.constant 0 : i32
    %c0_i32_1 = arith.constant 0 : i32
    return %c0_i32, %c0_i32_0 : i32, i32
  }
  func.func @transform_18(%arg0: i32) -> (i32, i32) {
    %c0_i32 = arith.constant 0 : i32
    %c0_i32_0 = arith.constant 0 : i32
    %c0_i32_1 = arith.constant 0 : i32
    return %c0_i32, %c0_i32_0 : i32, i32
  }
  func.func @transform_19(%arg0: i32) -> (i32, i32) {
    %c0_i32 = arith.constant 0 : i32
    %c0_i32_0 = arith.constant 0 : i32
    %c0_i32_1 = arith.constant 0 : i32
    return %c0_i32, %c0_i32_0 : i32, i32
  }
  func.func @transform_20(%arg0: i32) -> (i32, i32) {
    %c0_i32 = arith.constant 0 : i32
    %c0_i32_0 = arith.constant 0 : i32
    %c0_i32_1 = arith.constant 0 : i32
    return %c0_i32, %c0_i32_0 : i32, i32
  }
}

</mosaic_0001>

<llo_original>
// kernel: bert_fine_tune_forward.1
$region0: #{bert_fine_tune_forward.1}
  #allocation0 [shape = 'u32[]', space=smem, size = 0x4, offset = 0x4, fixed_abs, tag = 'smem constant byte address 0x4 - core index']
  #allocation1 [shape = 'u32[144,128]{1,0:T(1,128)}', space=vmem, size = 0x12000, scoped, tag = 'internal scratch']
  #allocation2 [shape = 'f32[32,128]{1,0:T(8,128)}', space=vmem, size = 0x4000, scoped, tag = 'scratch operand']
  %s0 = inlined_call_operand.vmem [shape: f32[32,128], index: 0, kind: input, shape index: {}]
  %s1 = inlined_call_operand.vmem [shape: f32[32,32], index: 1, kind: input, shape index: {}]
  %s2 = inlined_call_operand.vmem [shape: f32[1,128], index: 2, kind: input, shape index: {}]
  %s3 = inlined_call_operand.hbm [shape: f32[1,128], index: 3, kind: input, shape index: {}]
  %s4 = inlined_call_operand.vmem [shape: bf16[2,128,384], index: 4, kind: input, shape index: {}]
  %s5 = inlined_call_operand.hbm [shape: f32[2,1,384], index: 5, kind: input, shape index: {}]
  %s6 = inlined_call_operand.vmem [shape: bf16[2,128,128], index: 6, kind: input, shape index: {}]
  %s7 = inlined_call_operand.vmem [shape: f32[2,1,128], index: 7, kind: input, shape index: {}]
  %s8 = inlined_call_operand.hbm [shape: f32[2,1,128], index: 8, kind: input, shape index: {}]
  %s9 = inlined_call_operand.hbm [shape: f32[2,1,128], index: 9, kind: input, shape index: {}]
  %s10 = inlined_call_operand.hbm [shape: bf16[2,128,256], index: 10, kind: input, shape index: {}]
  %s11 = inlined_call_operand.hbm [shape: f32[2,1,256], index: 11, kind: input, shape index: {}]
  %s12 = inlined_call_operand.hbm [shape: bf16[2,256,128], index: 12, kind: input, shape index: {}]
  %s13 = inlined_call_operand.hbm [shape: f32[2,1,128], index: 13, kind: input, shape index: {}]
  %s14 = inlined_call_operand.hbm [shape: f32[2,1,128], index: 14, kind: input, shape index: {}]
  %s15 = inlined_call_operand.hbm [shape: f32[2,1,128], index: 15, kind: input, shape index: {}]
  %s16 = inlined_call_operand.hbm [shape: bf16[128,128], index: 16, kind: input, shape index: {}]
  %s17 = inlined_call_operand.hbm [shape: f32[1,128], index: 17, kind: input, shape index: {}]
  %s18 = inlined_call_operand.vmem [shape: bf16[128,128], index: 18, kind: input, shape index: {}]
  %s19 = inlined_call_operand.vmem [shape: f32[1,128], index: 19, kind: input, shape index: {}]
  %s20 = inlined_call_operand.hbm [shape: f32[2,128], index: 20, kind: output, shape index: {}]
  %s21 = sld [smem:[#allocation0]]
  $region169: #{bert_fine_tune_forward.1} parent=0
    _
  %s23 = ssub.s32 1, %s21
  %s24 = scalar_select 0, %s23, %s21
  $region1: #{bert_fine_tune_forward.1} parent=0
    #allocation3 [shape = 'u8[512]{0}', space=vmem, size = 0x400, scoped, tag = 'input window, operand 3, single buffered']
    #allocation4 [shape = 's32[2]{0}', space=sflag, size = 0x8, scoped, tag = 'scoped memory for bert_fine_tune_forward.1']
    #allocation5 [shape = 's32[2]{0}', space=sflag, size = 0x8, scoped, tag = 'scoped memory for bert_fine_tune_forward.1']
    #allocation6 [shape = 'u8[3072]{0}', space=vmem, size = 0xc00, scoped, tag = 'input window, operand 5']
    #allocation7 [shape = 's32[2]{0}', space=sflag, size = 0x8, scoped, tag = 'scoped memory for bert_fine_tune_forward.1']
    #allocation8 [shape = 'u8[1024]{0}', space=vmem, size = 0x400, scoped, tag = 'input window, operand 8']
    #allocation9 [shape = 'u8[1024]{0}', space=vmem, size = 0x400, scoped, tag = 'input window, operand 9']
    #allocation10 [shape = 's32[2]{0}', space=sflag, size = 0x8, scoped, tag = 'scoped memory for bert_fine_tune_forward.1']
    #allocation11 [shape = 'u8[131072]{0}', space=vmem, size = 0x20000, scoped, tag = 'input window, operand 10']
    #allocation12 [shape = 'u8[2048]{0}', space=vmem, size = 0x800, scoped, tag = 'input window, operand 11']
    #allocation13 [shape = 's32[2]{0}', space=sflag, size = 0x8, scoped, tag = 'scoped memory for bert_fine_tune_forward.1']
    #allocation14 [shape = 'u8[131072]{0}', space=vmem, size = 0x20000, scoped, tag = 'input window, operand 12']
    #allocation15 [shape = 'u8[1024]{0}', space=vmem, size = 0x400, scoped, tag = 'input window, operand 13']
    #allocation16 [shape = 's32[2]{0}', space=sflag, size = 0x8, scoped, tag = 'scoped memory for bert_fine_tune_forward.1']
    #allocation17 [shape = 'u8[1024]{0}', space=vmem, size = 0x400, scoped, tag = 'input window, operand 14']
    #allocation18 [shape = 'u8[1024]{0}', space=vmem, size = 0x400, scoped, tag = 'input window, operand 15']
    #allocation19 [shape = 's32[2]{0}', space=sflag, size = 0x8, scoped, tag = 'scoped memory for bert_fine_tune_forward.1']
    #allocation20 [shape = 'u8[32768]{0}', space=vmem, size = 0x8000, scoped, tag = 'input window, operand 16, single buffered']
    #allocation21 [shape = 'u8[512]{0}', space=vmem, size = 0x400, scoped, tag = 'input window, operand 17, single buffered']
    #allocation22 [shape = 's32[1]{0}', space=sflag, size = 0x4, scoped, tag = 'scoped memory for bert_fine_tune_forward.1']
    #allocation23 [shape = 'u8[1024]{0}', space=vmem, size = 0x400, scoped, tag = 'output window, operand 0, single buffered']
    %25 = vsyncpa [#allocation4], 0
    %26 = vsyncpa [#allocation7], 0
    %s27 = scalar_lea.sflag [#allocation7], 1
    %28 = vsyncpa %s27, 0
    %29 = vsyncpa [#allocation10], 0
    %s30 = scalar_lea.sflag [#allocation10], 1
    %31 = vsyncpa %s30, 0
    %32 = vsyncpa [#allocation13], 0
    %s33 = scalar_lea.sflag [#allocation13], 1
    %34 = vsyncpa %s33, 0
    %35 = vsyncpa [#allocation16], 0
    %s36 = scalar_lea.sflag [#allocation16], 1
    %37 = vsyncpa %s36, 0
    %38 = vsyncpa [#allocation19], 0
    %s39 = scalar_lea.sflag [#allocation19], 1
    %40 = vsyncpa %s39, 0
    %41 = vsyncpa [#allocation22], 0
    %42 = vsyncpa [#allocation5], 0
    loop: start=0, step=1, limit=4
    $region2: #{bert_fine_tune_forward.1} parent=1 // loop_pre_header
      _
    $region3: #{bert_fine_tune_forward.1} parent=1 // loop_header
      %s44 = sphi 0, %s48
      %p45 = scmp.ge.s32.totalorder %s44, 4
      %s52 = sphi 0, %s52
      %s54 = sphi 0, %s52
      %s55 = sphi 0, %s54
      %s69 = sphi 0, %s55
      %s73 = sphi 0, %s73
      %s75 = sphi 0, %s73
      %s76 = sphi 0, %s75
      %s90 = sphi 0, %s76
      %s94 = sphi 0, %s94
      %s96 = sphi 0, %s94
      %s97 = sphi 0, %s96
      %s111 = sphi 0, %s97
      %s115 = sphi 0, %s115
      %s117 = sphi 0, %s115
      %s118 = sphi 0, %s117
      %s132 = sphi 0, %s118
      %s138 = sphi 0, %s140
      %s141 = sphi 0, %s138
      %s142 = sphi 0, %s141
      %s158 = sphi 0, %s142
      %s164 = sphi 0, %s166
      %s167 = sphi 0, %s164
      %s168 = sphi 0, %s167
      %s184 = sphi 0, %s168
      %s190 = sphi 0, %s192
      %s193 = sphi 0, %s190
      %s194 = sphi 0, %s193
      %s210 = sphi 0, %s194
      %s216 = sphi 0, %s218
      %s219 = sphi 0, %s216
      %s220 = sphi 0, %s219
      %s236 = sphi 0, %s220
      %s242 = sphi 0, %s244
      %s245 = sphi 0, %s242
      %s246 = sphi 0, %s245
      %s262 = sphi 0, %s246
      %s268 = sphi 0, %s270
      %s271 = sphi 0, %s268
      %s272 = sphi 0, %s271
      %s288 = sphi 0, %s272
      %s294 = sphi 0, %s296
      %s297 = sphi 0, %s294
      %s298 = sphi 0, %s297
      %s314 = sphi 0, %s298
      %s320 = sphi 0, %s322
      %s323 = sphi 0, %s320
      %s324 = sphi 0, %s323
      %s340 = sphi 0, %s324
      %s346 = sphi 0, %s348
      %s349 = sphi 0, %s346
      %s350 = sphi 0, %s349
      %s366 = sphi 0, %s350
      %s372 = sphi 0, %s374
      %s375 = sphi 0, %s372
      %s376 = sphi 0, %s375
      %s392 = sphi 0, %s376
      %s398 = sphi 0, %s400
      %s401 = sphi 0, %s398
      %s402 = sphi 0, %s401
      %s418 = sphi 0, %s402
      %s424 = sphi 0, %s426
      %s427 = sphi 0, %s424
      %s428 = sphi 0, %s427
      %s444 = sphi 0, %s428
      %s448 = sphi 0, %s448
      %s450 = sphi 0, %s448
      %s451 = sphi 0, %s450
      %s465 = sphi 0, %s451
      %s469 = sphi 0, %s469
      %s471 = sphi 0, %s469
      %s472 = sphi 0, %s471
      %s486 = sphi 0, %s472
      %s490 = sphi 0, %s490
      %s492 = sphi 0, %s490
      %s493 = sphi 0, %s492
      %s507 = sphi 0, %s493
      %s511 = sphi 0, %s511
      %s513 = sphi 0, %s511
      %s514 = sphi 0, %s513
      %s528 = sphi 0, %s514
      %s532 = sphi 0, %s532
      %s534 = sphi 0, %s532
      %s535 = sphi 0, %s534
      %s549 = sphi 0, %s535
    $region4: #{bert_fine_tune_forward.1} parent=1 // loop_header_branch
      %47 = sbr.rel (%p45) target = $region8
    $region5: #{bert_fine_tune_forward.1} parent=1 // loop_body
      %s49 = ssub.s32 %s44, 1
      %s50 = ssub.s32 %s44, 2
      %s51 = sadd.s32 %s44, 1
      %s53 = sadd.s32 %s52, 1
      %p56 = scmp.eq.s32.totalorder %s44, 1
      %p57 = scmp.ne.s32.totalorder %s52, %s54
      %p58 = scmp.eq.s32.totalorder %s44, 0
      %p59 = por %p57, %p58
      %p60 = scmp.ne.s32.totalorder %s52, %s54
      %p61 = scmp.eq.s32.totalorder %s49, 1
      %p62 = por %p60, %p61
      %p63 = scmp.ne.s32.totalorder %s54, %s55
      %p64 = scmp.eq.s32.totalorder %s49, 0
      %p65 = por %p63, %p64
      %p66 = scmp.ne.s32.totalorder %s54, %s55
      %p67 = scmp.eq.s32.totalorder %s50, 1
      %p68 = por %p66, %p67
      %p70 = scmp.ne.s32.totalorder %s55, %s69
      %p71 = scmp.eq.s32.totalorder %s50, 0
      %p72 = por %p70, %p71
      %s74 = sadd.s32 %s73, 1
      %p77 = scmp.eq.s32.totalorder %s44, 1
      %p78 = scmp.ne.s32.totalorder %s73, %s75
      %p79 = scmp.eq.s32.totalorder %s44, 0
      %p80 = por %p78, %p79
      %p81 = scmp.ne.s32.totalorder %s73, %s75
      %p82 = scmp.eq.s32.totalorder %s49, 1
      %p83 = por %p81, %p82
      %p84 = scmp.ne.s32.totalorder %s75, %s76
      %p85 = scmp.eq.s32.totalorder %s49, 0
      %p86 = por %p84, %p85
      %p87 = scmp.ne.s32.totalorder %s75, %s76
      %p88 = scmp.eq.s32.totalorder %s50, 1
      %p89 = por %p87, %p88
      %p91 = scmp.ne.s32.totalorder %s76, %s90
      %p92 = scmp.eq.s32.totalorder %s50, 0
      %p93 = por %p91, %p92
      %s95 = sadd.s32 %s94, 1
      %p98 = scmp.eq.s32.totalorder %s44, 1
      %p99 = scmp.ne.s32.totalorder %s94, %s96
      %p100 = scmp.eq.s32.totalorder %s44, 0
      %p101 = por %p99, %p100
      %p102 = scmp.ne.s32.totalorder %s94, %s96
      %p103 = scmp.eq.s32.totalorder %s49, 1
      %p104 = por %p102, %p103
      %p105 = scmp.ne.s32.totalorder %s96, %s97
      %p106 = scmp.eq.s32.totalorder %s49, 0
      %p107 = por %p105, %p106
      %p108 = scmp.ne.s32.totalorder %s96, %s97
      %p109 = scmp.eq.s32.totalorder %s50, 1
      %p110 = por %p108, %p109
      %p112 = scmp.ne.s32.totalorder %s97, %s111
      %p113 = scmp.eq.s32.totalorder %s50, 0
      %p114 = por %p112, %p113
      %s116 = sadd.s32 %s115, 1
      %p119 = scmp.eq.s32.totalorder %s44, 1
      %p120 = scmp.ne.s32.totalorder %s115, %s117
      %p121 = scmp.eq.s32.totalorder %s44, 0
      %p122 = por %p120, %p121
      %p123 = scmp.ne.s32.totalorder %s115, %s117
      %p124 = scmp.eq.s32.totalorder %s49, 1
      %p125 = por %p123, %p124
      %p126 = scmp.ne.s32.totalorder %s117, %s118
      %p127 = scmp.eq.s32.totalorder %s49, 0
      %p128 = por %p126, %p127
      %p129 = scmp.ne.s32.totalorder %s117, %s118
      %p130 = scmp.eq.s32.totalorder %s50, 1
      %p131 = por %p129, %p130
      %p133 = scmp.ne.s32.totalorder %s118, %s132
      %p134 = scmp.eq.s32.totalorder %s50, 0
      %p135 = por %p133, %p134
      %s136 = ssub.s32 %s44, %s51
      %p137 = scmp.eq.s32.totalorder %s136, 0
      %s139 = sadd.s32 %s138, 1
      %s140 = scalar_select %p137, %s138, %s139
      %p143 = pneg %p137
      %p144 = scmp.eq.s32.totalorder %s44, 1
      %p145 = por %p143, %p144
      %p146 = scmp.ne.s32.totalorder %s138, %s141
      %p147 = scmp.eq.s32.totalorder %s44, 0
      %p148 = por %p146, %p147
      %p149 = scmp.ne.s32.totalorder %s138, %s141
      %p150 = scmp.eq.s32.totalorder %s49, 1
      %p151 = por %p149, %p150
      %p152 = scmp.ne.s32.totalorder %s141, %s142
      %p153 = scmp.eq.s32.totalorder %s49, 0
      %p154 = por %p152, %p153
      %p155 = scmp.ne.s32.totalorder %s141, %s142
      %p156 = scmp.eq.s32.totalorder %s50, 1
      %p157 = por %p155, %p156
      %p159 = scmp.ne.s32.totalorder %s142, %s158
      %p160 = scmp.eq.s32.totalorder %s50, 0
      %p161 = por %p159, %p160
      %s162 = ssub.s32 %s44, %s51
      %p163 = scmp.eq.s32.totalorder %s162, 0
      %s165 = sadd.s32 %s164, 1
      %s166 = scalar_select %p163, %s164, %s165
      %p169 = pneg %p163
      %p170 = scmp.eq.s32.totalorder %s44, 1
      %p171 = por %p169, %p170
      %p172 = scmp.ne.s32.totalorder %s164, %s167
      %p173 = scmp.eq.s32.totalorder %s44, 0
      %p174 = por %p172, %p173
      %p175 = scmp.ne.s32.totalorder %s164, %s167
      %p176 = scmp.eq.s32.totalorder %s49, 1
      %p177 = por %p175, %p176
      %p178 = scmp.ne.s32.totalorder %s167, %s168
      %p179 = scmp.eq.s32.totalorder %s49, 0
      %p180 = por %p178, %p179
      %p181 = scmp.ne.s32.totalorder %s167, %s168
      %p182 = scmp.eq.s32.totalorder %s50, 1
      %p183 = por %p181, %p182
      %p185 = scmp.ne.s32.totalorder %s168, %s184
      %p186 = scmp.eq.s32.totalorder %s50, 0
      %p187 = por %p185, %p186
      %s188 = ssub.s32 %s44, %s51
      %p189 = scmp.eq.s32.totalorder %s188, 0
      %s191 = sadd.s32 %s190, 1
      %s192 = scalar_select %p189, %s190, %s191
      %p195 = pneg %p189
      %p196 = scmp.eq.s32.totalorder %s44, 1
      %p197 = por %p195, %p196
      %p198 = scmp.ne.s32.totalorder %s190, %s193
      %p199 = scmp.eq.s32.totalorder %s44, 0
      %p200 = por %p198, %p199
      %p201 = scmp.ne.s32.totalorder %s190, %s193
      %p202 = scmp.eq.s32.totalorder %s49, 1
      %p203 = por %p201, %p202
      %p204 = scmp.ne.s32.totalorder %s193, %s194
      %p205 = scmp.eq.s32.totalorder %s49, 0
      %p206 = por %p204, %p205
      %p207 = scmp.ne.s32.totalorder %s193, %s194
      %p208 = scmp.eq.s32.totalorder %s50, 1
      %p209 = por %p207, %p208
      %p211 = scmp.ne.s32.totalorder %s194, %s210
      %p212 = scmp.eq.s32.totalorder %s50, 0
      %p213 = por %p211, %p212
      %s214 = ssub.s32 %s44, %s51
      %p215 = scmp.eq.s32.totalorder %s214, 0
      %s217 = sadd.s32 %s216, 1
      %s218 = scalar_select %p215, %s216, %s217
      %p221 = pneg %p215
      %p222 = scmp.eq.s32.totalorder %s44, 1
      %p223 = por %p221, %p222
      %p224 = scmp.ne.s32.totalorder %s216, %s219
      %p225 = scmp.eq.s32.totalorder %s44, 0
      %p226 = por %p224, %p225
      %p227 = scmp.ne.s32.totalorder %s216, %s219
      %p228 = scmp.eq.s32.totalorder %s49, 1
      %p229 = por %p227, %p228
      %p230 = scmp.ne.s32.totalorder %s219, %s220
      %p231 = scmp.eq.s32.totalorder %s49, 0
      %p232 = por %p230, %p231
      %p233 = scmp.ne.s32.totalorder %s219, %s220
      %p234 = scmp.eq.s32.totalorder %s50, 1
      %p235 = por %p233, %p234
      %p237 = scmp.ne.s32.totalorder %s220, %s236
      %p238 = scmp.eq.s32.totalorder %s50, 0
      %p239 = por %p237, %p238
      %s240 = ssub.s32 %s44, %s51
      %p241 = scmp.eq.s32.totalorder %s240, 0
      %s243 = sadd.s32 %s242, 1
      %s244 = scalar_select %p241, %s242, %s243
      %p247 = pneg %p241
      %p248 = scmp.eq.s32.totalorder %s44, 1
      %p249 = por %p247, %p248
      %p250 = scmp.ne.s32.totalorder %s242, %s245
      %p251 = scmp.eq.s32.totalorder %s44, 0
      %p252 = por %p250, %p251
      %p253 = scmp.ne.s32.totalorder %s242, %s245
      %p254 = scmp.eq.s32.totalorder %s49, 1
      %p255 = por %p253, %p254
      %p256 = scmp.ne.s32.totalorder %s245, %s246
      %p257 = scmp.eq.s32.totalorder %s49, 0
      %p258 = por %p256, %p257
      %p259 = scmp.ne.s32.totalorder %s245, %s246
      %p260 = scmp.eq.s32.totalorder %s50, 1
      %p261 = por %p259, %p260
      %p263 = scmp.ne.s32.totalorder %s246, %s262
      %p264 = scmp.eq.s32.totalorder %s50, 0
      %p265 = por %p263, %p264
      %s266 = ssub.s32 %s44, %s51
      %p267 = scmp.eq.s32.totalorder %s266, 0
      %s269 = sadd.s32 %s268, 1
      %s270 = scalar_select %p267, %s268, %s269
      %p273 = pneg %p267
      %p274 = scmp.eq.s32.totalorder %s44, 1
      %p275 = por %p273, %p274
      %p276 = scmp.ne.s32.totalorder %s268, %s271
      %p277 = scmp.eq.s32.totalorder %s44, 0
      %p278 = por %p276, %p277
      %p279 = scmp.ne.s32.totalorder %s268, %s271
      %p280 = scmp.eq.s32.totalorder %s49, 1
      %p281 = por %p279, %p280
      %p282 = scmp.ne.s32.totalorder %s271, %s272
      %p283 = scmp.eq.s32.totalorder %s49, 0
      %p284 = por %p282, %p283
      %p285 = scmp.ne.s32.totalorder %s271, %s272
      %p286 = scmp.eq.s32.totalorder %s50, 1
      %p287 = por %p285, %p286
      %p289 = scmp.ne.s32.totalorder %s272, %s288
      %p290 = scmp.eq.s32.totalorder %s50, 0
      %p291 = por %p289, %p290
      %s292 = ssub.s32 %s44, %s51
      %p293 = scmp.eq.s32.totalorder %s292, 0
      %s295 = sadd.s32 %s294, 1
      %s296 = scalar_select %p293, %s294, %s295
      %p299 = pneg %p293
      %p300 = scmp.eq.s32.totalorder %s44, 1
      %p301 = por %p299, %p300
      %p302 = scmp.ne.s32.totalorder %s294, %s297
      %p303 = scmp.eq.s32.totalorder %s44, 0
      %p304 = por %p302, %p303
      %p305 = scmp.ne.s32.totalorder %s294, %s297
      %p306 = scmp.eq.s32.totalorder %s49, 1
      %p307 = por %p305, %p306
      %p308 = scmp.ne.s32.totalorder %s297, %s298
      %p309 = scmp.eq.s32.totalorder %s49, 0
      %p310 = por %p308, %p309
      %p311 = scmp.ne.s32.totalorder %s297, %s298
      %p312 = scmp.eq.s32.totalorder %s50, 1
      %p313 = por %p311, %p312
      %p315 = scmp.ne.s32.totalorder %s298, %s314
      %p316 = scmp.eq.s32.totalorder %s50, 0
      %p317 = por %p315, %p316
      %s318 = ssub.s32 %s44, %s51
      %p319 = scmp.eq.s32.totalorder %s318, 0
      %s321 = sadd.s32 %s320, 1
      %s322 = scalar_select %p319, %s320, %s321
      %p325 = pneg %p319
      %p326 = scmp.eq.s32.totalorder %s44, 1
      %p327 = por %p325, %p326
      %p328 = scmp.ne.s32.totalorder %s320, %s323
      %p329 = scmp.eq.s32.totalorder %s44, 0
      %p330 = por %p328, %p329
      %p331 = scmp.ne.s32.totalorder %s320, %s323
      %p332 = scmp.eq.s32.totalorder %s49, 1
      %p333 = por %p331, %p332
      %p334 = scmp.ne.s32.totalorder %s323, %s324
      %p335 = scmp.eq.s32.totalorder %s49, 0
      %p336 = por %p334, %p335
      %p337 = scmp.ne.s32.totalorder %s323, %s324
      %p338 = scmp.eq.s32.totalorder %s50, 1
      %p339 = por %p337, %p338
      %p341 = scmp.ne.s32.totalorder %s324, %s340
      %p342 = scmp.eq.s32.totalorder %s50, 0
      %p343 = por %p341, %p342
      %s344 = ssub.s32 %s44, %s51
      %p345 = scmp.eq.s32.totalorder %s344, 0
      %s347 = sadd.s32 %s346, 1
      %s348 = scalar_select %p345, %s346, %s347
      %p351 = pneg %p345
      %p352 = scmp.eq.s32.totalorder %s44, 1
      %p353 = por %p351, %p352
      %p354 = scmp.ne.s32.totalorder %s346, %s349
      %p355 = scmp.eq.s32.totalorder %s44, 0
      %p356 = por %p354, %p355
      %p357 = scmp.ne.s32.totalorder %s346, %s349
      %p358 = scmp.eq.s32.totalorder %s49, 1
      %p359 = por %p357, %p358
      %p360 = scmp.ne.s32.totalorder %s349, %s350
      %p361 = scmp.eq.s32.totalorder %s49, 0
      %p362 = por %p360, %p361
      %p363 = scmp.ne.s32.totalorder %s349, %s350
      %p364 = scmp.eq.s32.totalorder %s50, 1
      %p365 = por %p363, %p364
      %p367 = scmp.ne.s32.totalorder %s350, %s366
      %p368 = scmp.eq.s32.totalorder %s50, 0
      %p369 = por %p367, %p368
      %s370 = ssub.s32 %s44, %s51
      %p371 = scmp.eq.s32.totalorder %s370, 0
      %s373 = sadd.s32 %s372, 1
      %s374 = scalar_select %p371, %s372, %s373
      %p377 = pneg %p371
      %p378 = scmp.eq.s32.totalorder %s44, 1
      %p379 = por %p377, %p378
      %p380 = scmp.ne.s32.totalorder %s372, %s375
      %p381 = scmp.eq.s32.totalorder %s44, 0
      %p382 = por %p380, %p381
      %p383 = scmp.ne.s32.totalorder %s372, %s375
      %p384 = scmp.eq.s32.totalorder %s49, 1
      %p385 = por %p383, %p384
      %p386 = scmp.ne.s32.totalorder %s375, %s376
      %p387 = scmp.eq.s32.totalorder %s49, 0
      %p388 = por %p386, %p387
      %p389 = scmp.ne.s32.totalorder %s375, %s376
      %p390 = scmp.eq.s32.totalorder %s50, 1
      %p391 = por %p389, %p390
      %p393 = scmp.ne.s32.totalorder %s376, %s392
      %p394 = scmp.eq.s32.totalorder %s50, 0
      %p395 = por %p393, %p394
      %s396 = ssub.s32 %s44, %s51
      %p397 = scmp.eq.s32.totalorder %s396, 0
      %s399 = sadd.s32 %s398, 1
      %s400 = scalar_select %p397, %s398, %s399
      %p403 = pneg %p397
      %p404 = scmp.eq.s32.totalorder %s44, 1
      %p405 = por %p403, %p404
      %p406 = scmp.ne.s32.totalorder %s398, %s401
      %p407 = scmp.eq.s32.totalorder %s44, 0
      %p408 = por %p406, %p407
      %p409 = scmp.ne.s32.totalorder %s398, %s401
      %p410 = scmp.eq.s32.totalorder %s49, 1
      %p411 = por %p409, %p410
      %p412 = scmp.ne.s32.totalorder %s401, %s402
      %p413 = scmp.eq.s32.totalorder %s49, 0
      %p414 = por %p412, %p413
      %p415 = scmp.ne.s32.totalorder %s401, %s402
      %p416 = scmp.eq.s32.totalorder %s50, 1
      %p417 = por %p415, %p416
      %p419 = scmp.ne.s32.totalorder %s402, %s418
      %p420 = scmp.eq.s32.totalorder %s50, 0
      %p421 = por %p419, %p420
      %s422 = ssub.s32 %s44, %s51
      %p423 = scmp.eq.s32.totalorder %s422, 0
      %s425 = sadd.s32 %s424, 1
      %s426 = scalar_select %p423, %s424, %s425
      %p429 = pneg %p423
      %p430 = scmp.eq.s32.totalorder %s44, 1
      %p431 = por %p429, %p430
      %p432 = scmp.ne.s32.totalorder %s424, %s427
      %p433 = scmp.eq.s32.totalorder %s44, 0
      %p434 = por %p432, %p433
      %p435 = scmp.ne.s32.totalorder %s424, %s427
      %p436 = scmp.eq.s32.totalorder %s49, 1
      %p437 = por %p435, %p436
      %p438 = scmp.ne.s32.totalorder %s427, %s428
      %p439 = scmp.eq.s32.totalorder %s49, 0
      %p440 = por %p438, %p439
      %p441 = scmp.ne.s32.totalorder %s427, %s428
      %p442 = scmp.eq.s32.totalorder %s50, 1
      %p443 = por %p441, %p442
      %p445 = scmp.ne.s32.totalorder %s428, %s444
      %p446 = scmp.eq.s32.totalorder %s50, 0
      %p447 = por %p445, %p446
      %s449 = sadd.s32 %s448, 1
      %p452 = scmp.eq.s32.totalorder %s44, 1
      %p453 = scmp.ne.s32.totalorder %s448, %s450
      %p454 = scmp.eq.s32.totalorder %s44, 0
      %p455 = por %p453, %p454
      %p456 = scmp.ne.s32.totalorder %s448, %s450
      %p457 = scmp.eq.s32.totalorder %s49, 1
      %p458 = por %p456, %p457
      %p459 = scmp.ne.s32.totalorder %s450, %s451
      %p460 = scmp.eq.s32.totalorder %s49, 0
      %p461 = por %p459, %p460
      %p462 = scmp.ne.s32.totalorder %s450, %s451
      %p463 = scmp.eq.s32.totalorder %s50, 1
      %p464 = por %p462, %p463
      %p466 = scmp.ne.s32.totalorder %s451, %s465
      %p467 = scmp.eq.s32.totalorder %s50, 0
      %p468 = por %p466, %p467
      %s470 = sadd.s32 %s469, 1
      %p473 = scmp.eq.s32.totalorder %s44, 1
      %p474 = scmp.ne.s32.totalorder %s469, %s471
      %p475 = scmp.eq.s32.totalorder %s44, 0
      %p476 = por %p474, %p475
      %p477 = scmp.ne.s32.totalorder %s469, %s471
      %p478 = scmp.eq.s32.totalorder %s49, 1
      %p479 = por %p477, %p478
      %p480 = scmp.ne.s32.totalorder %s471, %s472
      %p481 = scmp.eq.s32.totalorder %s49, 0
      %p482 = por %p480, %p481
      %p483 = scmp.ne.s32.totalorder %s471, %s472
      %p484 = scmp.eq.s32.totalorder %s50, 1
      %p485 = por %p483, %p484
      %p487 = scmp.ne.s32.totalorder %s472, %s486
      %p488 = scmp.eq.s32.totalorder %s50, 0
      %p489 = por %p487, %p488
      %s491 = sadd.s32 %s490, 1
      %p494 = scmp.eq.s32.totalorder %s44, 1
      %p495 = scmp.ne.s32.totalorder %s490, %s492
      %p496 = scmp.eq.s32.totalorder %s44, 0
      %p497 = por %p495, %p496
      %p498 = scmp.ne.s32.totalorder %s490, %s492
      %p499 = scmp.eq.s32.totalorder %s49, 1
      %p500 = por %p498, %p499
      %p501 = scmp.ne.s32.totalorder %s492, %s493
      %p502 = scmp.eq.s32.totalorder %s49, 0
      %p503 = por %p501, %p502
      %p504 = scmp.ne.s32.totalorder %s492, %s493
      %p505 = scmp.eq.s32.totalorder %s50, 1
      %p506 = por %p504, %p505
      %p508 = scmp.ne.s32.totalorder %s493, %s507
      %p509 = scmp.eq.s32.totalorder %s50, 0
      %p510 = por %p508, %p509
      %s512 = sadd.s32 %s511, 1
      %p515 = scmp.eq.s32.totalorder %s44, 1
      %p516 = scmp.ne.s32.totalorder %s511, %s513
      %p517 = scmp.eq.s32.totalorder %s44, 0
      %p518 = por %p516, %p517
      %p519 = scmp.ne.s32.totalorder %s511, %s513
      %p520 = scmp.eq.s32.totalorder %s49, 1
      %p521 = por %p519, %p520
      %p522 = scmp.ne.s32.totalorder %s513, %s514
      %p523 = scmp.eq.s32.totalorder %s49, 0
      %p524 = por %p522, %p523
      %p525 = scmp.ne.s32.totalorder %s513, %s514
      %p526 = scmp.eq.s32.totalorder %s50, 1
      %p527 = por %p525, %p526
      %p529 = scmp.ne.s32.totalorder %s514, %s528
      %p530 = scmp.eq.s32.totalorder %s50, 0
      %p531 = por %p529, %p530
      %s533 = sadd.s32 %s532, 1
      %p536 = scmp.eq.s32.totalorder %s44, 1
      %p537 = scmp.ne.s32.totalorder %s532, %s534
      %p538 = scmp.eq.s32.totalorder %s44, 0
      %p539 = por %p537, %p538
      %p540 = scmp.ne.s32.totalorder %s532, %s534
      %p541 = scmp.eq.s32.totalorder %s49, 1
      %p542 = por %p540, %p541
      %p543 = scmp.ne.s32.totalorder %s534, %s535
      %p544 = scmp.eq.s32.totalorder %s49, 0
      %p545 = por %p543, %p544
      %p546 = scmp.ne.s32.totalorder %s534, %s535
      %p547 = scmp.eq.s32.totalorder %s50, 1
      %p548 = por %p546, %p547
      %p550 = scmp.ne.s32.totalorder %s535, %s549
      %p551 = scmp.eq.s32.totalorder %s50, 0
      %p552 = por %p550, %p551
      %p553 = scmp.le.s32.totalorder 1, %s44
      %p554 = scmp.lt.s32.totalorder %s44, 3
      %p555 = pnand %p553, %p554
      %p556 = pneg %p555
      // Predicated region
      $region9: #{bert_fine_tune_forward.1} parent=5 // pred_check
        _
      $region10: #{bert_fine_tune_forward.1} parent=5 // pred_check_branch
        %558 = sbr.rel (%p555) target = $region12
      $region11: #{bert_fine_tune_forward.1} parent=5 // pred_region
        %s559 = ssub.s32 %s44, 1
        // Predicated region
        $region13: #{bert_fine_tune_forward.1} parent=11 // pred_check
          %p560 = pneg %p65
        $region14: #{bert_fine_tune_forward.1} parent=11 // pred_check_branch
          %562 = sbr.rel (%p560) target = $region16
        $region15: #{bert_fine_tune_forward.1} parent=11 // pred_region
          _
        $region16: #{bert_fine_tune_forward.1} parent=11 // pred_fallthru
          _
        // Predicated region
        $region17: #{bert_fine_tune_forward.1} parent=11 // pred_check
          %p563 = pneg %p86
        $region18: #{bert_fine_tune_forward.1} parent=11 // pred_check_branch
          %565 = sbr.rel (%p563) target = $region20
        $region19: #{bert_fine_tune_forward.1} parent=11 // pred_region
          _
        $region20: #{bert_fine_tune_forward.1} parent=11 // pred_fallthru
          _
        // Predicated region
        $region21: #{bert_fine_tune_forward.1} parent=11 // pred_check
          %p566 = pneg %p107
        $region22: #{bert_fine_tune_forward.1} parent=11 // pred_check_branch
          %568 = sbr.rel (%p566) target = $region24
        $region23: #{bert_fine_tune_forward.1} parent=11 // pred_region
          _
        $region24: #{bert_fine_tune_forward.1} parent=11 // pred_fallthru
          _
        // Predicated region
        $region25: #{bert_fine_tune_forward.1} parent=11 // pred_check
          %p569 = pneg %p128
        $region26: #{bert_fine_tune_forward.1} parent=11 // pred_check_branch
          %571 = sbr.rel (%p569) target = $region28
        $region27: #{bert_fine_tune_forward.1} parent=11 // pred_region
          %s573 = ssub.s32 16, 16
          %574 = vsyncadd [#allocation4], %s573
          %s576 = sshll.u32 [#allocation3], 4
          %s577 = int_to_ptr.vmem [resolvable:$true] %s576
          %579 = dma.hbm_to_vmem [thread:$0]  %s3, 16, %s577, [#allocation4]
        $region28: #{bert_fine_tune_forward.1} parent=11 // pred_fallthru
          _
        // Predicated region
        $region29: #{bert_fine_tune_forward.1} parent=11 // pred_check
          %p580 = pneg %p461
        $region30: #{bert_fine_tune_forward.1} parent=11 // pred_check_branch
          %582 = sbr.rel (%p580) target = $region32
        $region31: #{bert_fine_tune_forward.1} parent=11 // pred_region
          %s584 = ssub.s32 1024, 1024
          %585 = vsyncadd [#allocation19], %s584
          %s586 = sshll.u32 [#allocation20], 4
          %s587 = int_to_ptr.vmem [resolvable:$true] %s586
          %592 = dma.hbm_to_vmem [thread:$0]  %s16, 1024, %s587, [#allocation19], 64, 64, 4
        $region32: #{bert_fine_tune_forward.1} parent=11 // pred_fallthru
          _
        // Predicated region
        $region33: #{bert_fine_tune_forward.1} parent=11 // pred_check
          %p593 = pneg %p482
        $region34: #{bert_fine_tune_forward.1} parent=11 // pred_check_branch
          %595 = sbr.rel (%p593) target = $region36
        $region35: #{bert_fine_tune_forward.1} parent=11 // pred_region
          %s597 = ssub.s32 16, 16
          %598 = vsyncadd [#allocation22], %s597
          %s600 = sshll.u32 [#allocation21], 4
          %s601 = int_to_ptr.vmem [resolvable:$true] %s600
          %603 = dma.hbm_to_vmem [thread:$0]  %s17, 16, %s601, [#allocation22]
        $region36: #{bert_fine_tune_forward.1} parent=11 // pred_fallthru
          _
        // Predicated region
        $region37: #{bert_fine_tune_forward.1} parent=11 // pred_check
          %p604 = pneg %p503
        $region38: #{bert_fine_tune_forward.1} parent=11 // pred_check_branch
          %606 = sbr.rel (%p604) target = $region40
        $region39: #{bert_fine_tune_forward.1} parent=11 // pred_region
          _
        $region40: #{bert_fine_tune_forward.1} parent=11 // pred_fallthru
          _
        // Predicated region
        $region41: #{bert_fine_tune_forward.1} parent=11 // pred_check
          %p607 = pneg %p524
        $region42: #{bert_fine_tune_forward.1} parent=11 // pred_check_branch
          %609 = sbr.rel (%p607) target = $region44
        $region43: #{bert_fine_tune_forward.1} parent=11 // pred_region
          _
        $region44: #{bert_fine_tune_forward.1} parent=11 // pred_fallthru
          _
      $region12: #{bert_fine_tune_forward.1} parent=5 // pred_fallthru
        _
      %p610 = scmp.lt.s32.totalorder %s44, 2
      // Predicated region
      $region45: #{bert_fine_tune_forward.1} parent=5 // pred_check
        %p611 = pneg %p610
      $region46: #{bert_fine_tune_forward.1} parent=5 // pred_check_branch
        %613 = sbr.rel (%p611) target = $region48
      $region47: #{bert_fine_tune_forward.1} parent=5 // pred_region
        // Predicated region
        $region49: #{bert_fine_tune_forward.1} parent=47 // pred_check
          %p614 = pneg %p148
        $region50: #{bert_fine_tune_forward.1} parent=47 // pred_check_branch
          %616 = sbr.rel (%p614) target = $region52
        $region51: #{bert_fine_tune_forward.1} parent=47 // pred_region
          %p617 = scmp.lt.s32.totalorder %s44, 1
          %s618 = scalar_select %p617, %s44, 1
          %s619 = smul.addr %s618, 48
          %s620 = smul.addr %s619, 4
          %s621 = scalar_lea.vmem %s4, %s620
        $region52: #{bert_fine_tune_forward.1} parent=47 // pred_fallthru
          _
        // Predicated region
        $region53: #{bert_fine_tune_forward.1} parent=47 // pred_check
          %p622 = pneg %p174
        $region54: #{bert_fine_tune_forward.1} parent=47 // pred_check_branch
          %624 = sbr.rel (%p622) target = $region56
        $region55: #{bert_fine_tune_forward.1} parent=47 // pred_region
          %s625 = sand.u32 %s44, 1
          %s626 = scalar_lea.sflag [#allocation7], %s625
          %s627 = sand.u32 %s164, 1
          %s628 = smul.addr %s627, 3
          %s629 = scalar_lea.vmem [#allocation6], %s628
          %s631 = ssub.s32 48, 48
          %632 = vsyncadd %s626, %s631
          %s633 = smul.addr %s44, 3
          %s634 = smul.addr %s633, 16
          %s635 = scalar_lea.hbm %s5, %s634
          %s637 = sshll.u32 %s629, 4
          %s638 = int_to_ptr.vmem [resolvable:$true] %s637
          %640 = dma.hbm_to_vmem [thread:$0]  %s635, 48, %s638, %s626
        $region56: #{bert_fine_tune_forward.1} parent=47 // pred_fallthru
          _
        // Predicated region
        $region57: #{bert_fine_tune_forward.1} parent=47 // pred_check
          %p641 = pneg %p200
        $region58: #{bert_fine_tune_forward.1} parent=47 // pred_check_branch
          %643 = sbr.rel (%p641) target = $region60
        $region59: #{bert_fine_tune_forward.1} parent=47 // pred_region
          %p644 = scmp.lt.s32.totalorder %s44, 1
          %s645 = scalar_select %p644, %s44, 1
          %s646 = smul.addr %s645, 16
          %s647 = smul.addr %s646, 4
          %s648 = scalar_lea.vmem %s6, %s647
        $region60: #{bert_fine_tune_forward.1} parent=47 // pred_fallthru
          _
        // Predicated region
        $region61: #{bert_fine_tune_forward.1} parent=47 // pred_check
          %p649 = pneg %p226
        $region62: #{bert_fine_tune_forward.1} parent=47 // pred_check_branch
          %651 = sbr.rel (%p649) target = $region64
        $region63: #{bert_fine_tune_forward.1} parent=47 // pred_region
          %p652 = scmp.lt.s32.totalorder %s44, 1
          %s653 = scalar_select %p652, %s44, 1
          %s654 = scalar_lea.vmem %s7, %s653
        $region64: #{bert_fine_tune_forward.1} parent=47 // pred_fallthru
          _
        // Predicated region
        $region65: #{bert_fine_tune_forward.1} parent=47 // pred_check
          %p655 = pneg %p252
        $region66: #{bert_fine_tune_forward.1} parent=47 // pred_check_branch
          %657 = sbr.rel (%p655) target = $region68
        $region67: #{bert_fine_tune_forward.1} parent=47 // pred_region
          %s658 = sand.u32 %s44, 1
          %s659 = scalar_lea.sflag [#allocation7], %s658
          %s660 = sand.u32 %s242, 1
          %s661 = scalar_lea.vmem [#allocation8], %s660
          %s663 = ssub.s32 16, 16
          %664 = vsyncadd %s659, %s663
          %s665 = smul.addr %s44, 16
          %s666 = scalar_lea.hbm %s8, %s665
          %s668 = sshll.u32 %s661, 4
          %s669 = int_to_ptr.vmem [resolvable:$true] %s668
          %671 = dma.hbm_to_vmem [thread:$0]  %s666, 16, %s669, %s659
        $region68: #{bert_fine_tune_forward.1} parent=47 // pred_fallthru
          _
        // Predicated region
        $region69: #{bert_fine_tune_forward.1} parent=47 // pred_check
          %p672 = pneg %p278
        $region70: #{bert_fine_tune_forward.1} parent=47 // pred_check_branch
          %674 = sbr.rel (%p672) target = $region72
        $region71: #{bert_fine_tune_forward.1} parent=47 // pred_region
          %s675 = sand.u32 %s44, 1
          %s676 = scalar_lea.sflag [#allocation10], %s675
          %s677 = sand.u32 %s268, 1
          %s678 = scalar_lea.vmem [#allocation9], %s677
          %s680 = ssub.s32 16, 16
          %681 = vsyncadd %s676, %s680
          %s682 = smul.addr %s44, 16
          %s683 = scalar_lea.hbm %s9, %s682
          %s685 = sshll.u32 %s678, 4
          %s686 = int_to_ptr.vmem [resolvable:$true] %s685
          %688 = dma.hbm_to_vmem [thread:$0]  %s683, 16, %s686, %s676
        $region72: #{bert_fine_tune_forward.1} parent=47 // pred_fallthru
          _
        // Predicated region
        $region73: #{bert_fine_tune_forward.1} parent=47 // pred_check
          %p689 = pneg %p304
        $region74: #{bert_fine_tune_forward.1} parent=47 // pred_check_branch
          %691 = sbr.rel (%p689) target = $region76
        $region75: #{bert_fine_tune_forward.1} parent=47 // pred_region
          %s692 = sand.u32 %s44, 1
          %s693 = scalar_lea.sflag [#allocation10], %s692
          %s694 = sand.u32 %s294, 1
          %s695 = smul.addr %s694, 128
          %s696 = scalar_lea.vmem [#allocation11], %s695
          %s698 = ssub.s32 2048, 2048
          %699 = vsyncadd %s693, %s698
          %s700 = smul.addr %s44, 32
          %s701 = smul.addr %s700, 64
          %s702 = scalar_lea.hbm %s10, %s701
          %s703 = sshll.u32 %s696, 4
          %s704 = int_to_ptr.vmem [resolvable:$true] %s703
          %709 = dma.hbm_to_vmem [thread:$0]  %s702, 2048, %s704, %s693, 128, 128, 8
        $region76: #{bert_fine_tune_forward.1} parent=47 // pred_fallthru
          _
        // Predicated region
        $region77: #{bert_fine_tune_forward.1} parent=47 // pred_check
          %p710 = pneg %p330
        $region78: #{bert_fine_tune_forward.1} parent=47 // pred_check_branch
          %712 = sbr.rel (%p710) target = $region80
        $region79: #{bert_fine_tune_forward.1} parent=47 // pred_region
          %s713 = sand.u32 %s44, 1
          %s714 = scalar_lea.sflag [#allocation13], %s713
          %s715 = sand.u32 %s320, 1
          %s716 = smul.addr %s715, 2
          %s717 = scalar_lea.vmem [#allocation12], %s716
          %s719 = ssub.s32 32, 32
          %720 = vsyncadd %s714, %s719
          %s721 = smul.addr %s44, 2
          %s722 = smul.addr %s721, 16
          %s723 = scalar_lea.hbm %s11, %s722
          %s725 = sshll.u32 %s717, 4
          %s726 = int_to_ptr.vmem [resolvable:$true] %s725
          %728 = dma.hbm_to_vmem [thread:$0]  %s723, 32, %s726, %s714
        $region80: #{bert_fine_tune_forward.1} parent=47 // pred_fallthru
          _
        // Predicated region
        $region81: #{bert_fine_tune_forward.1} parent=47 // pred_check
          %p729 = pneg %p356
        $region82: #{bert_fine_tune_forward.1} parent=47 // pred_check_branch
          %731 = sbr.rel (%p729) target = $region84
        $region83: #{bert_fine_tune_forward.1} parent=47 // pred_region
          %s732 = sand.u32 %s44, 1
          %s733 = scalar_lea.sflag [#allocation13], %s732
          %s734 = sand.u32 %s346, 1
          %s735 = smul.addr %s734, 128
          %s736 = scalar_lea.vmem [#allocation14], %s735
          %s738 = ssub.s32 2048, 2048
          %739 = vsyncadd %s733, %s738
          %s740 = smul.addr %s44, 32
          %s741 = smul.addr %s740, 64
          %s742 = scalar_lea.hbm %s12, %s741
          %s743 = sshll.u32 %s736, 4
          %s744 = int_to_ptr.vmem [resolvable:$true] %s743
          %749 = dma.hbm_to_vmem [thread:$0]  %s742, 2048, %s744, %s733, 64, 64, 4
        $region84: #{bert_fine_tune_forward.1} parent=47 // pred_fallthru
          _
        // Predicated region
        $region85: #{bert_fine_tune_forward.1} parent=47 // pred_check
          %p750 = pneg %p382
        $region86: #{bert_fine_tune_forward.1} parent=47 // pred_check_branch
          %752 = sbr.rel (%p750) target = $region88
        $region87: #{bert_fine_tune_forward.1} parent=47 // pred_region
          %s753 = sand.u32 %s44, 1
          %s754 = scalar_lea.sflag [#allocation16], %s753
          %s755 = sand.u32 %s372, 1
          %s756 = scalar_lea.vmem [#allocation15], %s755
          %s758 = ssub.s32 16, 16
          %759 = vsyncadd %s754, %s758
          %s760 = smul.addr %s44, 16
          %s761 = scalar_lea.hbm %s13, %s760
          %s763 = sshll.u32 %s756, 4
          %s764 = int_to_ptr.vmem [resolvable:$true] %s763
          %766 = dma.hbm_to_vmem [thread:$0]  %s761, 16, %s764, %s754
        $region88: #{bert_fine_tune_forward.1} parent=47 // pred_fallthru
          _
        // Predicated region
        $region89: #{bert_fine_tune_forward.1} parent=47 // pred_check
          %p767 = pneg %p408
        $region90: #{bert_fine_tune_forward.1} parent=47 // pred_check_branch
          %769 = sbr.rel (%p767) target = $region92
        $region91: #{bert_fine_tune_forward.1} parent=47 // pred_region
          %s770 = sand.u32 %s44, 1
          %s771 = scalar_lea.sflag [#allocation16], %s770
          %s772 = sand.u32 %s398, 1
          %s773 = scalar_lea.vmem [#allocation17], %s772
          %s775 = ssub.s32 16, 16
          %776 = vsyncadd %s771, %s775
          %s777 = smul.addr %s44, 16
          %s778 = scalar_lea.hbm %s14, %s777
          %s780 = sshll.u32 %s773, 4
          %s781 = int_to_ptr.vmem [resolvable:$true] %s780
          %783 = dma.hbm_to_vmem [thread:$0]  %s778, 16, %s781, %s771
        $region92: #{bert_fine_tune_forward.1} parent=47 // pred_fallthru
          _
        // Predicated region
        $region93: #{bert_fine_tune_forward.1} parent=47 // pred_check
          %p784 = pneg %p434
        $region94: #{bert_fine_tune_forward.1} parent=47 // pred_check_branch
          %786 = sbr.rel (%p784) target = $region96
        $region95: #{bert_fine_tune_forward.1} parent=47 // pred_region
          %s787 = sand.u32 %s44, 1
          %s788 = scalar_lea.sflag [#allocation19], %s787
          %s789 = sand.u32 %s424, 1
          %s790 = scalar_lea.vmem [#allocation18], %s789
          %s792 = ssub.s32 16, 16
          %793 = vsyncadd %s788, %s792
          %s794 = smul.addr %s44, 16
          %s795 = scalar_lea.hbm %s15, %s794
          %s797 = sshll.u32 %s790, 4
          %s798 = int_to_ptr.vmem [resolvable:$true] %s797
          %800 = dma.hbm_to_vmem [thread:$0]  %s795, 16, %s798, %s788
        $region96: #{bert_fine_tune_forward.1} parent=47 // pred_fallthru
          _
      $region48: #{bert_fine_tune_forward.1} parent=5 // pred_fallthru
        _
      %p801 = scmp.le.s32.totalorder 1, %s44
      %p802 = scmp.lt.s32.totalorder %s44, 3
      %p803 = pnand %p801, %p802
      %p804 = pneg %p803
      // Predicated region
      $region97: #{bert_fine_tune_forward.1} parent=5 // pred_check
        _
      $region98: #{bert_fine_tune_forward.1} parent=5 // pred_check_branch
        %806 = sbr.rel (%p803) target = $region100
      $region99: #{bert_fine_tune_forward.1} parent=5 // pred_region
        %s807 = ssub.s32 %s44, 1
        // Predicated region
        $region101: #{bert_fine_tune_forward.1} parent=99 // pred_check
          %p808 = pneg %p128
        $region102: #{bert_fine_tune_forward.1} parent=99 // pred_check_branch
          %810 = sbr.rel (%p808) target = $region104
        $region103: #{bert_fine_tune_forward.1} parent=99 // pred_region
          %811 = dma.done [#allocation4], 16
        $region104: #{bert_fine_tune_forward.1} parent=99 // pred_fallthru
          _
        %s812 = sand.u32 %s49, 1
        %s813 = scalar_lea.sflag [#allocation7], %s812
        %s814 = sand.u32 %s167, 1
        %s815 = smul.addr %s814, 3
        %s816 = scalar_lea.vmem [#allocation6], %s815
        // Predicated region
        $region105: #{bert_fine_tune_forward.1} parent=99 // pred_check
          %p817 = pneg %p180
        $region106: #{bert_fine_tune_forward.1} parent=99 // pred_check_branch
          %819 = sbr.rel (%p817) target = $region108
        $region107: #{bert_fine_tune_forward.1} parent=99 // pred_region
          %820 = dma.done %s813, 48
        $region108: #{bert_fine_tune_forward.1} parent=99 // pred_fallthru
          _
        %s821 = sand.u32 %s49, 1
        %s822 = scalar_lea.sflag [#allocation7], %s821
        %s823 = sand.u32 %s245, 1
        %s824 = scalar_lea.vmem [#allocation8], %s823
        // Predicated region
        $region109: #{bert_fine_tune_forward.1} parent=99 // pred_check
          %p825 = pneg %p258
        $region110: #{bert_fine_tune_forward.1} parent=99 // pred_check_branch
          %827 = sbr.rel (%p825) target = $region112
        $region111: #{bert_fine_tune_forward.1} parent=99 // pred_region
          %828 = dma.done %s822, 16
        $region112: #{bert_fine_tune_forward.1} parent=99 // pred_fallthru
          _
        %s829 = sand.u32 %s49, 1
        %s830 = scalar_lea.sflag [#allocation10], %s829
        %s831 = sand.u32 %s271, 1
        %s832 = scalar_lea.vmem [#allocation9], %s831
        // Predicated region
        $region113: #{bert_fine_tune_forward.1} parent=99 // pred_check
          %p833 = pneg %p284
        $region114: #{bert_fine_tune_forward.1} parent=99 // pred_check_branch
          %835 = sbr.rel (%p833) target = $region116
        $region115: #{bert_fine_tune_forward.1} parent=99 // pred_region
          %836 = dma.done %s830, 16
        $region116: #{bert_fine_tune_forward.1} parent=99 // pred_fallthru
          _
        %s837 = sand.u32 %s49, 1
        %s838 = scalar_lea.sflag [#allocation10], %s837
        %s839 = sand.u32 %s297, 1
        %s840 = smul.addr %s839, 128
        %s841 = scalar_lea.vmem [#allocation11], %s840
        // Predicated region
        $region117: #{bert_fine_tune_forward.1} parent=99 // pred_check
          %p842 = pneg %p310
        $region118: #{bert_fine_tune_forward.1} parent=99 // pred_check_branch
          %844 = sbr.rel (%p842) target = $region120
        $region119: #{bert_fine_tune_forward.1} parent=99 // pred_region
          %845 = dma.done %s838, 2048
        $region120: #{bert_fine_tune_forward.1} parent=99 // pred_fallthru
          _
        %s846 = sand.u32 %s49, 1
        %s847 = scalar_lea.sflag [#allocation13], %s846
        %s848 = sand.u32 %s323, 1
        %s849 = smul.addr %s848, 2
        %s850 = scalar_lea.vmem [#allocation12], %s849
        // Predicated region
        $region121: #{bert_fine_tune_forward.1} parent=99 // pred_check
          %p851 = pneg %p336
        $region122: #{bert_fine_tune_forward.1} parent=99 // pred_check_branch
          %853 = sbr.rel (%p851) target = $region124
        $region123: #{bert_fine_tune_forward.1} parent=99 // pred_region
          %854 = dma.done %s847, 32
        $region124: #{bert_fine_tune_forward.1} parent=99 // pred_fallthru
          _
        %s855 = sand.u32 %s49, 1
        %s856 = scalar_lea.sflag [#allocation13], %s855
        %s857 = sand.u32 %s349, 1
        %s858 = smul.addr %s857, 128
        %s859 = scalar_lea.vmem [#allocation14], %s858
        // Predicated region
        $region125: #{bert_fine_tune_forward.1} parent=99 // pred_check
          %p860 = pneg %p362
        $region126: #{bert_fine_tune_forward.1} parent=99 // pred_check_branch
          %862 = sbr.rel (%p860) target = $region128
        $region127: #{bert_fine_tune_forward.1} parent=99 // pred_region
          %863 = dma.done %s856, 2048
        $region128: #{bert_fine_tune_forward.1} parent=99 // pred_fallthru
          _
        %s864 = sand.u32 %s49, 1
        %s865 = scalar_lea.sflag [#allocation16], %s864
        %s866 = sand.u32 %s375, 1
        %s867 = scalar_lea.vmem [#allocation15], %s866
        // Predicated region
        $region129: #{bert_fine_tune_forward.1} parent=99 // pred_check
          %p868 = pneg %p388
        $region130: #{bert_fine_tune_forward.1} parent=99 // pred_check_branch
          %870 = sbr.rel (%p868) target = $region132
        $region131: #{bert_fine_tune_forward.1} parent=99 // pred_region
          %871 = dma.done %s865, 16
        $region132: #{bert_fine_tune_forward.1} parent=99 // pred_fallthru
          _
        %s872 = sand.u32 %s49, 1
        %s873 = scalar_lea.sflag [#allocation16], %s872
        %s874 = sand.u32 %s401, 1
        %s875 = scalar_lea.vmem [#allocation17], %s874
        // Predicated region
        $region133: #{bert_fine_tune_forward.1} parent=99 // pred_check
          %p876 = pneg %p414
        $region134: #{bert_fine_tune_forward.1} parent=99 // pred_check_branch
          %878 = sbr.rel (%p876) target = $region136
        $region135: #{bert_fine_tune_forward.1} parent=99 // pred_region
          %879 = dma.done %s873, 16
        $region136: #{bert_fine_tune_forward.1} parent=99 // pred_fallthru
          _
        %s880 = sand.u32 %s49, 1
        %s881 = scalar_lea.sflag [#allocation19], %s880
        %s882 = sand.u32 %s427, 1
        %s883 = scalar_lea.vmem [#allocation18], %s882
        // Predicated region
        $region137: #{bert_fine_tune_forward.1} parent=99 // pred_check
          %p884 = pneg %p440
        $region138: #{bert_fine_tune_forward.1} parent=99 // pred_check_branch
          %886 = sbr.rel (%p884) target = $region140
        $region139: #{bert_fine_tune_forward.1} parent=99 // pred_region
          %887 = dma.done %s881, 16
        $region140: #{bert_fine_tune_forward.1} parent=99 // pred_fallthru
          _
        // Predicated region
        $region141: #{bert_fine_tune_forward.1} parent=99 // pred_check
          %p888 = pneg %p461
        $region142: #{bert_fine_tune_forward.1} parent=99 // pred_check_branch
          %890 = sbr.rel (%p888) target = $region144
        $region143: #{bert_fine_tune_forward.1} parent=99 // pred_region
          %891 = dma.done [#allocation19], 1024
        $region144: #{bert_fine_tune_forward.1} parent=99 // pred_fallthru
          _
        // Predicated region
        $region145: #{bert_fine_tune_forward.1} parent=99 // pred_check
          %p892 = pneg %p482
        $region146: #{bert_fine_tune_forward.1} parent=99 // pred_check_branch
          %894 = sbr.rel (%p892) target = $region148
        $region147: #{bert_fine_tune_forward.1} parent=99 // pred_region
          %895 = dma.done [#allocation22], 16
        $region148: #{bert_fine_tune_forward.1} parent=99 // pred_fallthru
          _
        %p896 = pneg %p65
        %p897 = pneg %p62
        %p898 = pneg %p86
        %p899 = pneg %p83
        %p900 = pneg %p107
        %p901 = pneg %p104
        %p902 = pneg %p128
        %p903 = pneg %p125
        %p904 = scmp.lt.s32.totalorder %s49, 1
        %s905 = scalar_select %p904, %s49, 1
        %s906 = smul.addr %s905, 48
        %s907 = smul.addr %s906, 4
        %s908 = scalar_lea.vmem %s4, %s907
        %p909 = pneg %p154
        %p910 = pneg %p151
        %s911 = sand.u32 %s49, 1
        %s912 = scalar_lea.sflag [#allocation7], %s911
        %s913 = sand.u32 %s167, 1
        %s914 = smul.addr %s913, 3
        %s915 = scalar_lea.vmem [#allocation6], %s914
        %p916 = pneg %p180
        %p917 = pneg %p177
        %p918 = scmp.lt.s32.totalorder %s49, 1
        %s919 = scalar_select %p918, %s49, 1
        %s920 = smul.addr %s919, 16
        %s921 = smul.addr %s920, 4
        %s922 = scalar_lea.vmem %s6, %s921
        %p923 = pneg %p206
        %p924 = pneg %p203
        %p925 = scmp.lt.s32.totalorder %s49, 1
        %s926 = scalar_select %p925, %s49, 1
        %s927 = scalar_lea.vmem %s7, %s926
        %p928 = pneg %p232
        %p929 = pneg %p229
        %s930 = sand.u32 %s49, 1
        %s931 = scalar_lea.sflag [#allocation7], %s930
        %s932 = sand.u32 %s245, 1
        %s933 = scalar_lea.vmem [#allocation8], %s932
        %p934 = pneg %p258
        %p935 = pneg %p255
        %s936 = sand.u32 %s49, 1
        %s937 = scalar_lea.sflag [#allocation10], %s936
        %s938 = sand.u32 %s271, 1
        %s939 = scalar_lea.vmem [#allocation9], %s938
        %p940 = pneg %p284
        %p941 = pneg %p281
        %s942 = sand.u32 %s49, 1
        %s943 = scalar_lea.sflag [#allocation10], %s942
        %s944 = sand.u32 %s297, 1
        %s945 = smul.addr %s944, 128
        %s946 = scalar_lea.vmem [#allocation11], %s945
        %p947 = pneg %p310
        %p948 = pneg %p307
        %s949 = sand.u32 %s49, 1
        %s950 = scalar_lea.sflag [#allocation13], %s949
        %s951 = sand.u32 %s323, 1
        %s952 = smul.addr %s951, 2
        %s953 = scalar_lea.vmem [#allocation12], %s952
        %p954 = pneg %p336
        %p955 = pneg %p333
        %s956 = sand.u32 %s49, 1
        %s957 = scalar_lea.sflag [#allocation13], %s956
        %s958 = sand.u32 %s349, 1
        %s959 = smul.addr %s958, 128
        %s960 = scalar_lea.vmem [#allocation14], %s959
        %p961 = pneg %p362
        %p962 = pneg %p359
        %s963 = sand.u32 %s49, 1
        %s964 = scalar_lea.sflag [#allocation16], %s963
        %s965 = sand.u32 %s375, 1
        %s966 = scalar_lea.vmem [#allocation15], %s965
        %p967 = pneg %p388
        %p968 = pneg %p385
        %s969 = sand.u32 %s49, 1
        %s970 = scalar_lea.sflag [#allocation16], %s969
        %s971 = sand.u32 %s401, 1
        %s972 = scalar_lea.vmem [#allocation17], %s971
        %p973 = pneg %p414
        %p974 = pneg %p411
        %s975 = sand.u32 %s49, 1
        %s976 = scalar_lea.sflag [#allocation19], %s975
        %s977 = sand.u32 %s427, 1
        %s978 = scalar_lea.vmem [#allocation18], %s977
        %p979 = pneg %p440
        %p980 = pneg %p437
        %p981 = pneg %p461
        %p982 = pneg %p458
        %p983 = pneg %p482
        %p984 = pneg %p479
        %p985 = pneg %p503
        %p986 = pneg %p500
        %p987 = pneg %p524
        %p988 = pneg %p521
        %p989 = pneg %p545
        %p990 = pneg %p542
        %p991 = scmp.lt.s32.totalorder %s49, 1
        %s992 = scalar_select %p991, %s49, 1
        %s993 = smul.addr %s992, 48
        %s994 = smul.addr %s993, 4
        %s995 = scalar_lea.vmem %s4, %s994
        %p996 = scmp.lt.s32.totalorder %s49, 1
        %s997 = scalar_select %p996, %s49, 1
        %s998 = smul.addr %s997, 16
        %s999 = smul.addr %s998, 4
        %s1000 = scalar_lea.vmem %s6, %s999
        %p1001 = scmp.lt.s32.totalorder %s49, 1
        %s1002 = scalar_select %p1001, %s49, 1
        %s1003 = scalar_lea.vmem %s7, %s1002
        %p1005 = scmp.eq.s32.totalorder %s49, 0
        // Predicated region
        $region149: #{bert_fine_tune_forward.1} parent=99 // pred_check
          %p1006 = pneg %p1005
        $region150: #{bert_fine_tune_forward.1} parent=99 // pred_check_branch
          %1008 = sbr.rel (%p1006) target = $region152
        $region151: #{bert_fine_tune_forward.1} parent=99 // pred_region
          %v1009 = vld [vmem:[%s0] sm:$0xff]
          %v1010 = vld [vmem:[%s0 + $0x8] sm:$0xff]
          %v1011 = vld [vmem:[%s0 + $0x10] sm:$0xff]
          %v1012 = vld [vmem:[%s0 + $0x18] sm:$0xff]
          %v1013 = vld [vmem:[%s2] sm:$0x1]
          %v1014 = vld [vmem:[#allocation3] sm:$0x1]
          %1015 = vadd.xlane.f32.xlu0 %v1009
          %v1016 = vpop.xlane.xlu0 %1015
          %1017 = vadd.xlane.f32.xlu0 %v1010
          %v1018 = vpop.xlane.xlu0 %1017
          %1019 = vadd.xlane.f32.xlu0 %v1011
          %v1020 = vpop.xlane.xlu0 %1019
          %1021 = vadd.xlane.f32.xlu0 %v1012
          %v1022 = vpop.xlane.xlu0 %1021
          %v1023 = vrcp.pop 128.0
          %v1024 = vmul.f32 %v1016, %v1023
          %v1025 = vmul.f32 %v1018, %v1023
          %v1026 = vmul.f32 %v1020, %v1023
          %v1027 = vmul.f32 %v1022, %v1023
          %v1028 = vsub.f32 %v1009, %v1024
          %v1029 = vsub.f32 %v1010, %v1025
          %v1030 = vsub.f32 %v1011, %v1026
          %v1031 = vsub.f32 %v1012, %v1027
          %v1032 = vmul.f32 %v1028, %v1028
          %v1033 = vmul.f32 %v1029, %v1029
          %v1034 = vmul.f32 %v1030, %v1030
          %v1035 = vmul.f32 %v1031, %v1031
          %1036 = vadd.xlane.f32.xlu0 %v1032
          %v1037 = vpop.xlane.xlu0 %1036
          %1038 = vadd.xlane.f32.xlu0 %v1033
          %v1039 = vpop.xlane.xlu0 %1038
          %1040 = vadd.xlane.f32.xlu0 %v1034
          %v1041 = vpop.xlane.xlu0 %1040
          %1042 = vadd.xlane.f32.xlu0 %v1035
          %v1043 = vpop.xlane.xlu0 %1042
          %v1044 = vmul.f32 %v1037, %v1023
          %v1045 = vmul.f32 %v1039, %v1023
          %v1046 = vmul.f32 %v1041, %v1023
          %v1047 = vmul.f32 %v1043, %v1023
          %v1048 = vadd.f32 %v1044, 1e-12
          %v1049 = vadd.f32 %v1045, 1e-12
          %v1050 = vadd.f32 %v1046, 1e-12
          %v1051 = vadd.f32 %v1047, 1e-12
          %v1052 = vrsqrt.pop %v1048
          %v1053 = vrsqrt.pop %v1049
          %v1054 = vrsqrt.pop %v1050
          %v1055 = vrsqrt.pop %v1051
          %v1056 = vmul.f32 %v1028, %v1052
          %v1057 = vmul.f32 %v1029, %v1053
          %v1058 = vmul.f32 %v1030, %v1054
          %v1059 = vmul.f32 %v1031, %v1055
          %v1061 = vlaneseq
          %v1062 = vshrl.u32 %v1061, 7
          %v1063 = vsub.s32 0, %v1062
          %v1064 = vrot.slane %v1013, %v1063
          %v1066 = vmul.f32 %v1056, %v1064
          %v1067 = vmul.f32 %v1057, %v1064
          %v1068 = vmul.f32 %v1058, %v1064
          %v1069 = vmul.f32 %v1059, %v1064
          %v1071 = vlaneseq
          %v1072 = vshrl.u32 %v1071, 7
          %v1073 = vsub.s32 0, %v1072
          %v1074 = vrot.slane %v1014, %v1073
          %v1076 = vadd.f32 %v1066, %v1074
          %v1077 = vadd.f32 %v1067, %v1074
          %v1078 = vadd.f32 %v1068, %v1074
          %v1079 = vadd.f32 %v1069, %v1074
          %1080 = vst [vmem:[#allocation2] sm:$0xff] %v1076
          %1081 = vst [vmem:[#allocation2 + $0x8] sm:$0xff] %v1077
          %1082 = vst [vmem:[#allocation2 + $0x10] sm:$0xff] %v1078
          %1083 = vst [vmem:[#allocation2 + $0x18] sm:$0xff] %v1079
        $region152: #{bert_fine_tune_forward.1} parent=99 // pred_fallthru
          _
        %v1084 = vld [vmem:[#allocation2] sm:$0xff]
        %v1085 = vld [vmem:[#allocation2 + $0x8] sm:$0xff]
        %v1086 = vld [vmem:[#allocation2 + $0x10] sm:$0xff]
        %v1087 = vld [vmem:[#allocation2 + $0x18] sm:$0xff]
        %v1088 = vpack.c.bf16 %v1085, %v1084
        %v1089 = vpack.c.bf16 %v1087, %v1086
        %v1090 = vld [vmem:[%s1] sm:$0xff]
        %v1091 = vld [vmem:[%s1 + $0x8] sm:$0xff]
        %v1092 = vld [vmem:[%s1 + $0x10] sm:$0xff]
        %v1093 = vld [vmem:[%s1 + $0x18] sm:$0xff]
        %v1094 = vld [vmem:[%s995] sm:$0xff]
        %v1095 = vld [vmem:[%s995 + $0x8] sm:$0xf]
        %v1096 = vld [vmem:[%s995 + $0xc] sm:$0xff]
        %v1097 = vld [vmem:[%s995 + $0x14] sm:$0xf]
        %v1098 = vld [vmem:[%s995 + $0x18] sm:$0xff]
        %v1099 = vld [vmem:[%s995 + $0x20] sm:$0xf]
        %v1100 = vld [vmem:[%s995 + $0x24] sm:$0xff]
        %v1101 = vld [vmem:[%s995 + $0x2c] sm:$0xf]
        %v1102 = vld [vmem:[%s995 + $0x30] sm:$0xff]
        %v1103 = vld [vmem:[%s995 + $0x38] sm:$0xf]
        %v1104 = vld [vmem:[%s995 + $0x3c] sm:$0xff]
        %v1105 = vld [vmem:[%s995 + $0x44] sm:$0xf]
        %v1106 = vld [vmem:[%s995 + $0x48] sm:$0xff]
        %v1107 = vld [vmem:[%s995 + $0x50] sm:$0xf]
        %v1108 = vld [vmem:[%s995 + $0x54] sm:$0xff]
        %v1109 = vld [vmem:[%s995 + $0x5c] sm:$0xf]
        %v1110 = vld [vmem:[%s995 + $0x60] sm:$0xff]
        %v1111 = vld [vmem:[%s995 + $0x68] sm:$0xf]
        %v1112 = vld [vmem:[%s995 + $0x6c] sm:$0xff]
        %v1113 = vld [vmem:[%s995 + $0x74] sm:$0xf]
        %v1114 = vld [vmem:[%s995 + $0x78] sm:$0xff]
        %v1115 = vld [vmem:[%s995 + $0x80] sm:$0xf]
        %v1116 = vld [vmem:[%s995 + $0x84] sm:$0xff]
        %v1117 = vld [vmem:[%s995 + $0x8c] sm:$0xf]
        %v1118 = vld [vmem:[%s995 + $0x90] sm:$0xff]
        %v1119 = vld [vmem:[%s995 + $0x98] sm:$0xf]
        %v1120 = vld [vmem:[%s995 + $0x9c] sm:$0xff]
        %v1121 = vld [vmem:[%s995 + $0xa4] sm:$0xf]
        %v1122 = vld [vmem:[%s995 + $0xa8] sm:$0xff]
        %v1123 = vld [vmem:[%s995 + $0xb0] sm:$0xf]
        %v1124 = vld [vmem:[%s995 + $0xb4] sm:$0xff]
        %v1125 = vld [vmem:[%s995 + $0xbc] sm:$0xf]
        %v1126 = vld [vmem:[%s816] sm:$0x7]
        %v1128 = vlaneseq
        %v1129 = vshrl.u32 %v1128, 7
        %v1130 = vsub.s32 0, %v1129
        %v1131 = vrot.slane %v1126, %v1130
        %v1132 = vlaneseq
        %v1133 = vshrl.u32 %v1132, 7
        %v1134 = vsub.s32 1, %v1133
        %v1135 = vrot.slane %v1126, %v1134
        %v1136 = vlaneseq
        %v1137 = vshrl.u32 %v1136, 7
        %v1138 = vsub.s32 2, %v1137
        %v1139 = vrot.slane %v1126, %v1138
        %v1175 = vunpack.c.l.b16 %v1094
        %v1176 = vunpack.c.h.b16 %v1094
        %v1177 = vunpack.c.l.b16 %v1095
        %v1178 = vunpack.c.l.b16 %v1096
        %v1179 = vunpack.c.h.b16 %v1096
        %v1180 = vunpack.c.l.b16 %v1097
        %v1181 = vunpack.c.l.b16 %v1098
        %v1182 = vunpack.c.h.b16 %v1098
        %v1183 = vunpack.c.l.b16 %v1099
        %v1184 = vunpack.c.l.b16 %v1100
        %v1185 = vunpack.c.h.b16 %v1100
        %v1186 = vunpack.c.l.b16 %v1101
        %v1187 = vunpack.c.l.b16 %v1102
        %v1188 = vunpack.c.h.b16 %v1102
        %v1189 = vunpack.c.l.b16 %v1103
        %v1190 = vunpack.c.l.b16 %v1104
        %v1191 = vunpack.c.h.b16 %v1104
        %v1192 = vunpack.c.l.b16 %v1105
        %v1193 = vunpack.c.l.b16 %v1106
        %v1194 = vunpack.c.h.b16 %v1106
        %v1195 = vunpack.c.l.b16 %v1107
        %v1196 = vunpack.c.l.b16 %v1108
        %v1197 = vunpack.c.h.b16 %v1108
        %v1198 = vunpack.c.l.b16 %v1109
        %v1199 = vunpack.c.l.b16 %v1110
        %v1200 = vunpack.c.h.b16 %v1110
        %v1201 = vunpack.c.l.b16 %v1111
        %v1202 = vunpack.c.l.b16 %v1112
        %v1203 = vunpack.c.h.b16 %v1112
        %v1204 = vunpack.c.l.b16 %v1113
        %v1205 = vunpack.c.l.b16 %v1114
        %v1206 = vunpack.c.h.b16 %v1114
        %v1207 = vunpack.c.l.b16 %v1115
        %v1208 = vunpack.c.l.b16 %v1116
        %v1209 = vunpack.c.h.b16 %v1116
        %v1210 = vunpack.c.l.b16 %v1117
        %v1211 = vunpack.c.l.b16 %v1118
        %v1212 = vunpack.c.h.b16 %v1118
        %v1213 = vunpack.c.l.b16 %v1119
        %v1214 = vunpack.c.l.b16 %v1120
        %v1215 = vunpack.c.h.b16 %v1120
        %v1216 = vunpack.c.l.b16 %v1121
        %v1217 = vunpack.c.l.b16 %v1122
        %v1218 = vunpack.c.h.b16 %v1122
        %v1219 = vunpack.c.l.b16 %v1123
        %v1220 = vunpack.c.l.b16 %v1124
        %v1221 = vunpack.c.h.b16 %v1124
        %v1222 = vunpack.c.l.b16 %v1125
        %v1223 = vpack.c.b16 %v1178, %v1175
        %v1224 = vpack.c.b16 %v1179, %v1176
        %v1225 = vpack.c.b16 %v1180, %v1177
        %v1226 = vpack.c.b16 %v1184, %v1181
        %v1227 = vpack.c.b16 %v1185, %v1182
        %v1228 = vpack.c.b16 %v1186, %v1183
        %v1229 = vpack.c.b16 %v1190, %v1187
        %v1230 = vpack.c.b16 %v1191, %v1188
        %v1231 = vpack.c.b16 %v1192, %v1189
        %v1232 = vpack.c.b16 %v1196, %v1193
        %v1233 = vpack.c.b16 %v1197, %v1194
        %v1234 = vpack.c.b16 %v1198, %v1195
        %v1235 = vpack.c.b16 %v1202, %v1199
        %v1236 = vpack.c.b16 %v1203, %v1200
        %v1237 = vpack.c.b16 %v1204, %v1201
        %v1238 = vpack.c.b16 %v1208, %v1205
        %v1239 = vpack.c.b16 %v1209, %v1206
        %v1240 = vpack.c.b16 %v1210, %v1207
        %v1241 = vpack.c.b16 %v1214, %v1211
        %v1242 = vpack.c.b16 %v1215, %v1212
        %v1243 = vpack.c.b16 %v1216, %v1213
        %v1244 = vpack.c.b16 %v1220, %v1217
        %v1245 = vpack.c.b16 %v1221, %v1218
        %v1246 = vpack.c.b16 %v1222, %v1219
        %1271 = vmatprep.subr.bf16.mxu0 %v1224
        %1272 = vmatpush1.bf16.msra.mxu0 %v1223
        %1273 = vmatprep.subr.bf16.mxu0 %v1227
        %1274 = vmatpush1.bf16.msra.mxu0 %v1226
        %1275 = vmatprep.subr.bf16.mxu0 %v1230
        %1276 = vmatpush1.bf16.msra.mxu0 %v1229
        %1277 = vmatprep.subr.bf16.mxu0 %v1233
        %1278 = vmatpush1.bf16.msra.mxu0 %v1232
        %1279 = vmatprep.subr.bf16.mxu0 %v1236
        %1280 = vmatpush1.bf16.msra.mxu0 %v1235
        %1281 = vmatprep.subr.bf16.mxu0 %v1239
        %1282 = vmatpush1.bf16.msra.mxu0 %v1238
        %1283 = vmatprep.subr.bf16.mxu0 %v1242
        %1284 = vmatpush1.bf16.msra.mxu0 %v1241
        %1285 = vmatprep.subr.bf16.mxu0 %v1245
        %1286 = vmatpush1.bf16.msra.mxu0 %v1244
        %1287 = vmatprep.subr.bf16.mxu0 0
        %1288 = vmatpush1.bf16.msra.mxu0 0
        %1289 = vmatprep.subr.bf16.mxu0 0
        %1290 = vmatpush1.bf16.msra.mxu0 0
        %1291 = vmatprep.subr.bf16.mxu0 0
        %1292 = vmatpush1.bf16.msra.mxu0 0
        %1293 = vmatprep.subr.bf16.mxu0 0
        %1294 = vmatpush1.bf16.msra.mxu0 0
        %1295 = vmatprep.subr.bf16.mxu0 0
        %1296 = vmatpush1.bf16.msra.mxu0 0
        %1297 = vmatprep.subr.bf16.mxu0 0
        %1298 = vmatpush1.bf16.msra.mxu0 0
        %1299 = vmatprep.subr.bf16.mxu0 0
        %1300 = vmatpush1.bf16.msra.mxu0 0
        %1301 = vmatprep.subr.bf16.mxu0 0
        %1302 = vmatpush1.bf16.msra.mxu0 0
        %1303 = vmatprep.mubr.bf16.mxu0 0
        %1304 = vmatmul.mubr.bf16.gmra.mrb[0].mxu0 %v1088
        %v1305 = vpop.f32.mrb[0].mxu0
        %v1306 = vadd.f32 %v1131, %v1305
        %v1307 = vpop.f32.mrb[0].mxu0
        %v1308 = vadd.f32 %v1135, %v1307
        %v1309 = vpop.f32.mrb[0].mxu0
        %v1310 = vadd.f32 %v1131, %v1309
        %v1311 = vpop.f32.mrb[0].mxu0
        %v1312 = vadd.f32 %v1135, %v1311
        %1313 = vmatprep.mubr.bf16.mxu0 0
        %1314 = vmatmul.mubr.bf16.gmra.mrb[0].mxu0 %v1089
        %v1315 = vpop.f32.mrb[0].mxu0
        %v1316 = vadd.f32 %v1131, %v1315
        %v1317 = vpop.f32.mrb[0].mxu0
        %v1318 = vadd.f32 %v1135, %v1317
        %v1319 = vpop.f32.mrb[0].mxu0
        %v1320 = vadd.f32 %v1131, %v1319
        %v1321 = vpop.f32.mrb[0].mxu0
        %v1322 = vadd.f32 %v1135, %v1321
        %1323 = vdwg.mxu0
        %1324 = vmatprep.subr.bf16.mxu0 0
        %1325 = vmatpush1.bf16.msra.mxu0 %v1225
        %1326 = vmatprep.subr.bf16.mxu0 0
        %1327 = vmatpush1.bf16.msra.mxu0 %v1228
        %1328 = vmatprep.subr.bf16.mxu0 0
        %1329 = vmatpush1.bf16.msra.mxu0 %v1231
        %1330 = vmatprep.subr.bf16.mxu0 0
        %1331 = vmatpush1.bf16.msra.mxu0 %v1234
        %1332 = vmatprep.subr.bf16.mxu0 0
        %1333 = vmatpush1.bf16.msra.mxu0 %v1237
        %1334 = vmatprep.subr.bf16.mxu0 0
        %1335 = vmatpush1.bf16.msra.mxu0 %v1240
        %1336 = vmatprep.subr.bf16.mxu0 0
        %1337 = vmatpush1.bf16.msra.mxu0 %v1243
        %1338 = vmatprep.subr.bf16.mxu0 0
        %1339 = vmatpush1.bf16.msra.mxu0 %v1246
        %1340 = vmatprep.subr.bf16.mxu0 0
        %1341 = vmatpush1.bf16.msra.mxu0 0
        %1342 = vmatprep.subr.bf16.mxu0 0
        %1343 = vmatpush1.bf16.msra.mxu0 0
        %1344 = vmatprep.subr.bf16.mxu0 0
        %1345 = vmatpush1.bf16.msra.mxu0 0
        %1346 = vmatprep.subr.bf16.mxu0 0
        %1347 = vmatpush1.bf16.msra.mxu0 0
        %1348 = vmatprep.subr.bf16.mxu0 0
        %1349 = vmatpush1.bf16.msra.mxu0 0
        %1350 = vmatprep.subr.bf16.mxu0 0
        %1351 = vmatpush1.bf16.msra.mxu0 0
        %1352 = vmatprep.subr.bf16.mxu0 0
        %1353 = vmatpush1.bf16.msra.mxu0 0
        %1354 = vmatprep.subr.bf16.mxu0 0
        %1355 = vmatpush1.bf16.msra.mxu0 0
        %1356 = vmatprep.mubr.bf16.mxu0 0
        %1357 = vmatmul.mubr.bf16.gmra.mrb[0].mxu0 %v1088
        %v1358 = vpop.f32.mrb[0].mxu0
        %v1359 = vadd.f32 %v1139, %v1358
        %v1360 = vpop.f32.mrb[0].mxu0
        %v1361 = vpop.f32.mrb[0].mxu0
        %v1362 = vadd.f32 %v1139, %v1361
        %v1363 = vpop.f32.mrb[0].mxu0
        %1364 = vmatprep.mubr.bf16.mxu0 0
        %1365 = vmatmul.mubr.bf16.gmra.mrb[0].mxu0 %v1089
        %v1366 = vpop.f32.mrb[0].mxu0
        %v1367 = vadd.f32 %v1139, %v1366
        %v1368 = vpop.f32.mrb[0].mxu0
        %v1369 = vpop.f32.mrb[0].mxu0
        %v1370 = vadd.f32 %v1139, %v1369
        %v1371 = vpop.f32.mrb[0].mxu0
        %1372 = vdwg.mxu0
        %v1373 = vld [vmem:[%s1000] sm:$0xf]
        %v1374 = vld [vmem:[%s1000 + $0x4] sm:$0xf]
        %v1375 = vld [vmem:[%s1000 + $0x8] sm:$0xf]
        %v1376 = vld [vmem:[%s1000 + $0xc] sm:$0xf]
        %v1377 = vld [vmem:[%s1000 + $0x10] sm:$0xf]
        %v1378 = vld [vmem:[%s1000 + $0x14] sm:$0xf]
        %v1379 = vld [vmem:[%s1000 + $0x18] sm:$0xf]
        %v1380 = vld [vmem:[%s1000 + $0x1c] sm:$0xf]
        %v1381 = vld [vmem:[%s1000 + $0x20] sm:$0xf]
        %v1382 = vld [vmem:[%s1000 + $0x24] sm:$0xf]
        %v1383 = vld [vmem:[%s1000 + $0x28] sm:$0xf]
        %v1384 = vld [vmem:[%s1000 + $0x2c] sm:$0xf]
        %v1385 = vld [vmem:[%s1000 + $0x30] sm:$0xf]
        %v1386 = vld [vmem:[%s1000 + $0x34] sm:$0xf]
        %v1387 = vld [vmem:[%s1000 + $0x38] sm:$0xf]
        %v1388 = vld [vmem:[%s1000 + $0x3c] sm:$0xf]
        %v1389 = vmul.f32 %v1306, 0.125
        %v1390 = vmul.f32 %v1310, 0.125
        %v1391 = vmul.f32 %v1316, 0.125
        %v1392 = vmul.f32 %v1320, 0.125
        %v1393 = vpack.c.bf16 %v1390, %v1389
        %v1394 = vpack.c.bf16 %v1392, %v1391
        %v1395 = vpack.c.bf16 %v1312, %v1308
        %v1396 = vpack.c.bf16 %v1322, %v1318
        %v1397 = vpack.c.bf16 %v1362, %v1359
        %v1398 = vpack.c.bf16 %v1370, %v1367
        %vm1399 = vcmask 523264
        %v1401 = vsel %vm1399, %v1393, 0
        %v1404 = vsel %vm1399, %v1394, 0
        %v1407 = vsel %vm1399, %v1395, 0
        %v1410 = vsel %vm1399, %v1396, 0
        %1412 = vmatprep.subr.bf16.mxu0 0
        %1413 = vmatpush1.bf16.xpose.msra.mxu0 %v1407
        %1414 = vmatprep.subr.bf16.mxu0 0
        %1415 = vmatpush1.bf16.xpose.msra.mxu0 %v1410
        %1416 = vmatprep.subr.bf16.mxu0 0
        %1417 = vmatpush1.bf16.xpose.msra.mxu0 0
        %1418 = vmatprep.subr.bf16.mxu0 0
        %1419 = vmatpush1.bf16.xpose.msra.mxu0 0
        %1420 = vmatprep.subr.bf16.mxu0 0
        %1421 = vmatpush1.bf16.xpose.msra.mxu0 0
        %1422 = vmatprep.subr.bf16.mxu0 0
        %1423 = vmatpush1.bf16.xpose.msra.mxu0 0
        %1424 = vmatprep.subr.bf16.mxu0 0
        %1425 = vmatpush1.bf16.xpose.msra.mxu0 0
        %1426 = vmatprep.subr.bf16.mxu0 0
        %1427 = vmatpush1.bf16.xpose.msra.mxu0 0
        %1428 = vmatprep.subr.bf16.mxu0 0
        %1429 = vmatpush1.bf16.xpose.msra.mxu0 0
        %1430 = vmatprep.subr.bf16.mxu0 0
        %1431 = vmatpush1.bf16.xpose.msra.mxu0 0
        %1432 = vmatprep.subr.bf16.mxu0 0
        %1433 = vmatpush1.bf16.xpose.msra.mxu0 0
        %1434 = vmatprep.subr.bf16.mxu0 0
        %1435 = vmatpush1.bf16.xpose.msra.mxu0 0
        %1436 = vmatprep.subr.bf16.mxu0 0
        %1437 = vmatpush1.bf16.xpose.msra.mxu0 0
        %1438 = vmatprep.subr.bf16.mxu0 0
        %1439 = vmatpush1.bf16.xpose.msra.mxu0 0
        %1440 = vmatprep.subr.bf16.mxu0 0
        %1441 = vmatpush1.bf16.xpose.msra.mxu0 0
        %1442 = vmatprep.subr.bf16.mxu0 0
        %1443 = vmatpush1.bf16.xpose.msra.mxu0 0
        %1444 = vmatprep.mubr.bf16.mxu0 0
        %1445 = vmatmul.mubr.bf16.gmra.mrb[0].mxu0 %v1401
        %v1446 = vpop.f32.mrb[0].mxu0
        %v1447 = vadd.f32 %v1090, %v1446
        %v1448 = vpop.f32.mrb[0].mxu0
        %v1449 = vpop.f32.mrb[0].mxu0
        %v1450 = vadd.f32 %v1091, %v1449
        %v1451 = vpop.f32.mrb[0].mxu0
        %1452 = vmatprep.mubr.bf16.mxu0 0
        %1453 = vmatmul.mubr.bf16.gmra.mrb[0].mxu0 %v1404
        %v1454 = vpop.f32.mrb[0].mxu0
        %v1455 = vadd.f32 %v1092, %v1454
        %v1456 = vpop.f32.mrb[0].mxu0
        %v1457 = vpop.f32.mrb[0].mxu0
        %v1458 = vadd.f32 %v1093, %v1457
        %v1459 = vpop.f32.mrb[0].mxu0
        %1460 = vdwg.mxu0
        %vm1461 = vcmask 261120
        %v1462 = vsel %vm1461, %v1447, -inf
        %1463 = vmax.xlane.f32.xlu0 %v1462
        %v1464 = vpop.xlane.xlu0 %1463
        %v1465 = vsel %vm1461, %v1450, -inf
        %1466 = vmax.xlane.f32.xlu0 %v1465
        %v1467 = vpop.xlane.xlu0 %1466
        %v1468 = vsel %vm1461, %v1455, -inf
        %1469 = vmax.xlane.f32.xlu0 %v1468
        %v1470 = vpop.xlane.xlu0 %1469
        %v1471 = vsel %vm1461, %v1458, -inf
        %1472 = vmax.xlane.f32.xlu0 %v1471
        %v1473 = vpop.xlane.xlu0 %1472
        %v1474 = vsub.f32 %v1447, %v1464
        %v1475 = vsub.f32 %v1450, %v1467
        %v1476 = vsub.f32 %v1455, %v1470
        %v1477 = vsub.f32 %v1458, %v1473
        %v1478 = vmul.f32 %v1474, 1.442695
        %v1479 = vpow.pop %v1478
        %v1480 = vmul.f32 %v1475, 1.442695
        %v1481 = vpow.pop %v1480
        %v1482 = vmul.f32 %v1476, 1.442695
        %v1483 = vpow.pop %v1482
        %v1484 = vmul.f32 %v1477, 1.442695
        %v1485 = vpow.pop %v1484
        %v1486 = vsel %vm1461, %v1479, 0.0
        %1487 = vadd.xlane.f32.xlu0 %v1486
        %v1488 = vpop.xlane.xlu0 %1487
        %v1489 = vsel %vm1461, %v1481, 0.0
        %1490 = vadd.xlane.f32.xlu0 %v1489
        %v1491 = vpop.xlane.xlu0 %1490
        %v1492 = vsel %vm1461, %v1483, 0.0
        %1493 = vadd.xlane.f32.xlu0 %v1492
        %v1494 = vpop.xlane.xlu0 %1493
        %v1495 = vsel %vm1461, %v1485, 0.0
        %1496 = vadd.xlane.f32.xlu0 %v1495
        %v1497 = vpop.xlane.xlu0 %1496
        %v1498 = vrcp.pop %v1488
        %v1499 = vrcp.pop %v1491
        %v1500 = vrcp.pop %v1494
        %v1501 = vrcp.pop %v1497
        %v1502 = vmul.f32 %v1479, %v1498
        %v1503 = vmul.f32 %v1481, %v1499
        %v1504 = vmul.f32 %v1483, %v1500
        %v1505 = vmul.f32 %v1485, %v1501
        %v1506 = vpack.c.bf16 %v1503, %v1502
        %v1507 = vpack.c.bf16 %v1505, %v1504
        %v1509 = vsel %vm1461, %v1506, 0
        %v1512 = vsel %vm1461, %v1507, 0
        %1514 = vmatprep.subr.bf16.mxu0 0
        %1515 = vmatpush1.bf16.msra.mxu0 %v1397
        %1516 = vmatprep.subr.bf16.mxu0 0
        %1517 = vmatpush1.bf16.msra.mxu0 %v1398
        %1518 = vmatprep.subr.bf16.mxu0 0
        %1519 = vmatpush1.bf16.msra.mxu0 0
        %1520 = vmatprep.subr.bf16.mxu0 0
        %1521 = vmatpush1.bf16.msra.mxu0 0
        %1522 = vmatprep.subr.bf16.mxu0 0
        %1523 = vmatpush1.bf16.msra.mxu0 0
        %1524 = vmatprep.subr.bf16.mxu0 0
        %1525 = vmatpush1.bf16.msra.mxu0 0
        %1526 = vmatprep.subr.bf16.mxu0 0
        %1527 = vmatpush1.bf16.msra.mxu0 0
        %1528 = vmatprep.subr.bf16.mxu0 0
        %1529 = vmatpush1.bf16.msra.mxu0 0
        %1530 = vmatprep.subr.bf16.mxu0 0
        %1531 = vmatpush1.bf16.msra.mxu0 0
        %1532 = vmatprep.subr.bf16.mxu0 0
        %1533 = vmatpush1.bf16.msra.mxu0 0
        %1534 = vmatprep.subr.bf16.mxu0 0
        %1535 = vmatpush1.bf16.msra.mxu0 0
        %1536 = vmatprep.subr.bf16.mxu0 0
        %1537 = vmatpush1.bf16.msra.mxu0 0
        %1538 = vmatprep.subr.bf16.mxu0 0
        %1539 = vmatpush1.bf16.msra.mxu0 0
        %1540 = vmatprep.subr.bf16.mxu0 0
        %1541 = vmatpush1.bf16.msra.mxu0 0
        %1542 = vmatprep.subr.bf16.mxu0 0
        %1543 = vmatpush1.bf16.msra.mxu0 0
        %1544 = vmatprep.subr.bf16.mxu0 0
        %1545 = vmatpush1.bf16.msra.mxu0 0
        %1546 = vmatprep.mubr.bf16.mxu0 0
        %1547 = vmatmul.mubr.bf16.gmra.mrb[0].mxu0 %v1509
        %v1548 = vpop.f32.mrb[0].mxu0
        %v1549 = vadd.f32 0.0, %v1548
        %v1550 = vpop.f32.mrb[0].mxu0
        %v1551 = vpop.f32.mrb[0].mxu0
        %v1552 = vadd.f32 0.0, %v1551
        %v1553 = vpop.f32.mrb[0].mxu0
        %1554 = vmatprep.mubr.bf16.mxu0 0
        %1555 = vmatmul.mubr.bf16.gmra.mrb[0].mxu0 %v1512
        %v1556 = vpop.f32.mrb[0].mxu0
        %v1557 = vadd.f32 0.0, %v1556
        %v1558 = vpop.f32.mrb[0].mxu0
        %v1559 = vpop.f32.mrb[0].mxu0
        %v1560 = vadd.f32 0.0, %v1559
        %v1561 = vpop.f32.mrb[0].mxu0
        %1562 = vdwg.mxu0
        %v1563 = vpack.c.bf16 %v1552, %v1549
        %v1564 = vpack.c.bf16 %v1560, %v1557
        %1567 = vrot.lane.b32.xlu0 %v1393, 64
        %v1568 = vpop.permute.xlu0 %1567
        %1569 = vrot.lane.b32.xlu0 %v1394, 64
        %v1570 = vpop.permute.xlu0 %1569
        %1573 = vrot.lane.b32.xlu0 %v1395, 64
        %v1574 = vpop.permute.xlu0 %1573
        %1575 = vrot.lane.b32.xlu0 %v1396, 64
        %v1576 = vpop.permute.xlu0 %1575
        %v1578 = vsel %vm1399, %v1568, 0
        %v1581 = vsel %vm1399, %v1570, 0
        %v1584 = vsel %vm1399, %v1574, 0
        %v1587 = vsel %vm1399, %v1576, 0
        %1589 = vmatprep.subr.bf16.mxu0 0
        %1590 = vmatpush1.bf16.xpose.msra.mxu0 %v1584
        %1591 = vmatprep.subr.bf16.mxu0 0
        %1592 = vmatpush1.bf16.xpose.msra.mxu0 %v1587
        %1593 = vmatprep.subr.bf16.mxu0 0
        %1594 = vmatpush1.bf16.xpose.msra.mxu0 0
        %1595 = vmatprep.subr.bf16.mxu0 0
        %1596 = vmatpush1.bf16.xpose.msra.mxu0 0
        %1597 = vmatprep.subr.bf16.mxu0 0
        %1598 = vmatpush1.bf16.xpose.msra.mxu0 0
        %1599 = vmatprep.subr.bf16.mxu0 0
        %1600 = vmatpush1.bf16.xpose.msra.mxu0 0
        %1601 = vmatprep.subr.bf16.mxu0 0
        %1602 = vmatpush1.bf16.xpose.msra.mxu0 0
        %1603 = vmatprep.subr.bf16.mxu0 0
        %1604 = vmatpush1.bf16.xpose.msra.mxu0 0
        %1605 = vmatprep.subr.bf16.mxu0 0
        %1606 = vmatpush1.bf16.xpose.msra.mxu0 0
        %1607 = vmatprep.subr.bf16.mxu0 0
        %1608 = vmatpush1.bf16.xpose.msra.mxu0 0
        %1609 = vmatprep.subr.bf16.mxu0 0
        %1610 = vmatpush1.bf16.xpose.msra.mxu0 0
        %1611 = vmatprep.subr.bf16.mxu0 0
        %1612 = vmatpush1.bf16.xpose.msra.mxu0 0
        %1613 = vmatprep.subr.bf16.mxu0 0
        %1614 = vmatpush1.bf16.xpose.msra.mxu0 0
        %1615 = vmatprep.subr.bf16.mxu0 0
        %1616 = vmatpush1.bf16.xpose.msra.mxu0 0
        %1617 = vmatprep.subr.bf16.mxu0 0
        %1618 = vmatpush1.bf16.xpose.msra.mxu0 0
        %1619 = vmatprep.subr.bf16.mxu0 0
        %1620 = vmatpush1.bf16.xpose.msra.mxu0 0
        %1621 = vmatprep.mubr.bf16.mxu0 0
        %1622 = vmatmul.mubr.bf16.gmra.mrb[0].mxu0 %v1578
        %v1623 = vpop.f32.mrb[0].mxu0
        %v1624 = vadd.f32 %v1090, %v1623
        %v1625 = vpop.f32.mrb[0].mxu0
        %v1626 = vpop.f32.mrb[0].mxu0
        %v1627 = vadd.f32 %v1091, %v1626
        %v1628 = vpop.f32.mrb[0].mxu0
        %1629 = vmatprep.mubr.bf16.mxu0 0
        %1630 = vmatmul.mubr.bf16.gmra.mrb[0].mxu0 %v1581
        %v1631 = vpop.f32.mrb[0].mxu0
        %v1632 = vadd.f32 %v1092, %v1631
        %v1633 = vpop.f32.mrb[0].mxu0
        %v1634 = vpop.f32.mrb[0].mxu0
        %v1635 = vadd.f32 %v1093, %v1634
        %v1636 = vpop.f32.mrb[0].mxu0
        %1637 = vdwg.mxu0
        %v1638 = vsel %vm1461, %v1624, -inf
        %1639 = vmax.xlane.f32.xlu0 %v1638
        %v1640 = vpop.xlane.xlu0 %1639
        %v1641 = vsel %vm1461, %v1627, -inf
        %1642 = vmax.xlane.f32.xlu0 %v1641
        %v1643 = vpop.xlane.xlu0 %1642
        %v1644 = vsel %vm1461, %v1632, -inf
        %1645 = vmax.xlane.f32.xlu0 %v1644
        %v1646 = vpop.xlane.xlu0 %1645
        %v1647 = vsel %vm1461, %v1635, -inf
        %1648 = vmax.xlane.f32.xlu0 %v1647
        %v1649 = vpop.xlane.xlu0 %1648
        %v1650 = vsub.f32 %v1624, %v1640
        %v1651 = vsub.f32 %v1627, %v1643
        %v1652 = vsub.f32 %v1632, %v1646
        %v1653 = vsub.f32 %v1635, %v1649
        %v1654 = vmul.f32 %v1650, 1.442695
        %v1655 = vpow.pop %v1654
        %v1656 = vmul.f32 %v1651, 1.442695
        %v1657 = vpow.pop %v1656
        %v1658 = vmul.f32 %v1652, 1.442695
        %v1659 = vpow.pop %v1658
        %v1660 = vmul.f32 %v1653, 1.442695
        %v1661 = vpow.pop %v1660
        %v1662 = vsel %vm1461, %v1655, 0.0
        %1663 = vadd.xlane.f32.xlu0 %v1662
        %v1664 = vpop.xlane.xlu0 %1663
        %v1665 = vsel %vm1461, %v1657, 0.0
        %1666 = vadd.xlane.f32.xlu0 %v1665
        %v1667 = vpop.xlane.xlu0 %1666
        %v1668 = vsel %vm1461, %v1659, 0.0
        %1669 = vadd.xlane.f32.xlu0 %v1668
        %v1670 = vpop.xlane.xlu0 %1669
        %v1671 = vsel %vm1461, %v1661, 0.0
        %1672 = vadd.xlane.f32.xlu0 %v1671
        %v1673 = vpop.xlane.xlu0 %1672
        %v1674 = vrcp.pop %v1664
        %v1675 = vrcp.pop %v1667
        %v1676 = vrcp.pop %v1670
        %v1677 = vrcp.pop %v1673
        %v1678 = vmul.f32 %v1655, %v1674
        %v1679 = vmul.f32 %v1657, %v1675
        %v1680 = vmul.f32 %v1659, %v1676
        %v1681 = vmul.f32 %v1661, %v1677
        %v1682 = vpack.c.bf16 %v1679, %v1678
        %v1683 = vpack.c.bf16 %v1681, %v1680
        %1686 = vrot.lane.b32.xlu0 %v1397, 64
        %v1687 = vpop.permute.xlu0 %1686
        %1688 = vrot.lane.b32.xlu0 %v1398, 64
        %v1689 = vpop.permute.xlu0 %1688
        %v1693 = vsel %vm1461, %v1682, 0
        %v1696 = vsel %vm1461, %v1683, 0
        %1698 = vmatprep.subr.bf16.mxu0 0
        %1699 = vmatpush1.bf16.msra.mxu0 %v1687
        %1700 = vmatprep.subr.bf16.mxu0 0
        %1701 = vmatpush1.bf16.msra.mxu0 %v1689
        %1702 = vmatprep.subr.bf16.mxu0 0
        %1703 = vmatpush1.bf16.msra.mxu0 0
        %1704 = vmatprep.subr.bf16.mxu0 0
        %1705 = vmatpush1.bf16.msra.mxu0 0
        %1706 = vmatprep.subr.bf16.mxu0 0
        %1707 = vmatpush1.bf16.msra.mxu0 0
        %1708 = vmatprep.subr.bf16.mxu0 0
        %1709 = vmatpush1.bf16.msra.mxu0 0
        %1710 = vmatprep.subr.bf16.mxu0 0
        %1711 = vmatpush1.bf16.msra.mxu0 0
        %1712 = vmatprep.subr.bf16.mxu0 0
        %1713 = vmatpush1.bf16.msra.mxu0 0
        %1714 = vmatprep.subr.bf16.mxu0 0
        %1715 = vmatpush1.bf16.msra.mxu0 0
        %1716 = vmatprep.subr.bf16.mxu0 0
        %1717 = vmatpush1.bf16.msra.mxu0 0
        %1718 = vmatprep.subr.bf16.mxu0 0
        %1719 = vmatpush1.bf16.msra.mxu0 0
        %1720 = vmatprep.subr.bf16.mxu0 0
        %1721 = vmatpush1.bf16.msra.mxu0 0
        %1722 = vmatprep.subr.bf16.mxu0 0
        %1723 = vmatpush1.bf16.msra.mxu0 0
        %1724 = vmatprep.subr.bf16.mxu0 0
        %1725 = vmatpush1.bf16.msra.mxu0 0
        %1726 = vmatprep.subr.bf16.mxu0 0
        %1727 = vmatpush1.bf16.msra.mxu0 0
        %1728 = vmatprep.subr.bf16.mxu0 0
        %1729 = vmatpush1.bf16.msra.mxu0 0
        %1730 = vmatprep.mubr.bf16.mxu0 0
        %1731 = vmatmul.mubr.bf16.gmra.mrb[0].mxu0 %v1693
        %v1732 = vpop.f32.mrb[0].mxu0
        %v1733 = vadd.f32 0.0, %v1732
        %v1734 = vpop.f32.mrb[0].mxu0
        %v1735 = vpop.f32.mrb[0].mxu0
        %v1736 = vadd.f32 0.0, %v1735
        %v1737 = vpop.f32.mrb[0].mxu0
        %1738 = vmatprep.mubr.bf16.mxu0 0
        %1739 = vmatmul.mubr.bf16.gmra.mrb[0].mxu0 %v1696
        %v1740 = vpop.f32.mrb[0].mxu0
        %v1741 = vadd.f32 0.0, %v1740
        %v1742 = vpop.f32.mrb[0].mxu0
        %v1743 = vpop.f32.mrb[0].mxu0
        %v1744 = vadd.f32 0.0, %v1743
        %v1745 = vpop.f32.mrb[0].mxu0
        %1746 = vdwg.mxu0
        %v1747 = vpack.c.bf16 %v1736, %v1733
        %v1748 = vpack.c.bf16 %v1744, %v1741
        %v1757 = vunpack.c.l.b16 %v1381
        %v1758 = vunpack.c.l.b16 %v1382
        %v1759 = vunpack.c.l.b16 %v1383
        %v1760 = vunpack.c.l.b16 %v1384
        %v1761 = vunpack.c.l.b16 %v1385
        %v1762 = vunpack.c.l.b16 %v1386
        %v1763 = vunpack.c.l.b16 %v1387
        %v1764 = vunpack.c.l.b16 %v1388
        %v1765 = vpack.c.b16 %v1758, %v1757
        %v1766 = vpack.c.b16 %v1760, %v1759
        %v1767 = vpack.c.b16 %v1762, %v1761
        %v1768 = vpack.c.b16 %v1764, %v1763
        %v1774 = vsel %vm1399, %v1747, 0
        %v1777 = vsel %vm1399, %v1748, 0
        %1779 = vmatprep.subr.bf16.mxu0 0
        %1780 = vmatpush1.bf16.msra.mxu0 %v1765
        %1781 = vmatprep.subr.bf16.mxu0 0
        %1782 = vmatpush1.bf16.msra.mxu0 %v1766
        %1783 = vmatprep.subr.bf16.mxu0 0
        %1784 = vmatpush1.bf16.msra.mxu0 %v1767
        %1785 = vmatprep.subr.bf16.mxu0 0
        %1786 = vmatpush1.bf16.msra.mxu0 %v1768
        %1787 = vmatprep.subr.bf16.mxu0 0
        %1788 = vmatpush1.bf16.msra.mxu0 0
        %1789 = vmatprep.subr.bf16.mxu0 0
        %1790 = vmatpush1.bf16.msra.mxu0 0
        %1791 = vmatprep.subr.bf16.mxu0 0
        %1792 = vmatpush1.bf16.msra.mxu0 0
        %1793 = vmatprep.subr.bf16.mxu0 0
        %1794 = vmatpush1.bf16.msra.mxu0 0
        %1795 = vmatprep.subr.bf16.mxu0 0
        %1796 = vmatpush1.bf16.msra.mxu0 0
        %1797 = vmatprep.subr.bf16.mxu0 0
        %1798 = vmatpush1.bf16.msra.mxu0 0
        %1799 = vmatprep.subr.bf16.mxu0 0
        %1800 = vmatpush1.bf16.msra.mxu0 0
        %1801 = vmatprep.subr.bf16.mxu0 0
        %1802 = vmatpush1.bf16.msra.mxu0 0
        %1803 = vmatprep.subr.bf16.mxu0 0
        %1804 = vmatpush1.bf16.msra.mxu0 0
        %1805 = vmatprep.subr.bf16.mxu0 0
        %1806 = vmatpush1.bf16.msra.mxu0 0
        %1807 = vmatprep.subr.bf16.mxu0 0
        %1808 = vmatpush1.bf16.msra.mxu0 0
        %1809 = vmatprep.subr.bf16.mxu0 0
        %1810 = vmatpush1.bf16.msra.mxu0 0
        %1811 = vmatprep.mubr.bf16.mxu0 0
        %1812 = vmatmul.mubr.bf16.gmra.mrb[0].mxu0 %v1774
        %v1813 = vpop.f32.mrb[0].mxu0
        %v1814 = vadd.f32 0.0, %v1813
        %v1815 = vpop.f32.mrb[0].mxu0
        %v1816 = vpop.f32.mrb[0].mxu0
        %v1817 = vadd.f32 0.0, %v1816
        %v1818 = vpop.f32.mrb[0].mxu0
        %1819 = vmatprep.mubr.bf16.mxu0 0
        %1820 = vmatmul.mubr.bf16.gmra.mrb[0].mxu0 %v1777
        %v1821 = vpop.f32.mrb[0].mxu0
        %v1822 = vadd.f32 0.0, %v1821
        %v1823 = vpop.f32.mrb[0].mxu0
        %v1824 = vpop.f32.mrb[0].mxu0
        %v1825 = vadd.f32 0.0, %v1824
        %v1826 = vpop.f32.mrb[0].mxu0
        %1827 = vdwg.mxu0
        %v1836 = vunpack.c.l.b16 %v1373
        %v1837 = vunpack.c.l.b16 %v1374
        %v1838 = vunpack.c.l.b16 %v1375
        %v1839 = vunpack.c.l.b16 %v1376
        %v1840 = vunpack.c.l.b16 %v1377
        %v1841 = vunpack.c.l.b16 %v1378
        %v1842 = vunpack.c.l.b16 %v1379
        %v1843 = vunpack.c.l.b16 %v1380
        %v1844 = vpack.c.b16 %v1837, %v1836
        %v1845 = vpack.c.b16 %v1839, %v1838
        %v1846 = vpack.c.b16 %v1841, %v1840
        %v1847 = vpack.c.b16 %v1843, %v1842
        %v1853 = vsel %vm1399, %v1563, 0
        %v1856 = vsel %vm1399, %v1564, 0
        %1858 = vmatprep.subr.bf16.mxu0 0
        %1859 = vmatpush1.bf16.msra.mxu0 %v1844
        %1860 = vmatprep.subr.bf16.mxu0 0
        %1861 = vmatpush1.bf16.msra.mxu0 %v1845
        %1862 = vmatprep.subr.bf16.mxu0 0
        %1863 = vmatpush1.bf16.msra.mxu0 %v1846
        %1864 = vmatprep.subr.bf16.mxu0 0
        %1865 = vmatpush1.bf16.msra.mxu0 %v1847
        %1866 = vmatprep.subr.bf16.mxu0 0
        %1867 = vmatpush1.bf16.msra.mxu0 0
        %1868 = vmatprep.subr.bf16.mxu0 0
        %1869 = vmatpush1.bf16.msra.mxu0 0
        %1870 = vmatprep.subr.bf16.mxu0 0
        %1871 = vmatpush1.bf16.msra.mxu0 0
        %1872 = vmatprep.subr.bf16.mxu0 0
        %1873 = vmatpush1.bf16.msra.mxu0 0
        %1874 = vmatprep.subr.bf16.mxu0 0
        %1875 = vmatpush1.bf16.msra.mxu0 0
        %1876 = vmatprep.subr.bf16.mxu0 0
        %1877 = vmatpush1.bf16.msra.mxu0 0
        %1878 = vmatprep.subr.bf16.mxu0 0
        %1879 = vmatpush1.bf16.msra.mxu0 0
        %1880 = vmatprep.subr.bf16.mxu0 0
        %1881 = vmatpush1.bf16.msra.mxu0 0
        %1882 = vmatprep.subr.bf16.mxu0 0
        %1883 = vmatpush1.bf16.msra.mxu0 0
        %1884 = vmatprep.subr.bf16.mxu0 0
        %1885 = vmatpush1.bf16.msra.mxu0 0
        %1886 = vmatprep.subr.bf16.mxu0 0
        %1887 = vmatpush1.bf16.msra.mxu0 0
        %1888 = vmatprep.subr.bf16.mxu0 0
        %1889 = vmatpush1.bf16.msra.mxu0 0
        %1890 = vmatprep.mubr.bf16.mxu0 0
        %1891 = vmatmul.mubr.bf16.gmra.mrb[0].mxu0 %v1853
        %v1892 = vpop.f32.mrb[0].mxu0
        %v1893 = vadd.f32 %v1814, %v1892
        %v1894 = vpop.f32.mrb[0].mxu0
        %v1895 = vpop.f32.mrb[0].mxu0
        %v1896 = vadd.f32 %v1817, %v1895
        %v1897 = vpop.f32.mrb[0].mxu0
        %1898 = vmatprep.mubr.bf16.mxu0 0
        %1899 = vmatmul.mubr.bf16.gmra.mrb[0].mxu0 %v1856
        %v1900 = vpop.f32.mrb[0].mxu0
        %v1901 = vadd.f32 %v1822, %v1900
        %v1902 = vpop.f32.mrb[0].mxu0
        %v1903 = vpop.f32.mrb[0].mxu0
        %v1904 = vadd.f32 %v1825, %v1903
        %v1905 = vpop.f32.mrb[0].mxu0
        %1906 = vdwg.mxu0
        %v1907 = vld [vmem:[%s1003] sm:$0x1]
        %v1909 = vlaneseq
        %v1910 = vshrl.u32 %v1909, 7
        %v1911 = vsub.s32 0, %v1910
        %v1912 = vrot.slane %v1907, %v1911
        %v1914 = vadd.f32 %v1893, %v1912
        %v1915 = vadd.f32 %v1896, %v1912
        %v1916 = vadd.f32 %v1901, %v1912
        %v1917 = vadd.f32 %v1904, %v1912
        %v1918 = vadd.f32 %v1914, %v1084
        %v1919 = vadd.f32 %v1915, %v1085
        %v1920 = vadd.f32 %v1916, %v1086
        %v1921 = vadd.f32 %v1917, %v1087
        %v1922 = vld [vmem:[%s824] sm:$0x1]
        %v1923 = vld [vmem:[%s832] sm:$0x1]
        %1924 = vadd.xlane.f32.xlu0 %v1918
        %v1925 = vpop.xlane.xlu0 %1924
        %1926 = vadd.xlane.f32.xlu0 %v1919
        %v1927 = vpop.xlane.xlu0 %1926
        %1928 = vadd.xlane.f32.xlu0 %v1920
        %v1929 = vpop.xlane.xlu0 %1928
        %1930 = vadd.xlane.f32.xlu0 %v1921
        %v1931 = vpop.xlane.xlu0 %1930
        %v1932 = vrcp.pop 128.0
        %v1933 = vmul.f32 %v1925, %v1932
        %v1934 = vmul.f32 %v1927, %v1932
        %v1935 = vmul.f32 %v1929, %v1932
        %v1936 = vmul.f32 %v1931, %v1932
        %v1937 = vsub.f32 %v1918, %v1933
        %v1938 = vsub.f32 %v1919, %v1934
        %v1939 = vsub.f32 %v1920, %v1935
        %v1940 = vsub.f32 %v1921, %v1936
        %v1941 = vmul.f32 %v1937, %v1937
        %v1942 = vmul.f32 %v1938, %v1938
        %v1943 = vmul.f32 %v1939, %v1939
        %v1944 = vmul.f32 %v1940, %v1940
        %1945 = vadd.xlane.f32.xlu0 %v1941
        %v1946 = vpop.xlane.xlu0 %1945
        %1947 = vadd.xlane.f32.xlu0 %v1942
        %v1948 = vpop.xlane.xlu0 %1947
        %1949 = vadd.xlane.f32.xlu0 %v1943
        %v1950 = vpop.xlane.xlu0 %1949
        %1951 = vadd.xlane.f32.xlu0 %v1944
        %v1952 = vpop.xlane.xlu0 %1951
        %v1953 = vmul.f32 %v1946, %v1932
        %v1954 = vmul.f32 %v1948, %v1932
        %v1955 = vmul.f32 %v1950, %v1932
        %v1956 = vmul.f32 %v1952, %v1932
        %v1957 = vadd.f32 %v1953, 1e-12
        %v1958 = vadd.f32 %v1954, 1e-12
        %v1959 = vadd.f32 %v1955, 1e-12
        %v1960 = vadd.f32 %v1956, 1e-12
        %v1961 = vrsqrt.pop %v1957
        %v1962 = vrsqrt.pop %v1958
        %v1963 = vrsqrt.pop %v1959
        %v1964 = vrsqrt.pop %v1960
        %v1965 = vmul.f32 %v1937, %v1961
        %v1966 = vmul.f32 %v1938, %v1962
        %v1967 = vmul.f32 %v1939, %v1963
        %v1968 = vmul.f32 %v1940, %v1964
        %v1970 = vlaneseq
        %v1971 = vshrl.u32 %v1970, 7
        %v1972 = vsub.s32 0, %v1971
        %v1973 = vrot.slane %v1922, %v1972
        %v1975 = vmul.f32 %v1965, %v1973
        %v1976 = vmul.f32 %v1966, %v1973
        %v1977 = vmul.f32 %v1967, %v1973
        %v1978 = vmul.f32 %v1968, %v1973
        %v1980 = vlaneseq
        %v1981 = vshrl.u32 %v1980, 7
        %v1982 = vsub.s32 0, %v1981
        %v1983 = vrot.slane %v1923, %v1982
        %v1985 = vadd.f32 %v1975, %v1983
        %v1986 = vadd.f32 %v1976, %v1983
        %v1987 = vadd.f32 %v1977, %v1983
        %v1988 = vadd.f32 %v1978, %v1983
        %v1989 = vpack.c.bf16 %v1986, %v1985
        %v1990 = vpack.c.bf16 %v1988, %v1987
        %v1991 = vld [vmem:[%s841] sm:$0xff]
        %v1992 = vld [vmem:[%s841 + $0x8] sm:$0xff]
        %v1993 = vld [vmem:[%s841 + $0x10] sm:$0xff]
        %v1994 = vld [vmem:[%s841 + $0x18] sm:$0xff]
        %v1995 = vld [vmem:[%s841 + $0x20] sm:$0xff]
        %v1996 = vld [vmem:[%s841 + $0x28] sm:$0xff]
        %v1997 = vld [vmem:[%s841 + $0x30] sm:$0xff]
        %v1998 = vld [vmem:[%s841 + $0x38] sm:$0xff]
        %v1999 = vld [vmem:[%s841 + $0x40] sm:$0xff]
        %v2000 = vld [vmem:[%s841 + $0x48] sm:$0xff]
        %v2001 = vld [vmem:[%s841 + $0x50] sm:$0xff]
        %v2002 = vld [vmem:[%s841 + $0x58] sm:$0xff]
        %v2003 = vld [vmem:[%s841 + $0x60] sm:$0xff]
        %v2004 = vld [vmem:[%s841 + $0x68] sm:$0xff]
        %v2005 = vld [vmem:[%s841 + $0x70] sm:$0xff]
        %v2006 = vld [vmem:[%s841 + $0x78] sm:$0xff]
        %v2007 = vld [vmem:[%s850] sm:$0x3]
        %v2009 = vlaneseq
        %v2010 = vshrl.u32 %v2009, 7
        %v2011 = vsub.s32 0, %v2010
        %v2012 = vrot.slane %v2007, %v2011
        %v2013 = vlaneseq
        %v2014 = vshrl.u32 %v2013, 7
        %v2015 = vsub.s32 1, %v2014
        %v2016 = vrot.slane %v2007, %v2015
        %v2035 = vunpack.c.l.b16 %v1991
        %v2036 = vunpack.c.h.b16 %v1991
        %v2037 = vunpack.c.l.b16 %v1992
        %v2038 = vunpack.c.h.b16 %v1992
        %v2039 = vunpack.c.l.b16 %v1993
        %v2040 = vunpack.c.h.b16 %v1993
        %v2041 = vunpack.c.l.b16 %v1994
        %v2042 = vunpack.c.h.b16 %v1994
        %v2043 = vunpack.c.l.b16 %v1995
        %v2044 = vunpack.c.h.b16 %v1995
        %v2045 = vunpack.c.l.b16 %v1996
        %v2046 = vunpack.c.h.b16 %v1996
        %v2047 = vunpack.c.l.b16 %v1997
        %v2048 = vunpack.c.h.b16 %v1997
        %v2049 = vunpack.c.l.b16 %v1998
        %v2050 = vunpack.c.h.b16 %v1998
        %v2051 = vunpack.c.l.b16 %v1999
        %v2052 = vunpack.c.h.b16 %v1999
        %v2053 = vunpack.c.l.b16 %v2000
        %v2054 = vunpack.c.h.b16 %v2000
        %v2055 = vunpack.c.l.b16 %v2001
        %v2056 = vunpack.c.h.b16 %v2001
        %v2057 = vunpack.c.l.b16 %v2002
        %v2058 = vunpack.c.h.b16 %v2002
        %v2059 = vunpack.c.l.b16 %v2003
        %v2060 = vunpack.c.h.b16 %v2003
        %v2061 = vunpack.c.l.b16 %v2004
        %v2062 = vunpack.c.h.b16 %v2004
        %v2063 = vunpack.c.l.b16 %v2005
        %v2064 = vunpack.c.h.b16 %v2005
        %v2065 = vunpack.c.l.b16 %v2006
        %v2066 = vunpack.c.h.b16 %v2006
        %v2067 = vpack.c.b16 %v2037, %v2035
        %v2068 = vpack.c.b16 %v2038, %v2036
        %v2069 = vpack.c.b16 %v2041, %v2039
        %v2070 = vpack.c.b16 %v2042, %v2040
        %v2071 = vpack.c.b16 %v2045, %v2043
        %v2072 = vpack.c.b16 %v2046, %v2044
        %v2073 = vpack.c.b16 %v2049, %v2047
        %v2074 = vpack.c.b16 %v2050, %v2048
        %v2075 = vpack.c.b16 %v2053, %v2051
        %v2076 = vpack.c.b16 %v2054, %v2052
        %v2077 = vpack.c.b16 %v2057, %v2055
        %v2078 = vpack.c.b16 %v2058, %v2056
        %v2079 = vpack.c.b16 %v2061, %v2059
        %v2080 = vpack.c.b16 %v2062, %v2060
        %v2081 = vpack.c.b16 %v2065, %v2063
        %v2082 = vpack.c.b16 %v2066, %v2064
        %2099 = vmatprep.subr.bf16.mxu0 %v2068
        %2100 = vmatpush1.bf16.msra.mxu0 %v2067
        %2101 = vmatprep.subr.bf16.mxu0 %v2070
        %2102 = vmatpush1.bf16.msra.mxu0 %v2069
        %2103 = vmatprep.subr.bf16.mxu0 %v2072
        %2104 = vmatpush1.bf16.msra.mxu0 %v2071
        %2105 = vmatprep.subr.bf16.mxu0 %v2074
        %2106 = vmatpush1.bf16.msra.mxu0 %v2073
        %2107 = vmatprep.subr.bf16.mxu0 %v2076
        %2108 = vmatpush1.bf16.msra.mxu0 %v2075
        %2109 = vmatprep.subr.bf16.mxu0 %v2078
        %2110 = vmatpush1.bf16.msra.mxu0 %v2077
        %2111 = vmatprep.subr.bf16.mxu0 %v2080
        %2112 = vmatpush1.bf16.msra.mxu0 %v2079
        %2113 = vmatprep.subr.bf16.mxu0 %v2082
        %2114 = vmatpush1.bf16.msra.mxu0 %v2081
        %2115 = vmatprep.subr.bf16.mxu0 0
        %2116 = vmatpush1.bf16.msra.mxu0 0
        %2117 = vmatprep.subr.bf16.mxu0 0
        %2118 = vmatpush1.bf16.msra.mxu0 0
        %2119 = vmatprep.subr.bf16.mxu0 0
        %2120 = vmatpush1.bf16.msra.mxu0 0
        %2121 = vmatprep.subr.bf16.mxu0 0
        %2122 = vmatpush1.bf16.msra.mxu0 0
        %2123 = vmatprep.subr.bf16.mxu0 0
        %2124 = vmatpush1.bf16.msra.mxu0 0
        %2125 = vmatprep.subr.bf16.mxu0 0
        %2126 = vmatpush1.bf16.msra.mxu0 0
        %2127 = vmatprep.subr.bf16.mxu0 0
        %2128 = vmatpush1.bf16.msra.mxu0 0
        %2129 = vmatprep.subr.bf16.mxu0 0
        %2130 = vmatpush1.bf16.msra.mxu0 0
        %2131 = vmatprep.mubr.bf16.mxu0 0
        %2132 = vmatmul.mubr.bf16.gmra.mrb[0].mxu0 %v1989
        %v2133 = vpop.f32.mrb[0].mxu0
        %v2134 = vadd.f32 %v2012, %v2133
        %v2135 = vpop.f32.mrb[0].mxu0
        %v2136 = vadd.f32 %v2016, %v2135
        %v2137 = vpop.f32.mrb[0].mxu0
        %v2138 = vadd.f32 %v2012, %v2137
        %v2139 = vpop.f32.mrb[0].mxu0
        %v2140 = vadd.f32 %v2016, %v2139
        %2141 = vmatprep.mubr.bf16.mxu0 0
        %2142 = vmatmul.mubr.bf16.gmra.mrb[0].mxu0 %v1990
        %v2143 = vpop.f32.mrb[0].mxu0
        %v2144 = vadd.f32 %v2012, %v2143
        %v2145 = vpop.f32.mrb[0].mxu0
        %v2146 = vadd.f32 %v2016, %v2145
        %v2147 = vpop.f32.mrb[0].mxu0
        %v2148 = vadd.f32 %v2012, %v2147
        %v2149 = vpop.f32.mrb[0].mxu0
        %v2150 = vadd.f32 %v2016, %v2149
        %2151 = vdwg.mxu0
        %v2152 = vmul.f32 %v2134, 0.5
        %v2153 = vmul.f32 %v2136, 0.5
        %v2154 = vmul.f32 %v2138, 0.5
        %v2155 = vmul.f32 %v2140, 0.5
        %v2156 = vmul.f32 %v2144, 0.5
        %v2157 = vmul.f32 %v2146, 0.5
        %v2158 = vmul.f32 %v2148, 0.5
        %v2159 = vmul.f32 %v2150, 0.5
        %v2160 = vmul.f32 %v2134, 0.70710677
        %v2161 = vmul.f32 %v2136, 0.70710677
        %v2162 = vmul.f32 %v2138, 0.70710677
        %v2163 = vmul.f32 %v2140, 0.70710677
        %v2164 = vmul.f32 %v2144, 0.70710677
        %v2165 = vmul.f32 %v2146, 0.70710677
        %v2166 = vmul.f32 %v2148, 0.70710677
        %v2167 = vmul.f32 %v2150, 0.70710677
        %v2168 = verf.f32.pop %v2160
        %v2169 = verf.f32.pop %v2161
        %v2170 = verf.f32.pop %v2162
        %v2171 = verf.f32.pop %v2163
        %v2172 = verf.f32.pop %v2164
        %v2173 = verf.f32.pop %v2165
        %v2174 = verf.f32.pop %v2166
        %v2175 = verf.f32.pop %v2167
        %v2176 = vadd.f32 %v2168, 1.0
        %v2177 = vadd.f32 %v2169, 1.0
        %v2178 = vadd.f32 %v2170, 1.0
        %v2179 = vadd.f32 %v2171, 1.0
        %v2180 = vadd.f32 %v2172, 1.0
        %v2181 = vadd.f32 %v2173, 1.0
        %v2182 = vadd.f32 %v2174, 1.0
        %v2183 = vadd.f32 %v2175, 1.0
        %v2184 = vmul.f32 %v2152, %v2176
        %v2185 = vmul.f32 %v2153, %v2177
        %v2186 = vmul.f32 %v2154, %v2178
        %v2187 = vmul.f32 %v2155, %v2179
        %v2188 = vmul.f32 %v2156, %v2180
        %v2189 = vmul.f32 %v2157, %v2181
        %v2190 = vmul.f32 %v2158, %v2182
        %v2191 = vmul.f32 %v2159, %v2183
        %v2192 = vpack.c.bf16 %v2186, %v2184
        %v2193 = vpack.c.bf16 %v2187, %v2185
        %v2194 = vpack.c.bf16 %v2190, %v2188
        %v2195 = vpack.c.bf16 %v2191, %v2189
        %v2196 = vld [vmem:[%s859] sm:$0xf]
        %v2197 = vld [vmem:[%s859 + $0x4] sm:$0xf]
        %v2198 = vld [vmem:[%s859 + $0x8] sm:$0xf]
        %v2199 = vld [vmem:[%s859 + $0xc] sm:$0xf]
        %v2200 = vld [vmem:[%s859 + $0x10] sm:$0xf]
        %v2201 = vld [vmem:[%s859 + $0x14] sm:$0xf]
        %v2202 = vld [vmem:[%s859 + $0x18] sm:$0xf]
        %v2203 = vld [vmem:[%s859 + $0x1c] sm:$0xf]
        %v2204 = vld [vmem:[%s859 + $0x20] sm:$0xf]
        %v2205 = vld [vmem:[%s859 + $0x24] sm:$0xf]
        %v2206 = vld [vmem:[%s859 + $0x28] sm:$0xf]
        %v2207 = vld [vmem:[%s859 + $0x2c] sm:$0xf]
        %v2208 = vld [vmem:[%s859 + $0x30] sm:$0xf]
        %v2209 = vld [vmem:[%s859 + $0x34] sm:$0xf]
        %v2210 = vld [vmem:[%s859 + $0x38] sm:$0xf]
        %v2211 = vld [vmem:[%s859 + $0x3c] sm:$0xf]
        %v2212 = vld [vmem:[%s859 + $0x40] sm:$0xf]
        %v2213 = vld [vmem:[%s859 + $0x44] sm:$0xf]
        %v2214 = vld [vmem:[%s859 + $0x48] sm:$0xf]
        %v2215 = vld [vmem:[%s859 + $0x4c] sm:$0xf]
        %v2216 = vld [vmem:[%s859 + $0x50] sm:$0xf]
        %v2217 = vld [vmem:[%s859 + $0x54] sm:$0xf]
        %v2218 = vld [vmem:[%s859 + $0x58] sm:$0xf]
        %v2219 = vld [vmem:[%s859 + $0x5c] sm:$0xf]
        %v2220 = vld [vmem:[%s859 + $0x60] sm:$0xf]
        %v2221 = vld [vmem:[%s859 + $0x64] sm:$0xf]
        %v2222 = vld [vmem:[%s859 + $0x68] sm:$0xf]
        %v2223 = vld [vmem:[%s859 + $0x6c] sm:$0xf]
        %v2224 = vld [vmem:[%s859 + $0x70] sm:$0xf]
        %v2225 = vld [vmem:[%s859 + $0x74] sm:$0xf]
        %v2226 = vld [vmem:[%s859 + $0x78] sm:$0xf]
        %v2227 = vld [vmem:[%s859 + $0x7c] sm:$0xf]
        %v2228 = vld [vmem:[%s867] sm:$0x1]
        %v2230 = vlaneseq
        %v2231 = vshrl.u32 %v2230, 7
        %v2232 = vsub.s32 0, %v2231
        %v2233 = vrot.slane %v2228, %v2232
        %v2267 = vunpack.c.l.b16 %v2196
        %v2268 = vunpack.c.l.b16 %v2197
        %v2269 = vunpack.c.l.b16 %v2198
        %v2270 = vunpack.c.l.b16 %v2199
        %v2271 = vunpack.c.l.b16 %v2200
        %v2272 = vunpack.c.l.b16 %v2201
        %v2273 = vunpack.c.l.b16 %v2202
        %v2274 = vunpack.c.l.b16 %v2203
        %v2275 = vunpack.c.l.b16 %v2204
        %v2276 = vunpack.c.l.b16 %v2205
        %v2277 = vunpack.c.l.b16 %v2206
        %v2278 = vunpack.c.l.b16 %v2207
        %v2279 = vunpack.c.l.b16 %v2208
        %v2280 = vunpack.c.l.b16 %v2209
        %v2281 = vunpack.c.l.b16 %v2210
        %v2282 = vunpack.c.l.b16 %v2211
        %v2283 = vunpack.c.l.b16 %v2212
        %v2284 = vunpack.c.l.b16 %v2213
        %v2285 = vunpack.c.l.b16 %v2214
        %v2286 = vunpack.c.l.b16 %v2215
        %v2287 = vunpack.c.l.b16 %v2216
        %v2288 = vunpack.c.l.b16 %v2217
        %v2289 = vunpack.c.l.b16 %v2218
        %v2290 = vunpack.c.l.b16 %v2219
        %v2291 = vunpack.c.l.b16 %v2220
        %v2292 = vunpack.c.l.b16 %v2221
        %v2293 = vunpack.c.l.b16 %v2222
        %v2294 = vunpack.c.l.b16 %v2223
        %v2295 = vunpack.c.l.b16 %v2224
        %v2296 = vunpack.c.l.b16 %v2225
        %v2297 = vunpack.c.l.b16 %v2226
        %v2298 = vunpack.c.l.b16 %v2227
        %v2299 = vpack.c.b16 %v2268, %v2267
        %v2300 = vpack.c.b16 %v2270, %v2269
        %v2301 = vpack.c.b16 %v2272, %v2271
        %v2302 = vpack.c.b16 %v2274, %v2273
        %v2303 = vpack.c.b16 %v2276, %v2275
        %v2304 = vpack.c.b16 %v2278, %v2277
        %v2305 = vpack.c.b16 %v2280, %v2279
        %v2306 = vpack.c.b16 %v2282, %v2281
        %v2307 = vpack.c.b16 %v2284, %v2283
        %v2308 = vpack.c.b16 %v2286, %v2285
        %v2309 = vpack.c.b16 %v2288, %v2287
        %v2310 = vpack.c.b16 %v2290, %v2289
        %v2311 = vpack.c.b16 %v2292, %v2291
        %v2312 = vpack.c.b16 %v2294, %v2293
        %v2313 = vpack.c.b16 %v2296, %v2295
        %v2314 = vpack.c.b16 %v2298, %v2297
        %2331 = vmatprep.subr.bf16.mxu0 0
        %2332 = vmatpush1.bf16.msra.mxu0 %v2299
        %2333 = vmatprep.subr.bf16.mxu0 0
        %2334 = vmatpush1.bf16.msra.mxu0 %v2300
        %2335 = vmatprep.subr.bf16.mxu0 0
        %2336 = vmatpush1.bf16.msra.mxu0 %v2301
        %2337 = vmatprep.subr.bf16.mxu0 0
        %2338 = vmatpush1.bf16.msra.mxu0 %v2302
        %2339 = vmatprep.subr.bf16.mxu0 0
        %2340 = vmatpush1.bf16.msra.mxu0 %v2303
        %2341 = vmatprep.subr.bf16.mxu0 0
        %2342 = vmatpush1.bf16.msra.mxu0 %v2304
        %2343 = vmatprep.subr.bf16.mxu0 0
        %2344 = vmatpush1.bf16.msra.mxu0 %v2305
        %2345 = vmatprep.subr.bf16.mxu0 0
        %2346 = vmatpush1.bf16.msra.mxu0 %v2306
        %2347 = vmatprep.subr.bf16.mxu0 0
        %2348 = vmatpush1.bf16.msra.mxu0 %v2307
        %2349 = vmatprep.subr.bf16.mxu0 0
        %2350 = vmatpush1.bf16.msra.mxu0 %v2308
        %2351 = vmatprep.subr.bf16.mxu0 0
        %2352 = vmatpush1.bf16.msra.mxu0 %v2309
        %2353 = vmatprep.subr.bf16.mxu0 0
        %2354 = vmatpush1.bf16.msra.mxu0 %v2310
        %2355 = vmatprep.subr.bf16.mxu0 0
        %2356 = vmatpush1.bf16.msra.mxu0 %v2311
        %2357 = vmatprep.subr.bf16.mxu0 0
        %2358 = vmatpush1.bf16.msra.mxu0 %v2312
        %2359 = vmatprep.subr.bf16.mxu0 0
        %2360 = vmatpush1.bf16.msra.mxu0 %v2313
        %2361 = vmatprep.subr.bf16.mxu0 0
        %2362 = vmatpush1.bf16.msra.mxu0 %v2314
        %2363 = vmatprep.mubr.bf16.mxu0 %v2193
        %2364 = vmatmul.mubr.bf16.gmra.mrb[0].mxu0 %v2192
        %v2365 = vpop.f32.mrb[0].mxu0
        %v2366 = vadd.f32 %v2233, %v2365
        %v2367 = vpop.f32.mrb[0].mxu0
        %v2368 = vpop.f32.mrb[0].mxu0
        %v2369 = vadd.f32 %v2233, %v2368
        %v2370 = vpop.f32.mrb[0].mxu0
        %2371 = vmatprep.mubr.bf16.mxu0 %v2195
        %2372 = vmatmul.mubr.bf16.gmra.mrb[0].mxu0 %v2194
        %v2373 = vpop.f32.mrb[0].mxu0
        %v2374 = vadd.f32 %v2233, %v2373
        %v2375 = vpop.f32.mrb[0].mxu0
        %v2376 = vpop.f32.mrb[0].mxu0
        %v2377 = vadd.f32 %v2233, %v2376
        %v2378 = vpop.f32.mrb[0].mxu0
        %2379 = vdwg.mxu0
        %v2380 = vadd.f32 %v2366, %v1985
        %v2381 = vadd.f32 %v2369, %v1986
        %v2382 = vadd.f32 %v2374, %v1987
        %v2383 = vadd.f32 %v2377, %v1988
        %v2384 = vld [vmem:[%s875] sm:$0x1]
        %v2385 = vld [vmem:[%s883] sm:$0x1]
        %2386 = vadd.xlane.f32.xlu0 %v2380
        %v2387 = vpop.xlane.xlu0 %2386
        %2388 = vadd.xlane.f32.xlu0 %v2381
        %v2389 = vpop.xlane.xlu0 %2388
        %2390 = vadd.xlane.f32.xlu0 %v2382
        %v2391 = vpop.xlane.xlu0 %2390
        %2392 = vadd.xlane.f32.xlu0 %v2383
        %v2393 = vpop.xlane.xlu0 %2392
        %v2394 = vmul.f32 %v2387, %v1932
        %v2395 = vmul.f32 %v2389, %v1932
        %v2396 = vmul.f32 %v2391, %v1932
        %v2397 = vmul.f32 %v2393, %v1932
        %v2398 = vsub.f32 %v2380, %v2394
        %v2399 = vsub.f32 %v2381, %v2395
        %v2400 = vsub.f32 %v2382, %v2396
        %v2401 = vsub.f32 %v2383, %v2397
        %v2402 = vmul.f32 %v2398, %v2398
        %v2403 = vmul.f32 %v2399, %v2399
        %v2404 = vmul.f32 %v2400, %v2400
        %v2405 = vmul.f32 %v2401, %v2401
        %2406 = vadd.xlane.f32.xlu0 %v2402
        %v2407 = vpop.xlane.xlu0 %2406
        %2408 = vadd.xlane.f32.xlu0 %v2403
        %v2409 = vpop.xlane.xlu0 %2408
        %2410 = vadd.xlane.f32.xlu0 %v2404
        %v2411 = vpop.xlane.xlu0 %2410
        %2412 = vadd.xlane.f32.xlu0 %v2405
        %v2413 = vpop.xlane.xlu0 %2412
        %v2414 = vmul.f32 %v2407, %v1932
        %v2415 = vmul.f32 %v2409, %v1932
        %v2416 = vmul.f32 %v2411, %v1932
        %v2417 = vmul.f32 %v2413, %v1932
        %v2418 = vadd.f32 %v2414, 1e-12
        %v2419 = vadd.f32 %v2415, 1e-12
        %v2420 = vadd.f32 %v2416, 1e-12
        %v2421 = vadd.f32 %v2417, 1e-12
        %v2422 = vrsqrt.pop %v2418
        %v2423 = vrsqrt.pop %v2419
        %v2424 = vrsqrt.pop %v2420
        %v2425 = vrsqrt.pop %v2421
        %v2426 = vmul.f32 %v2398, %v2422
        %v2427 = vmul.f32 %v2399, %v2423
        %v2428 = vmul.f32 %v2400, %v2424
        %v2429 = vmul.f32 %v2401, %v2425
        %v2431 = vlaneseq
        %v2432 = vshrl.u32 %v2431, 7
        %v2433 = vsub.s32 0, %v2432
        %v2434 = vrot.slane %v2384, %v2433
        %v2436 = vmul.f32 %v2426, %v2434
        %v2437 = vmul.f32 %v2427, %v2434
        %v2438 = vmul.f32 %v2428, %v2434
        %v2439 = vmul.f32 %v2429, %v2434
        %v2441 = vlaneseq
        %v2442 = vshrl.u32 %v2441, 7
        %v2443 = vsub.s32 0, %v2442
        %v2444 = vrot.slane %v2385, %v2443
        %v2446 = vadd.f32 %v2436, %v2444
        %v2447 = vadd.f32 %v2437, %v2444
        %v2448 = vadd.f32 %v2438, %v2444
        %v2449 = vadd.f32 %v2439, %v2444
        %2450 = vst [vmem:[#allocation2] sm:$0xff] %v2446
        %2451 = vst [vmem:[#allocation2 + $0x8] sm:$0xff] %v2447
        %2452 = vst [vmem:[#allocation2 + $0x10] sm:$0xff] %v2448
        %2453 = vst [vmem:[#allocation2 + $0x18] sm:$0xff] %v2449
        %p2454 = scmp.eq.s32.totalorder %s49, 1
        // Predicated region
        $region153: #{bert_fine_tune_forward.1} parent=99 // pred_check
          %p2455 = pneg %p2454
        $region154: #{bert_fine_tune_forward.1} parent=99 // pred_check_branch
          %2457 = sbr.rel (%p2455) target = $region156
        $region155: #{bert_fine_tune_forward.1} parent=99 // pred_region
          %v2458 = vpack.c.bf16 %v2446, %v2446
          %v2459 = vpack.c.bf16 %v2448, %v2448
          %v2460 = vld [vmem:[#allocation20] sm:$0xf]
          %v2461 = vld [vmem:[#allocation20 + $0x4] sm:$0xf]
          %v2462 = vld [vmem:[#allocation20 + $0x8] sm:$0xf]
          %v2463 = vld [vmem:[#allocation20 + $0xc] sm:$0xf]
          %v2464 = vld [vmem:[#allocation20 + $0x10] sm:$0xf]
          %v2465 = vld [vmem:[#allocation20 + $0x14] sm:$0xf]
          %v2466 = vld [vmem:[#allocation20 + $0x18] sm:$0xf]
          %v2467 = vld [vmem:[#allocation20 + $0x1c] sm:$0xf]
          %v2468 = vld [vmem:[#allocation20 + $0x20] sm:$0xf]
          %v2469 = vld [vmem:[#allocation20 + $0x24] sm:$0xf]
          %v2470 = vld [vmem:[#allocation20 + $0x28] sm:$0xf]
          %v2471 = vld [vmem:[#allocation20 + $0x2c] sm:$0xf]
          %v2472 = vld [vmem:[#allocation20 + $0x30] sm:$0xf]
          %v2473 = vld [vmem:[#allocation20 + $0x34] sm:$0xf]
          %v2474 = vld [vmem:[#allocation20 + $0x38] sm:$0xf]
          %v2475 = vld [vmem:[#allocation20 + $0x3c] sm:$0xf]
          %v2476 = vld [vmem:[#allocation21] sm:$0x1]
          %v2478 = vlaneseq
          %v2479 = vshrl.u32 %v2478, 7
          %v2480 = vsub.s32 0, %v2479
          %v2481 = vrot.slane %v2476, %v2480
          %v2485 = vunpack.c.l.b16 %v2458
          %v2486 = vunpack.c.l.b16 %v2459
          %v2487 = vrot.slane %v2486, 7
          %vm2488 = vcmask 1041409
          %v2489 = vsel %vm2488, %v2487, %v2485
          %v2490 = vpack.c.b16 %v2489, %v2489
          %v2508 = vunpack.c.l.b16 %v2460
          %v2509 = vunpack.c.l.b16 %v2461
          %v2510 = vunpack.c.l.b16 %v2462
          %v2511 = vunpack.c.l.b16 %v2463
          %v2512 = vunpack.c.l.b16 %v2464
          %v2513 = vunpack.c.l.b16 %v2465
          %v2514 = vunpack.c.l.b16 %v2466
          %v2515 = vunpack.c.l.b16 %v2467
          %v2516 = vunpack.c.l.b16 %v2468
          %v2517 = vunpack.c.l.b16 %v2469
          %v2518 = vunpack.c.l.b16 %v2470
          %v2519 = vunpack.c.l.b16 %v2471
          %v2520 = vunpack.c.l.b16 %v2472
          %v2521 = vunpack.c.l.b16 %v2473
          %v2522 = vunpack.c.l.b16 %v2474
          %v2523 = vunpack.c.l.b16 %v2475
          %v2524 = vpack.c.b16 %v2509, %v2508
          %v2525 = vpack.c.b16 %v2511, %v2510
          %v2526 = vpack.c.b16 %v2513, %v2512
          %v2527 = vpack.c.b16 %v2515, %v2514
          %v2528 = vpack.c.b16 %v2517, %v2516
          %v2529 = vpack.c.b16 %v2519, %v2518
          %v2530 = vpack.c.b16 %v2521, %v2520
          %v2531 = vpack.c.b16 %v2523, %v2522
          %2540 = vmatprep.subr.bf16.mxu0 0
          %2541 = vmatpush1.bf16.msra.mxu0 %v2524
          %2542 = vmatprep.subr.bf16.mxu0 0
          %2543 = vmatpush1.bf16.msra.mxu0 %v2525
          %2544 = vmatprep.subr.bf16.mxu0 0
          %2545 = vmatpush1.bf16.msra.mxu0 %v2526
          %2546 = vmatprep.subr.bf16.mxu0 0
          %2547 = vmatpush1.bf16.msra.mxu0 %v2527
          %2548 = vmatprep.subr.bf16.mxu0 0
          %2549 = vmatpush1.bf16.msra.mxu0 %v2528
          %2550 = vmatprep.subr.bf16.mxu0 0
          %2551 = vmatpush1.bf16.msra.mxu0 %v2529
          %2552 = vmatprep.subr.bf16.mxu0 0
          %2553 = vmatpush1.bf16.msra.mxu0 %v2530
          %2554 = vmatprep.subr.bf16.mxu0 0
          %2555 = vmatpush1.bf16.msra.mxu0 %v2531
          %2556 = vmatprep.subr.bf16.mxu0 0
          %2557 = vmatpush1.bf16.msra.mxu0 0
          %2558 = vmatprep.subr.bf16.mxu0 0
          %2559 = vmatpush1.bf16.msra.mxu0 0
          %2560 = vmatprep.subr.bf16.mxu0 0
          %2561 = vmatpush1.bf16.msra.mxu0 0
          %2562 = vmatprep.subr.bf16.mxu0 0
          %2563 = vmatpush1.bf16.msra.mxu0 0
          %2564 = vmatprep.subr.bf16.mxu0 0
          %2565 = vmatpush1.bf16.msra.mxu0 0
          %2566 = vmatprep.subr.bf16.mxu0 0
          %2567 = vmatpush1.bf16.msra.mxu0 0
          %2568 = vmatprep.subr.bf16.mxu0 0
          %2569 = vmatpush1.bf16.msra.mxu0 0
          %2570 = vmatprep.subr.bf16.mxu0 0
          %2571 = vmatpush1.bf16.msra.mxu0 0
          %2572 = vmatprep.mubr.bf16.mxu0 0
          %2573 = vmatmul.mubr.bf16.gmra.mrb[0].mxu0 %v2490
          %v2574 = vpop.f32.mrb[0].mxu0
          %v2575 = vadd.f32 %v2481, %v2574
          %v2576 = vpop.f32.mrb[0].mxu0
          %v2577 = vpop.f32.mrb[0].mxu0
          %v2578 = vpop.f32.mrb[0].mxu0
          %2579 = vdwg.mxu0
          %v2580 = vtanh.pop %v2575
          %v2581 = vpack.c.bf16 %v2580, %v2580
          %v2582 = vld [vmem:[%s18] sm:$0xf]
          %v2583 = vld [vmem:[%s18 + $0x4] sm:$0xf]
          %v2584 = vld [vmem:[%s18 + $0x8] sm:$0xf]
          %v2585 = vld [vmem:[%s18 + $0xc] sm:$0xf]
          %v2586 = vld [vmem:[%s18 + $0x10] sm:$0xf]
          %v2587 = vld [vmem:[%s18 + $0x14] sm:$0xf]
          %v2588 = vld [vmem:[%s18 + $0x18] sm:$0xf]
          %v2589 = vld [vmem:[%s18 + $0x1c] sm:$0xf]
          %v2590 = vld [vmem:[%s18 + $0x20] sm:$0xf]
          %v2591 = vld [vmem:[%s18 + $0x24] sm:$0xf]
          %v2592 = vld [vmem:[%s18 + $0x28] sm:$0xf]
          %v2593 = vld [vmem:[%s18 + $0x2c] sm:$0xf]
          %v2594 = vld [vmem:[%s18 + $0x30] sm:$0xf]
          %v2595 = vld [vmem:[%s18 + $0x34] sm:$0xf]
          %v2596 = vld [vmem:[%s18 + $0x38] sm:$0xf]
          %v2597 = vld [vmem:[%s18 + $0x3c] sm:$0xf]
          %v2598 = vld [vmem:[%s19] sm:$0x1]
          %v2600 = vlaneseq
          %v2601 = vshrl.u32 %v2600, 7
          %v2602 = vsub.s32 0, %v2601
          %v2603 = vrot.slane %v2598, %v2602
          %v2621 = vunpack.c.l.b16 %v2582
          %v2622 = vunpack.c.l.b16 %v2583
          %v2623 = vunpack.c.l.b16 %v2584
          %v2624 = vunpack.c.l.b16 %v2585
          %v2625 = vunpack.c.l.b16 %v2586
          %v2626 = vunpack.c.l.b16 %v2587
          %v2627 = vunpack.c.l.b16 %v2588
          %v2628 = vunpack.c.l.b16 %v2589
          %v2629 = vunpack.c.l.b16 %v2590
          %v2630 = vunpack.c.l.b16 %v2591
          %v2631 = vunpack.c.l.b16 %v2592
          %v2632 = vunpack.c.l.b16 %v2593
          %v2633 = vunpack.c.l.b16 %v2594
          %v2634 = vunpack.c.l.b16 %v2595
          %v2635 = vunpack.c.l.b16 %v2596
          %v2636 = vunpack.c.l.b16 %v2597
          %v2637 = vpack.c.b16 %v2622, %v2621
          %v2638 = vpack.c.b16 %v2624, %v2623
          %v2639 = vpack.c.b16 %v2626, %v2625
          %v2640 = vpack.c.b16 %v2628, %v2627
          %v2641 = vpack.c.b16 %v2630, %v2629
          %v2642 = vpack.c.b16 %v2632, %v2631
          %v2643 = vpack.c.b16 %v2634, %v2633
          %v2644 = vpack.c.b16 %v2636, %v2635
          %2653 = vmatprep.subr.bf16.mxu0 0
          %2654 = vmatpush1.bf16.msra.mxu0 %v2637
          %2655 = vmatprep.subr.bf16.mxu0 0
          %2656 = vmatpush1.bf16.msra.mxu0 %v2638
          %2657 = vmatprep.subr.bf16.mxu0 0
          %2658 = vmatpush1.bf16.msra.mxu0 %v2639
          %2659 = vmatprep.subr.bf16.mxu0 0
          %2660 = vmatpush1.bf16.msra.mxu0 %v2640
          %2661 = vmatprep.subr.bf16.mxu0 0
          %2662 = vmatpush1.bf16.msra.mxu0 %v2641
          %2663 = vmatprep.subr.bf16.mxu0 0
          %2664 = vmatpush1.bf16.msra.mxu0 %v2642
          %2665 = vmatprep.subr.bf16.mxu0 0
          %2666 = vmatpush1.bf16.msra.mxu0 %v2643
          %2667 = vmatprep.subr.bf16.mxu0 0
          %2668 = vmatpush1.bf16.msra.mxu0 %v2644
          %2669 = vmatprep.subr.bf16.mxu0 0
          %2670 = vmatpush1.bf16.msra.mxu0 0
          %2671 = vmatprep.subr.bf16.mxu0 0
          %2672 = vmatpush1.bf16.msra.mxu0 0
          %2673 = vmatprep.subr.bf16.mxu0 0
          %2674 = vmatpush1.bf16.msra.mxu0 0
          %2675 = vmatprep.subr.bf16.mxu0 0
          %2676 = vmatpush1.bf16.msra.mxu0 0
          %2677 = vmatprep.subr.bf16.mxu0 0
          %2678 = vmatpush1.bf16.msra.mxu0 0
          %2679 = vmatprep.subr.bf16.mxu0 0
          %2680 = vmatpush1.bf16.msra.mxu0 0
          %2681 = vmatprep.subr.bf16.mxu0 0
          %2682 = vmatpush1.bf16.msra.mxu0 0
          %2683 = vmatprep.subr.bf16.mxu0 0
          %2684 = vmatpush1.bf16.msra.mxu0 0
          %2685 = vmatprep.mubr.bf16.mxu0 0
          %2686 = vmatmul.mubr.bf16.gmra.mrb[0].mxu0 %v2581
          %v2687 = vpop.f32.mrb[0].mxu0
          %v2688 = vadd.f32 %v2603, %v2687
          %v2689 = vpop.f32.mrb[0].mxu0
          %v2690 = vpop.f32.mrb[0].mxu0
          %v2691 = vpop.f32.mrb[0].mxu0
          %2692 = vdwg.mxu0
          %2693 = vst [vmem:[#allocation23] sm:$0x3] %v2688
        $region156: #{bert_fine_tune_forward.1} parent=99 // pred_fallthru
          _
        // Predicated region
        $region157: #{bert_fine_tune_forward.1} parent=99 // pred_check
          %p2694 = pneg %p542
        $region158: #{bert_fine_tune_forward.1} parent=99 // pred_check_branch
          %2696 = sbr.rel (%p2694) target = $region160
        $region159: #{bert_fine_tune_forward.1} parent=99 // pred_region
          %s2698 = ssub.s32 32, 32
          %2699 = vsyncadd [#allocation5], %s2698
          %s2701 = sshll.u32 [#allocation23], 4
          %s2702 = int_to_ptr.vmem [resolvable:$true] %s2701
          %2704 = dma.vmem_to_hbm [thread:$0]  %s2702, 32, %s20, [#allocation5]
        $region160: #{bert_fine_tune_forward.1} parent=99 // pred_fallthru
          _
        // Predicated region
        $region161: #{bert_fine_tune_forward.1} parent=99 // pred_check
          %p2705 = pneg %p542
        $region162: #{bert_fine_tune_forward.1} parent=99 // pred_check_branch
          %2707 = sbr.rel (%p2705) target = $region164
        $region163: #{bert_fine_tune_forward.1} parent=99 // pred_region
          %2708 = dma.done [#allocation5], 32
        $region164: #{bert_fine_tune_forward.1} parent=99 // pred_fallthru
          _
      $region100: #{bert_fine_tune_forward.1} parent=5 // pred_fallthru
        _
      %p2709 = scmp.le.s32.totalorder 2, %s44
      // Predicated region
      $region165: #{bert_fine_tune_forward.1} parent=5 // pred_check
        %p2710 = pneg %p2709
      $region166: #{bert_fine_tune_forward.1} parent=5 // pred_check_branch
        %2712 = sbr.rel (%p2710) target = $region168
      $region167: #{bert_fine_tune_forward.1} parent=5 // pred_region
        %s2713 = ssub.s32 %s44, 2
      $region168: #{bert_fine_tune_forward.1} parent=5 // pred_fallthru
        _
    $region6: #{bert_fine_tune_forward.1} parent=1 // loop_footer
      %s48 = sadd.s32 1, %s44
    $region7: #{bert_fine_tune_forward.1} parent=1 // loop_footer_branch
      %43 = sbr.rel target = $region3
    $region8: #{bert_fine_tune_forward.1} parent=1 // loop_exit
      _
    %2714 = vsyncpa [#allocation4], 1
    %s2715 = scalar_lea.sflag [#allocation4], 1
    %2716 = vsyncpa %s2715, 1
    %2717 = vsyncpa [#allocation7], 1
    %s2718 = scalar_lea.sflag [#allocation7], 1
    %2719 = vsyncpa %s2718, 1
    %2720 = vsyncpa [#allocation10], 1
    %s2721 = scalar_lea.sflag [#allocation10], 1
    %2722 = vsyncpa %s2721, 1
    %2723 = vsyncpa [#allocation13], 1
    %s2724 = scalar_lea.sflag [#allocation13], 1
    %2725 = vsyncpa %s2724, 1
    %2726 = vsyncpa [#allocation16], 1
    %s2727 = scalar_lea.sflag [#allocation16], 1
    %2728 = vsyncpa %s2727, 1
    %2729 = vsyncpa [#allocation19], 1
    %s2730 = scalar_lea.sflag [#allocation19], 1
    %2731 = vsyncpa %s2730, 1
    %2732 = vsyncpa [#allocation22], 1
    %2733 = vsyncpa [#allocation5], 1
    %s2734 = scalar_lea.sflag [#allocation5], 1
    %2735 = vsyncpa %s2734, 1

</llo_original>
